<compile_context>
chip_gen: v7x
topology: tpu7x:2x2x1
jax: 0.10.0
libtpu: 0.0.40
codegen_flags: <defaults>
</compile_context>

<pallas_src>
import functools
import itertools

import jax
import jax.numpy as jnp
import numpy as np
from jax import lax
from jax.experimental import pallas as pl
from jax.experimental.pallas import tpu as pltpu


def _cga_kernel(x_ref, wqkv_ref, bqkv_ref, ab_ref, wp_ref, bp_ref, o_ref, *,
                num_heads, key_dim, q_tile):
    """One batch block per grid step (everything stays in VMEM).

    x_ref     : (block_b, N, dim)           input, channels-last, N = H*W, f32
    wqkv_ref  : (num_heads, Cg, 2*kd + d)   fused folded 1x1-conv+BN weights, bf16
                                            (softmax scale folded into the q columns)
    bqkv_ref  : (num_heads, 1, 2*kd + d)    fused folded biases, f32
    ab_ref    : (num_heads, N, N)           gathered relative-position bias, bf16
    wp_ref    : (num_heads, d, dim)         folded projection weight, split per head, bf16
    bp_ref    : (1, dim)                    folded projection bias, f32
    o_ref     : (block_b, N, dim)           output, f32
    """
    block_b, n, dim = x_ref.shape
    cg = dim // num_heads
    n_qt = n // q_tile
    bp = bp_ref[...]                                       # (1, dim), hoisted

    for b in range(block_b):
        x = x_ref[b]                                       # (N, dim) f32
        feat = x[:, 0:cg]                                  # head-0 cascade input
        for i in range(num_heads):
            if i > 0:
                # Cascade: previous head's attention output + this head's input chunk.
                feat = feat + x[:, i * cg:(i + 1) * cg]

            # Fused q|k|v projection (one MXU push, f32 accumulation). Scale is
            # already folded into the q columns of the weight/bias.
            qkv = jnp.dot(feat.astype(jnp.bfloat16), wqkv_ref[i],
                          preferred_element_type=jnp.float32) + bqkv_ref[i]
            q = qkv[:, :key_dim]                           # (N, kd)  f32 (pre-scaled)
            k = qkv[:, key_dim:2 * key_dim].astype(jnp.bfloat16)   # (N, kd)
            v = qkv[:, 2 * key_dim:].astype(jnp.bfloat16)          # (N, d)

            out_tiles = []
            for t in range(n_qt):                          # tile softmax over query rows
                r0 = t * q_tile
                q_t = q[r0:r0 + q_tile, :].astype(jnp.bfloat16)
                logits = lax.dot_general(q_t, k, (((1,), (1,)), ((), ())),
                                         preferred_element_type=jnp.float32)
                logits = logits + ab_ref[i, pl.ds(r0, q_tile), :].astype(jnp.float32)
                logits = logits - jnp.max(logits, axis=-1, keepdims=True)
                p = jnp.exp(logits)
                row_sum = jnp.sum(p, axis=-1, keepdims=True)
                pv = jnp.dot(p.astype(jnp.bfloat16), v,
                             preferred_element_type=jnp.float32)   # (q_tile, d)
                # Normalize after the PV matmul (EUP approx reciprocal, free slot).
                out_t = pv * pl.reciprocal(row_sum, approx=True)

                # Per-head output-projection accumulation (no head concat).
                proj = jnp.dot(jnp.maximum(out_t, 0.0).astype(jnp.bfloat16),
                               wp_ref[i], preferred_element_type=jnp.float32)
                row = pl.ds(r0, q_tile)
                if i == 0:
                    o_ref[b, row, :] = (proj + bp).astype(o_ref.dtype)
                else:
                    o_ref[b, row, :] = o_ref[b, row, :] + proj.astype(o_ref.dtype)

                if i + 1 < num_heads:
                    out_tiles.append(out_t)

            if i + 1 < num_heads:
                feat = jnp.concatenate(out_tiles, axis=0)   # next head's cascade input


def cascaded_group_attention(x_nlc, wqkv, bqkv, ab, wp, bp, *, key_dim, block_b=1):
    """x_nlc: (B, N, dim) channels-last input (f32). Returns (B, N, dim).

    wqkv: (num_heads, Cg, 2*key_dim + d) bf16, scale pre-folded into q columns.
    bqkv: (num_heads, 1, 2*key_dim + d)  f32.
    ab  : (num_heads, N, N)              bf16 gathered rel-pos bias.
    wp  : (num_heads, d, dim)            bf16 per-head projection weight.
    bp  : (1, dim)                       f32 projection bias.
    block_b: batch elements per grid step (1 for v7x megacore parallelism; >1 can
             amortize per-step overhead on single-TC v5e/v6e).
    """
    B, N, dim = x_nlc.shape
    num_heads, cg, dout = wqkv.shape
    d = dout - 2 * key_dim
    assert dim % num_heads == 0 and cg == dim // num_heads
    # The module's cascade add (feat = out_i + chunk_{i+1}) requires d == dim // num_heads.
    assert d == cg, "CascadedGroupAttention needs attn_ratio*key_dim == dim // num_heads"
    assert B % block_b == 0
    q_tile = 128 if N % 128 == 0 else N

    kernel = functools.partial(_cga_kernel, num_heads=num_heads,
                               key_dim=key_dim, q_tile=q_tile)

    def _const_spec(arr):
        nd = arr.ndim
        return pl.BlockSpec(arr.shape, lambda g, _nd=nd: (0,) * _nd)

    grid_spec = pltpu.PrefetchScalarGridSpec(
        num_scalar_prefetch=0,
        grid=(B // block_b,),
        in_specs=[
            pl.BlockSpec((block_b, N, dim), lambda g: (g, 0, 0)),
            _const_spec(wqkv), _const_spec(bqkv), _const_spec(ab),
            _const_spec(wp), _const_spec(bp),
        ],
        out_specs=pl.BlockSpec((block_b, N, dim), lambda g: (g, 0, 0)),
    )

    flops = int(B * num_heads * (2 * N * cg * dout
                                 + 2 * N * N * key_dim
                                 + 2 * N * N * d
                                 + 2 * N * d * dim))
    transcendentals = int(B * num_heads * N * (N + 1))
    bytes_accessed = int(2 * 4 * x_nlc.size + 2 * ab.size + 2 * wqkv.size
                         + 4 * bqkv.size + 2 * wp.size + 4 * bp.size)

    return pl.pallas_call(
        kernel,
        out_shape=jax.ShapeDtypeStruct((B, N, dim), x_nlc.dtype),
        grid_spec=grid_spec,
        compiler_params=pltpu.CompilerParams(
            dimension_semantics=("parallel",)),
        cost_estimate=pl.CostEstimate(flops=flops,
                                      transcendentals=transcendentals,
                                      bytes_accessed=bytes_accessed),
    )(x_nlc, wqkv, bqkv, ab, wp, bp)


def _fold_bn(w_oi, gamma, beta, mean, var, eps=1e-5):
    """Fold BatchNorm into a 1x1 conv weight (O, I) and bias (O,)."""
    s = gamma / jnp.sqrt(var + eps)
    return w_oi * s[:, None], beta - mean * s


def _attention_bias_table(num_heads, resolution, key):
    """Build attention_biases[:, attention_bias_idxs] exactly like the PyTorch module."""
    points = list(itertools.product(range(resolution), range(resolution)))
    n = len(points)
    offsets = {}
    idxs = []
    for p1 in points:
        for p2 in points:
            off = (abs(p1[0] - p2[0]), abs(p1[1] - p2[1]))
            if off not in offsets:
                offsets[off] = len(offsets)
            idxs.append(offsets[off])
    idxs = np.asarray(idxs, dtype=np.int32).reshape(n, n)
    biases = 0.02 * jax.random.normal(key, (num_heads, len(offsets)), jnp.float32)
    return biases[:, idxs]                          # (num_heads, N, N)


def _reference(x_nlc, wq, wk, wv, bq, bk, bv, ab, wp, bp, *, key_dim):
    """Pure-JAX f32 mirror of the PyTorch forward (same folded params, channels-last)."""
    B, N, dim = x_nlc.shape
    num_heads = wq.shape[0]
    cg = dim // num_heads
    scale = float(key_dim) ** -0.5
    hp = lax.Precision.HIGHEST
    feat = x_nlc[:, :, 0:cg]
    outs = []
    for i in range(num_heads):
        if i > 0:
            feat = feat + x_nlc[:, :, i * cg:(i + 1) * cg]
        q = jnp.dot(feat, wq[i], precision=hp) + bq[i]
        k = jnp.dot(feat, wk[i], precision=hp) + bk[i]
        v = jnp.dot(feat, wv[i], precision=hp) + bv[i]
        attn = jnp.einsum("bnc,bmc->bnm", q, k, precision=hp) * scale + ab[i]
        attn = jax.nn.softmax(attn, axis=-1)
        out = jnp.einsum("bnm,bmd->bnd", attn, v, precision=hp)
        outs.append(out)
        feat = out
    cat = jax.nn.relu(jnp.concatenate(outs, axis=-1))
    return jnp.dot(cat, wp, precision=hp) + bp


if __name__ == "__main__":
    B, dim, key_dim, num_heads, attn_ratio, resolution = 2, 128, 16, 2, 4, 16
    d = attn_ratio * key_dim                        # 64  value dim per head
    cg = dim // num_heads                           # 64  per-head input channels
    assert cg == d                                  # required by the cascade add
    H = W = resolution
    N = H * W                                       # 256 (lane-dense)
    dout = 2 * key_dim + d                          # 96
    scale = float(key_dim) ** -0.5

    key = jax.random.PRNGKey(0)
    (k_x, k_w, k_g, k_b, k_m, k_v,
     k_pw, k_pg, k_pb, k_pm, k_pv, k_ab) = jax.random.split(key, 12)

    # PyTorch-style NCHW input -> channels-last (B, N, dim) for the kernel.
    x_nchw = jax.random.normal(k_x, (B, dim, H, W), jnp.float32)
    x_nlc = jnp.transpose(x_nchw, (0, 2, 3, 1)).reshape(B, N, dim)

    # Per-head qkv Conv2d_BN (1x1): fold BN into (dout, Cg) weight + (dout,) bias.
    conv_w = 0.05 * jax.random.normal(k_w, (num_heads, dout, cg), jnp.float32)
    gamma = 1.0 + 0.1 * jax.random.normal(k_g, (num_heads, dout), jnp.float32)
    beta = 0.1 * jax.random.normal(k_b, (num_heads, dout), jnp.float32)
    mean = 0.1 * jax.random.normal(k_m, (num_heads, dout), jnp.float32)
    var = 1.0 + 0.1 * jax.random.uniform(k_v, (num_heads, dout), jnp.float32)

    wq_l, wk_l, wv_l, bq_l, bk_l, bv_l = [], [], [], [], [], []     # reference (f32)
    wqkv_l, bqkv_l = [], []                                         # kernel (fused)
    for i in range(num_heads):
        wf, bf = _fold_bn(conv_w[i], gamma[i], beta[i], mean[i], var[i])
        # reference params (scale applied on the logits, as in the PyTorch module)
        wq_l.append(wf[:key_dim].T);              bq_l.append(bf[:key_dim])
        wk_l.append(wf[key_dim:2 * key_dim].T);   bk_l.append(bf[key_dim:2 * key_dim])
        wv_l.append(wf[2 * key_dim:].T);          bv_l.append(bf[2 * key_dim:])
        # kernel params: constant-fold the softmax scale into the q columns and fuse q|k|v
        wf_k = wf.at[:key_dim].multiply(scale)
        bf_k = bf.at[:key_dim].multiply(scale)
        wqkv_l.append(wf_k.T)                     # (cg, dout)
        bqkv_l.append(bf_k[None, :])              # (1, dout)
    wq = jnp.stack(wq_l); wk = jnp.stack(wk_l); wv = jnp.stack(wv_l)
    bq = jnp.stack(bq_l); bk = jnp.stack(bk_l); bv = jnp.stack(bv_l)
    wqkv = jnp.stack(wqkv_l).astype(jnp.bfloat16)      # (nh, cg, dout) bf16
    bqkv = jnp.stack(bqkv_l)                           # (nh, 1, dout)  f32

    # Projection Conv2d_BN (1x1): d*num_heads -> dim (random BN gamma so the check is
    # non-trivial; the module's bn_weight_init=0 is only an initialization value).
    pconv_w = 0.05 * jax.random.normal(k_pw, (dim, d * num_heads), jnp.float32)
    pgamma = 1.0 + 0.1 * jax.random.normal(k_pg, (dim,), jnp.float32)
    pbeta = 0.1 * jax.random.normal(k_pb, (dim,), jnp.float32)
    pmean = 0.1 * jax.random.normal(k_pm, (dim,), jnp.float32)
    pvar = 1.0 + 0.1 * jax.random.uniform(k_pv, (dim,), jnp.float32)
    wpf, bpf = _fold_bn(pconv_w, pgamma, pbeta, pmean, pvar)
    wp_full = wpf.T                                     # (d*nh, dim) f32 for the reference
    bp = bpf[None, :]                                   # (1, dim)
    wp_heads = jnp.stack([wp_full[i * d:(i + 1) * d, :] for i in range(num_heads)]
                         ).astype(jnp.bfloat16)         # (nh, d, dim) bf16

    # Relative-position attention bias, gathered exactly like the PyTorch buffer.
    ab_f32 = _attention_bias_table(num_heads, resolution, k_ab)
    ab_bf16 = ab_f32.astype(jnp.bfloat16)

    out = cascaded_group_attention(x_nlc, wqkv, bqkv, ab_bf16, wp_heads, bp,
                                   key_dim=key_dim)
    out = jax.block_until_ready(out)

    ref = _reference(x_nlc, wq, wk, wv, bq, bk, bv, ab_f32, wp_full, bp,
                     key_dim=key_dim)
    assert out.shape == (B, N, dim)
    max_err = float(jnp.max(jnp.abs(out - ref)))
    # bf16 MXU operands + approx reciprocal vs f32 HIGHEST reference.
    assert jnp.allclose(out, ref, atol=2e-2, rtol=2e-2), \
        f"mismatch vs reference (max abs err {max_err})"

    # Back to PyTorch's NCHW convention for downstream consumers.
    _ = jnp.transpose(out.reshape(B, H, W, dim), (0, 3, 1, 2))
    print("KERNEL_OK")
</pallas_src>

<mosaic_0001>
module attributes {stable_mosaic.version = 11 : i64} {
  func.func @_cga_kernel(%arg0: i32, %arg1: memref<1x256x128xf32, #tpu.memory_space<vmem>>, %arg2: memref<2x64x96xbf16, #tpu.memory_space<vmem>>, %arg3: memref<2x1x96xf32, #tpu.memory_space<vmem>>, %arg4: memref<2x256x256xbf16, #tpu.memory_space<vmem>>, %arg5: memref<2x64x128xbf16, #tpu.memory_space<vmem>>, %arg6: memref<1x128xf32, #tpu.memory_space<vmem>>, %arg7: memref<1x256x128xf32, #tpu.memory_space<vmem>>) attributes {dimension_semantics = [#tpu.dimension_semantics<parallel>], iteration_bounds = array<i64: 2>, scalar_prefetch = 0 : i64, scratch_operands = 0 : i64, tpu.core_type = #tpu.core_type<tc>, window_params = [{transform_indices = @transform_0, window_bounds = array<i64: 1, 256, 128>}, {pipeline_mode = #tpu.pipeline_mode<synchronous>, transform_indices = @transform_1, window_bounds = array<i64: 2, 64, 96>}, {pipeline_mode = #tpu.pipeline_mode<synchronous>, transform_indices = @transform_2, window_bounds = array<i64: 2, 1, 96>}, {pipeline_mode = #tpu.pipeline_mode<synchronous>, transform_indices = @transform_3, window_bounds = array<i64: 2, 256, 256>}, {pipeline_mode = #tpu.pipeline_mode<synchronous>, transform_indices = @transform_4, window_bounds = array<i64: 2, 64, 128>}, {pipeline_mode = #tpu.pipeline_mode<synchronous>, transform_indices = @transform_5, window_bounds = array<i64: 1, 128>}, {transform_indices = @transform_6, window_bounds = array<i64: 1, 256, 128>}]} {
    %c0 = arith.constant 0 : index
    %c0_0 = arith.constant 0 : index
    %0 = vector.load %arg6[%c0, %c0_0] : memref<1x128xf32, #tpu.memory_space<vmem>>, vector<1x128xf32>
    %c0_1 = arith.constant 0 : index
    %c0_2 = arith.constant 0 : index
    %c0_3 = arith.constant 0 : index
    %1 = vector.load %arg1[%c0_1, %c0_2, %c0_3] : memref<1x256x128xf32, #tpu.memory_space<vmem>>, vector<1x256x128xf32>
    %2 = vector.shape_cast %1 : vector<1x256x128xf32> to vector<256x128xf32>
    %3 = vector.extract_strided_slice %2 {offsets = [0, 0], sizes = [256, 64], strides = [1, 1]} : vector<256x128xf32> to vector<256x64xf32>
    %4 = arith.truncf %3 : vector<256x64xf32> to vector<256x64xbf16>
    %c0_4 = arith.constant 0 : index
    %c0_5 = arith.constant 0 : index
    %c0_6 = arith.constant 0 : index
    %5 = vector.load %arg2[%c0_4, %c0_5, %c0_6] : memref<2x64x96xbf16, #tpu.memory_space<vmem>>, vector<1x64x96xbf16>
    %6 = vector.shape_cast %5 : vector<1x64x96xbf16> to vector<64x96xbf16>
    %cst = arith.constant dense<0.000000e+00> : vector<256x96xf32>
    %7 = tpu.matmul %4, %6, %cst {dimension_numbers = #tpu.dot_dimension_numbers<[1], [0], [0], [1], [0, 0, 1, 1], [], []>} : vector<256x64xbf16>, vector<64x96xbf16>, vector<256x96xf32> -> vector<256x96xf32>
    %c0_7 = arith.constant 0 : index
    %c0_8 = arith.constant 0 : index
    %c0_9 = arith.constant 0 : index
    %8 = vector.load %arg3[%c0_7, %c0_8, %c0_9] : memref<2x1x96xf32, #tpu.memory_space<vmem>>, vector<1x1x96xf32>
    %9 = vector.shape_cast %8 : vector<1x1x96xf32> to vector<1x96xf32>
    %10 = vector.broadcast %9 : vector<1x96xf32> to vector<256x96xf32>
    %11 = arith.addf %7, %10 : vector<256x96xf32>
    %12 = vector.extract_strided_slice %11 {offsets = [0, 0], sizes = [256, 16], strides = [1, 1]} : vector<256x96xf32> to vector<256x16xf32>
    %13 = vector.extract_strided_slice %11 {offsets = [0, 16], sizes = [256, 16], strides = [1, 1]} : vector<256x96xf32> to vector<256x16xf32>
    %14 = arith.truncf %13 : vector<256x16xf32> to vector<256x16xbf16>
    %15 = vector.extract_strided_slice %11 {offsets = [0, 32], sizes = [256, 64], strides = [1, 1]} : vector<256x96xf32> to vector<256x64xf32>
    %16 = arith.truncf %15 : vector<256x64xf32> to vector<256x64xbf16>
    %17 = vector.extract_strided_slice %12 {offsets = [0, 0], sizes = [128, 16], strides = [1, 1]} : vector<256x16xf32> to vector<128x16xf32>
    %18 = arith.truncf %17 : vector<128x16xf32> to vector<128x16xbf16>
    %cst_10 = arith.constant dense<0.000000e+00> : vector<128x256xf32>
    %19 = tpu.matmul %18, %14, %cst_10 {dimension_numbers = #tpu.dot_dimension_numbers<[1], [1], [0], [0], [0, 0, 1, 0], [], []>} : vector<128x16xbf16>, vector<256x16xbf16>, vector<128x256xf32> -> vector<128x256xf32>
    %c0_11 = arith.constant 0 : index
    %c0_12 = arith.constant 0 : index
    %c0_13 = arith.constant 0 : index
    %20 = vector.load %arg4[%c0_11, %c0_12, %c0_13] : memref<2x256x256xbf16, #tpu.memory_space<vmem>>, vector<1x128x256xbf16>
    %21 = vector.shape_cast %20 : vector<1x128x256xbf16> to vector<128x256xbf16>
    %22 = arith.extf %21 : vector<128x256xbf16> to vector<128x256xf32>
    %23 = arith.addf %19, %22 : vector<128x256xf32>
    %cst_14 = arith.constant dense<0xFF800000> : vector<128xf32>
    %24 = vector.multi_reduction <maximumf>, %23, %cst_14 [1] : vector<128x256xf32> to vector<128xf32>
    %25 = vector.shape_cast %24 : vector<128xf32> to vector<128x1xf32>
    %26 = vector.broadcast %25 : vector<128x1xf32> to vector<128x256xf32>
    %27 = arith.subf %23, %26 : vector<128x256xf32>
    %28 = math.exp %27 : vector<128x256xf32>
    %cst_15 = arith.constant dense<0.000000e+00> : vector<128xf32>
    %29 = vector.multi_reduction <add>, %28, %cst_15 [1] : vector<128x256xf32> to vector<128xf32>
    %30 = vector.shape_cast %29 : vector<128xf32> to vector<128x1xf32>
    %31 = arith.truncf %28 : vector<128x256xf32> to vector<128x256xbf16>
    %cst_16 = arith.constant dense<0.000000e+00> : vector<128x64xf32>
    %32 = tpu.matmul %31, %16, %cst_16 {dimension_numbers = #tpu.dot_dimension_numbers<[1], [0], [0], [1], [0, 0, 1, 1], [], []>} : vector<128x256xbf16>, vector<256x64xbf16>, vector<128x64xf32> -> vector<128x64xf32>
    %33 = tpu.reciprocal %30 {approx = true} : vector<128x1xf32> -> vector<128x1xf32>
    %34 = vector.broadcast %33 : vector<128x1xf32> to vector<128x64xf32>
    %35 = arith.mulf %32, %34 : vector<128x64xf32>
    %cst_17 = arith.constant 0.000000e+00 : f32
    %36 = vector.broadcast %cst_17 : f32 to vector<128x64xf32>
    %37 = arith.maximumf %35, %36 : vector<128x64xf32>
    %38 = arith.truncf %37 : vector<128x64xf32> to vector<128x64xbf16>
    %c0_18 = arith.constant 0 : index
    %c0_19 = arith.constant 0 : index
    %c0_20 = arith.constant 0 : index
    %39 = vector.load %arg5[%c0_18, %c0_19, %c0_20] : memref<2x64x128xbf16, #tpu.memory_space<vmem>>, vector<1x64x128xbf16>
    %40 = vector.shape_cast %39 : vector<1x64x128xbf16> to vector<64x128xbf16>
    %cst_21 = arith.constant dense<0.000000e+00> : vector<128x128xf32>
    %41 = tpu.matmul %38, %40, %cst_21 {dimension_numbers = #tpu.dot_dimension_numbers<[1], [0], [0], [1], [0, 0, 1, 1], [], []>} : vector<128x64xbf16>, vector<64x128xbf16>, vector<128x128xf32> -> vector<128x128xf32>
    %42 = vector.broadcast %0 : vector<1x128xf32> to vector<128x128xf32>
    %43 = arith.addf %41, %42 : vector<128x128xf32>
    %c0_22 = arith.constant 0 : index
    %c0_23 = arith.constant 0 : index
    %c0_24 = arith.constant 0 : index
    %44 = vector.load %arg7[%c0_22, %c0_23, %c0_24] : memref<1x256x128xf32, #tpu.memory_space<vmem>>, vector<1x128x128xf32>
    %45 = vector.shape_cast %44 : vector<1x128x128xf32> to vector<128x128xf32>
    %46 = vector.shape_cast %43 : vector<128x128xf32> to vector<1x128x128xf32>
    tpu.vector_store %arg7[%c0_22, %c0_23, %c0_24], %46 {strides = array<i32>} : memref<1x256x128xf32, #tpu.memory_space<vmem>>, vector<1x128x128xf32>,
    %47 = vector.extract_strided_slice %12 {offsets = [128, 0], sizes = [128, 16], strides = [1, 1]} : vector<256x16xf32> to vector<128x16xf32>
    %48 = arith.truncf %47 : vector<128x16xf32> to vector<128x16xbf16>
    %cst_25 = arith.constant dense<0.000000e+00> : vector<128x256xf32>
    %49 = tpu.matmul %48, %14, %cst_25 {dimension_numbers = #tpu.dot_dimension_numbers<[1], [1], [0], [0], [0, 0, 1, 0], [], []>} : vector<128x16xbf16>, vector<256x16xbf16>, vector<128x256xf32> -> vector<128x256xf32>
    %c0_26 = arith.constant 0 : index
    %c128 = arith.constant 128 : index
    %c0_27 = arith.constant 0 : index
    %50 = vector.load %arg4[%c0_26, %c128, %c0_27] : memref<2x256x256xbf16, #tpu.memory_space<vmem>>, vector<1x128x256xbf16>
    %51 = vector.shape_cast %50 : vector<1x128x256xbf16> to vector<128x256xbf16>
    %52 = arith.extf %51 : vector<128x256xbf16> to vector<128x256xf32>
    %53 = arith.addf %49, %52 : vector<128x256xf32>
    %cst_28 = arith.constant dense<0xFF800000> : vector<128xf32>
    %54 = vector.multi_reduction <maximumf>, %53, %cst_28 [1] : vector<128x256xf32> to vector<128xf32>
    %55 = vector.shape_cast %54 : vector<128xf32> to vector<128x1xf32>
    %56 = vector.broadcast %55 : vector<128x1xf32> to vector<128x256xf32>
    %57 = arith.subf %53, %56 : vector<128x256xf32>
    %58 = math.exp %57 : vector<128x256xf32>
    %cst_29 = arith.constant dense<0.000000e+00> : vector<128xf32>
    %59 = vector.multi_reduction <add>, %58, %cst_29 [1] : vector<128x256xf32> to vector<128xf32>
    %60 = vector.shape_cast %59 : vector<128xf32> to vector<128x1xf32>
    %61 = arith.truncf %58 : vector<128x256xf32> to vector<128x256xbf16>
    %cst_30 = arith.constant dense<0.000000e+00> : vector<128x64xf32>
    %62 = tpu.matmul %61, %16, %cst_30 {dimension_numbers = #tpu.dot_dimension_numbers<[1], [0], [0], [1], [0, 0, 1, 1], [], []>} : vector<128x256xbf16>, vector<256x64xbf16>, vector<128x64xf32> -> vector<128x64xf32>
    %63 = tpu.reciprocal %60 {approx = true} : vector<128x1xf32> -> vector<128x1xf32>
    %64 = vector.broadcast %63 : vector<128x1xf32> to vector<128x64xf32>
    %65 = arith.mulf %62, %64 : vector<128x64xf32>
    %cst_31 = arith.constant 0.000000e+00 : f32
    %66 = vector.broadcast %cst_31 : f32 to vector<128x64xf32>
    %67 = arith.maximumf %65, %66 : vector<128x64xf32>
    %68 = arith.truncf %67 : vector<128x64xf32> to vector<128x64xbf16>
    %c0_32 = arith.constant 0 : index
    %c0_33 = arith.constant 0 : index
    %c0_34 = arith.constant 0 : index
    %69 = vector.load %arg5[%c0_32, %c0_33, %c0_34] : memref<2x64x128xbf16, #tpu.memory_space<vmem>>, vector<1x64x128xbf16>
    %70 = vector.shape_cast %69 : vector<1x64x128xbf16> to vector<64x128xbf16>
    %cst_35 = arith.constant dense<0.000000e+00> : vector<128x128xf32>
    %71 = tpu.matmul %68, %70, %cst_35 {dimension_numbers = #tpu.dot_dimension_numbers<[1], [0], [0], [1], [0, 0, 1, 1], [], []>} : vector<128x64xbf16>, vector<64x128xbf16>, vector<128x128xf32> -> vector<128x128xf32>
    %72 = vector.broadcast %0 : vector<1x128xf32> to vector<128x128xf32>
    %73 = arith.addf %71, %72 : vector<128x128xf32>
    %c0_36 = arith.constant 0 : index
    %c128_37 = arith.constant 128 : index
    %c0_38 = arith.constant 0 : index
    %74 = vector.load %arg7[%c0_36, %c128_37, %c0_38] : memref<1x256x128xf32, #tpu.memory_space<vmem>>, vector<1x128x128xf32>
    %75 = vector.shape_cast %74 : vector<1x128x128xf32> to vector<128x128xf32>
    %76 = vector.shape_cast %73 : vector<128x128xf32> to vector<1x128x128xf32>
    tpu.vector_store %arg7[%c0_36, %c128_37, %c0_38], %76 {strides = array<i32>} : memref<1x256x128xf32, #tpu.memory_space<vmem>>, vector<1x128x128xf32>,
    %77 = tpu.concatenate %35, %65 in 0 : vector<128x64xf32>, vector<128x64xf32> -> vector<256x64xf32>
    %78 = vector.extract_strided_slice %2 {offsets = [0, 64], sizes = [256, 64], strides = [1, 1]} : vector<256x128xf32> to vector<256x64xf32>
    %79 = arith.addf %77, %78 : vector<256x64xf32>
    %80 = arith.truncf %79 : vector<256x64xf32> to vector<256x64xbf16>
    %c1 = arith.constant 1 : index
    %c0_39 = arith.constant 0 : index
    %c0_40 = arith.constant 0 : index
    %81 = vector.load %arg2[%c1, %c0_39, %c0_40] : memref<2x64x96xbf16, #tpu.memory_space<vmem>>, vector<1x64x96xbf16>
    %82 = vector.shape_cast %81 : vector<1x64x96xbf16> to vector<64x96xbf16>
    %cst_41 = arith.constant dense<0.000000e+00> : vector<256x96xf32>
    %83 = tpu.matmul %80, %82, %cst_41 {dimension_numbers = #tpu.dot_dimension_numbers<[1], [0], [0], [1], [0, 0, 1, 1], [], []>} : vector<256x64xbf16>, vector<64x96xbf16>, vector<256x96xf32> -> vector<256x96xf32>
    %c1_42 = arith.constant 1 : index
    %c0_43 = arith.constant 0 : index
    %c0_44 = arith.constant 0 : index
    %84 = vector.load %arg3[%c1_42, %c0_43, %c0_44] : memref<2x1x96xf32, #tpu.memory_space<vmem>>, vector<1x1x96xf32>
    %85 = vector.shape_cast %84 : vector<1x1x96xf32> to vector<1x96xf32>
    %86 = vector.broadcast %85 : vector<1x96xf32> to vector<256x96xf32>
    %87 = arith.addf %83, %86 : vector<256x96xf32>
    %88 = vector.extract_strided_slice %87 {offsets = [0, 0], sizes = [256, 16], strides = [1, 1]} : vector<256x96xf32> to vector<256x16xf32>
    %89 = vector.extract_strided_slice %87 {offsets = [0, 16], sizes = [256, 16], strides = [1, 1]} : vector<256x96xf32> to vector<256x16xf32>
    %90 = arith.truncf %89 : vector<256x16xf32> to vector<256x16xbf16>
    %91 = vector.extract_strided_slice %87 {offsets = [0, 32], sizes = [256, 64], strides = [1, 1]} : vector<256x96xf32> to vector<256x64xf32>
    %92 = arith.truncf %91 : vector<256x64xf32> to vector<256x64xbf16>
    %93 = vector.extract_strided_slice %88 {offsets = [0, 0], sizes = [128, 16], strides = [1, 1]} : vector<256x16xf32> to vector<128x16xf32>
    %94 = arith.truncf %93 : vector<128x16xf32> to vector<128x16xbf16>
    %cst_45 = arith.constant dense<0.000000e+00> : vector<128x256xf32>
    %95 = tpu.matmul %94, %90, %cst_45 {dimension_numbers = #tpu.dot_dimension_numbers<[1], [1], [0], [0], [0, 0, 1, 0], [], []>} : vector<128x16xbf16>, vector<256x16xbf16>, vector<128x256xf32> -> vector<128x256xf32>
    %c1_46 = arith.constant 1 : index
    %c0_47 = arith.constant 0 : index
    %c0_48 = arith.constant 0 : index
    %96 = vector.load %arg4[%c1_46, %c0_47, %c0_48] : memref<2x256x256xbf16, #tpu.memory_space<vmem>>, vector<1x128x256xbf16>
    %97 = vector.shape_cast %96 : vector<1x128x256xbf16> to vector<128x256xbf16>
    %98 = arith.extf %97 : vector<128x256xbf16> to vector<128x256xf32>
    %99 = arith.addf %95, %98 : vector<128x256xf32>
    %cst_49 = arith.constant dense<0xFF800000> : vector<128xf32>
    %100 = vector.multi_reduction <maximumf>, %99, %cst_49 [1] : vector<128x256xf32> to vector<128xf32>
    %101 = vector.shape_cast %100 : vector<128xf32> to vector<128x1xf32>
    %102 = vector.broadcast %101 : vector<128x1xf32> to vector<128x256xf32>
    %103 = arith.subf %99, %102 : vector<128x256xf32>
    %104 = math.exp %103 : vector<128x256xf32>
    %cst_50 = arith.constant dense<0.000000e+00> : vector<128xf32>
    %105 = vector.multi_reduction <add>, %104, %cst_50 [1] : vector<128x256xf32> to vector<128xf32>
    %106 = vector.shape_cast %105 : vector<128xf32> to vector<128x1xf32>
    %107 = arith.truncf %104 : vector<128x256xf32> to vector<128x256xbf16>
    %cst_51 = arith.constant dense<0.000000e+00> : vector<128x64xf32>
    %108 = tpu.matmul %107, %92, %cst_51 {dimension_numbers = #tpu.dot_dimension_numbers<[1], [0], [0], [1], [0, 0, 1, 1], [], []>} : vector<128x256xbf16>, vector<256x64xbf16>, vector<128x64xf32> -> vector<128x64xf32>
    %109 = tpu.reciprocal %106 {approx = true} : vector<128x1xf32> -> vector<128x1xf32>
    %110 = vector.broadcast %109 : vector<128x1xf32> to vector<128x64xf32>
    %111 = arith.mulf %108, %110 : vector<128x64xf32>
    %cst_52 = arith.constant 0.000000e+00 : f32
    %112 = vector.broadcast %cst_52 : f32 to vector<128x64xf32>
    %113 = arith.maximumf %111, %112 : vector<128x64xf32>
    %114 = arith.truncf %113 : vector<128x64xf32> to vector<128x64xbf16>
    %c1_53 = arith.constant 1 : index
    %c0_54 = arith.constant 0 : index
    %c0_55 = arith.constant 0 : index
    %115 = vector.load %arg5[%c1_53, %c0_54, %c0_55] : memref<2x64x128xbf16, #tpu.memory_space<vmem>>, vector<1x64x128xbf16>
    %116 = vector.shape_cast %115 : vector<1x64x128xbf16> to vector<64x128xbf16>
    %cst_56 = arith.constant dense<0.000000e+00> : vector<128x128xf32>
    %117 = tpu.matmul %114, %116, %cst_56 {dimension_numbers = #tpu.dot_dimension_numbers<[1], [0], [0], [1], [0, 0, 1, 1], [], []>} : vector<128x64xbf16>, vector<64x128xbf16>, vector<128x128xf32> -> vector<128x128xf32>
    %c0_57 = arith.constant 0 : index
    %c0_58 = arith.constant 0 : index
    %c0_59 = arith.constant 0 : index
    %118 = vector.load %arg7[%c0_57, %c0_58, %c0_59] : memref<1x256x128xf32, #tpu.memory_space<vmem>>, vector<1x128x128xf32>
    %119 = vector.shape_cast %118 : vector<1x128x128xf32> to vector<128x128xf32>
    %120 = arith.addf %119, %117 : vector<128x128xf32>
    %c0_60 = arith.constant 0 : index
    %c0_61 = arith.constant 0 : index
    %c0_62 = arith.constant 0 : index
    %121 = vector.load %arg7[%c0_60, %c0_61, %c0_62] : memref<1x256x128xf32, #tpu.memory_space<vmem>>, vector<1x128x128xf32>
    %122 = vector.shape_cast %121 : vector<1x128x128xf32> to vector<128x128xf32>
    %123 = vector.shape_cast %120 : vector<128x128xf32> to vector<1x128x128xf32>
    tpu.vector_store %arg7[%c0_60, %c0_61, %c0_62], %123 {strides = array<i32>} : memref<1x256x128xf32, #tpu.memory_space<vmem>>, vector<1x128x128xf32>,
    %124 = vector.extract_strided_slice %88 {offsets = [128, 0], sizes = [128, 16], strides = [1, 1]} : vector<256x16xf32> to vector<128x16xf32>
    %125 = arith.truncf %124 : vector<128x16xf32> to vector<128x16xbf16>
    %cst_63 = arith.constant dense<0.000000e+00> : vector<128x256xf32>
    %126 = tpu.matmul %125, %90, %cst_63 {dimension_numbers = #tpu.dot_dimension_numbers<[1], [1], [0], [0], [0, 0, 1, 0], [], []>} : vector<128x16xbf16>, vector<256x16xbf16>, vector<128x256xf32> -> vector<128x256xf32>
    %c1_64 = arith.constant 1 : index
    %c128_65 = arith.constant 128 : index
    %c0_66 = arith.constant 0 : index
    %127 = vector.load %arg4[%c1_64, %c128_65, %c0_66] : memref<2x256x256xbf16, #tpu.memory_space<vmem>>, vector<1x128x256xbf16>
    %128 = vector.shape_cast %127 : vector<1x128x256xbf16> to vector<128x256xbf16>
    %129 = arith.extf %128 : vector<128x256xbf16> to vector<128x256xf32>
    %130 = arith.addf %126, %129 : vector<128x256xf32>
    %cst_67 = arith.constant dense<0xFF800000> : vector<128xf32>
    %131 = vector.multi_reduction <maximumf>, %130, %cst_67 [1] : vector<128x256xf32> to vector<128xf32>
    %132 = vector.shape_cast %131 : vector<128xf32> to vector<128x1xf32>
    %133 = vector.broadcast %132 : vector<128x1xf32> to vector<128x256xf32>
    %134 = arith.subf %130, %133 : vector<128x256xf32>
    %135 = math.exp %134 : vector<128x256xf32>
    %cst_68 = arith.constant dense<0.000000e+00> : vector<128xf32>
    %136 = vector.multi_reduction <add>, %135, %cst_68 [1] : vector<128x256xf32> to vector<128xf32>
    %137 = vector.shape_cast %136 : vector<128xf32> to vector<128x1xf32>
    %138 = arith.truncf %135 : vector<128x256xf32> to vector<128x256xbf16>
    %cst_69 = arith.constant dense<0.000000e+00> : vector<128x64xf32>
    %139 = tpu.matmul %138, %92, %cst_69 {dimension_numbers = #tpu.dot_dimension_numbers<[1], [0], [0], [1], [0, 0, 1, 1], [], []>} : vector<128x256xbf16>, vector<256x64xbf16>, vector<128x64xf32> -> vector<128x64xf32>
    %140 = tpu.reciprocal %137 {approx = true} : vector<128x1xf32> -> vector<128x1xf32>
    %141 = vector.broadcast %140 : vector<128x1xf32> to vector<128x64xf32>
    %142 = arith.mulf %139, %141 : vector<128x64xf32>
    %cst_70 = arith.constant 0.000000e+00 : f32
    %143 = vector.broadcast %cst_70 : f32 to vector<128x64xf32>
    %144 = arith.maximumf %142, %143 : vector<128x64xf32>
    %145 = arith.truncf %144 : vector<128x64xf32> to vector<128x64xbf16>
    %c1_71 = arith.constant 1 : index
    %c0_72 = arith.constant 0 : index
    %c0_73 = arith.constant 0 : index
    %146 = vector.load %arg5[%c1_71, %c0_72, %c0_73] : memref<2x64x128xbf16, #tpu.memory_space<vmem>>, vector<1x64x128xbf16>
    %147 = vector.shape_cast %146 : vector<1x64x128xbf16> to vector<64x128xbf16>
    %cst_74 = arith.constant dense<0.000000e+00> : vector<128x128xf32>
    %148 = tpu.matmul %145, %147, %cst_74 {dimension_numbers = #tpu.dot_dimension_numbers<[1], [0], [0], [1], [0, 0, 1, 1], [], []>} : vector<128x64xbf16>, vector<64x128xbf16>, vector<128x128xf32> -> vector<128x128xf32>
    %c0_75 = arith.constant 0 : index
    %c128_76 = arith.constant 128 : index
    %c0_77 = arith.constant 0 : index
    %149 = vector.load %arg7[%c0_75, %c128_76, %c0_77] : memref<1x256x128xf32, #tpu.memory_space<vmem>>, vector<1x128x128xf32>
    %150 = vector.shape_cast %149 : vector<1x128x128xf32> to vector<128x128xf32>
    %151 = arith.addf %150, %148 : vector<128x128xf32>
    %c0_78 = arith.constant 0 : index
    %c128_79 = arith.constant 128 : index
    %c0_80 = arith.constant 0 : index
    %152 = vector.load %arg7[%c0_78, %c128_79, %c0_80] : memref<1x256x128xf32, #tpu.memory_space<vmem>>, vector<1x128x128xf32>
    %153 = vector.shape_cast %152 : vector<1x128x128xf32> to vector<128x128xf32>
    %154 = vector.shape_cast %151 : vector<128x128xf32> to vector<1x128x128xf32>
    tpu.vector_store %arg7[%c0_78, %c128_79, %c0_80], %154 {strides = array<i32>} : memref<1x256x128xf32, #tpu.memory_space<vmem>>, vector<1x128x128xf32>,
    return
  }
  func.func @transform_0(%arg0: i32) -> (i32, i32, i32) {
    %c0_i32 = arith.constant 0 : i32
    %c0_i32_0 = arith.constant 0 : i32
    %c0_i32_1 = arith.constant 0 : i32
    return %arg0, %c0_i32, %c0_i32_0 : i32, i32, i32
  }
  func.func @transform_1(%arg0: i32) -> (i32, i32, i32) {
    %c0_i32 = arith.constant 0 : i32
    %c0_i32_0 = arith.constant 0 : i32
    %c0_i32_1 = arith.constant 0 : i32
    %c0_i32_2 = arith.constant 0 : i32
    return %c0_i32, %c0_i32_0, %c0_i32_1 : i32, i32, i32
  }
  func.func @transform_2(%arg0: i32) -> (i32, i32, i32) {
    %c0_i32 = arith.constant 0 : i32
    %c0_i32_0 = arith.constant 0 : i32
    %c0_i32_1 = arith.constant 0 : i32
    %c0_i32_2 = arith.constant 0 : i32
    return %c0_i32, %c0_i32_0, %c0_i32_1 : i32, i32, i32
  }
  func.func @transform_3(%arg0: i32) -> (i32, i32, i32) {
    %c0_i32 = arith.constant 0 : i32
    %c0_i32_0 = arith.constant 0 : i32
    %c0_i32_1 = arith.constant 0 : i32
    %c0_i32_2 = arith.constant 0 : i32
    return %c0_i32, %c0_i32_0, %c0_i32_1 : i32, i32, i32
  }
  func.func @transform_4(%arg0: i32) -> (i32, i32, i32) {
    %c0_i32 = arith.constant 0 : i32
    %c0_i32_0 = arith.constant 0 : i32
    %c0_i32_1 = arith.constant 0 : i32
    %c0_i32_2 = arith.constant 0 : i32
    return %c0_i32, %c0_i32_0, %c0_i32_1 : i32, i32, i32
  }
  func.func @transform_5(%arg0: i32) -> (i32, i32) {
    %c0_i32 = arith.constant 0 : i32
    %c0_i32_0 = arith.constant 0 : i32
    %c0_i32_1 = arith.constant 0 : i32
    return %c0_i32, %c0_i32_0 : i32, i32
  }
  func.func @transform_6(%arg0: i32) -> (i32, i32, i32) {
    %c0_i32 = arith.constant 0 : i32
    %c0_i32_0 = arith.constant 0 : i32
    %c0_i32_1 = arith.constant 0 : i32
    return %arg0, %c0_i32, %c0_i32_0 : i32, i32, i32
  }
}

</mosaic_0001>

<llo_original>
// kernel: tpu_custom_call.1
$region0: #{tpu_custom_call.1}
  #allocation0 [shape = 'u32[]', space=smem, size = 0x4, offset = 0x4, fixed_abs, tag = 'smem constant byte address 0x4 - core index']
  #allocation1 [shape = 'u32[144,128]{1,0:T(1,128)}', space=vmem, size = 0x12000, scoped, tag = 'internal scratch']
  %s0 = inlined_call_operand.hbm [shape: f32[2,256,128], index: 0, kind: input, shape index: {}]
  %s1 = inlined_call_operand.hbm [shape: bf16[2,64,96], index: 1, kind: input, shape index: {}]
  %s2 = inlined_call_operand.vmem [shape: f32[2,1,96], index: 2, kind: input, shape index: {}]
  %s3 = inlined_call_operand.hbm [shape: bf16[2,256,256], index: 3, kind: input, shape index: {}]
  %s4 = inlined_call_operand.hbm [shape: bf16[2,64,128], index: 4, kind: input, shape index: {}]
  %s5 = inlined_call_operand.vmem [shape: f32[1,128], index: 5, kind: input, shape index: {}]
  %s6 = inlined_call_operand.hbm [shape: f32[2,256,128], index: 6, kind: output, shape index: {}]
  %s7 = sld [smem:[#allocation0]]
  $region73: #{tpu_custom_call.1} parent=0
    _
  %s9 = ssub.s32 1, %s7
  %s10 = scalar_select 0, %s9, %s7
  $region1: #{tpu_custom_call.1} parent=0
    #allocation2 [shape = 'u8[262144]{0}', space=vmem, size = 0x40000, scoped, tag = 'input window, operand 0']
    #allocation3 [shape = 's32[2]{0}', space=sflag, size = 0x8, scoped, tag = 'scoped memory for tpu_custom_call.1']
    #allocation4 [shape = 's32[2]{0}', space=sflag, size = 0x8, scoped, tag = 'scoped memory for tpu_custom_call.1']
    #allocation5 [shape = 'u8[32768]{0}', space=vmem, size = 0x8000, scoped, tag = 'input window, operand 1, single buffered']
    #allocation6 [shape = 's32[1]{0}', space=sflag, size = 0x4, scoped, tag = 'scoped memory for tpu_custom_call.1']
    #allocation7 [shape = 'u8[262144]{0}', space=vmem, size = 0x40000, scoped, tag = 'input window, operand 3, single buffered']
    #allocation8 [shape = 'u8[32768]{0}', space=vmem, size = 0x8000, scoped, tag = 'input window, operand 4, single buffered']
    #allocation9 [shape = 's32[1]{0}', space=sflag, size = 0x4, scoped, tag = 'scoped memory for tpu_custom_call.1']
    #allocation10 [shape = 'u8[262144]{0}', space=vmem, size = 0x40000, scoped, tag = 'output window, operand 0']
    %11 = vsyncpa [#allocation3], 0
    %s12 = scalar_lea.sflag [#allocation3], 1
    %13 = vsyncpa %s12, 0
    %14 = vsyncpa [#allocation6], 0
    %15 = vsyncpa [#allocation9], 0
    %16 = vsyncpa [#allocation4], 0
    %s17 = scalar_lea.sflag [#allocation4], 1
    %18 = vsyncpa %s17, 0
    loop: start=0, step=1, limit=4
    $region2: #{tpu_custom_call.1} parent=1 // loop_pre_header
      _
    $region3: #{tpu_custom_call.1} parent=1 // loop_header
      %s20 = sphi 0, %s24
      %p21 = scmp.ge.s32.totalorder %s20, 4
      %s30 = sphi 0, %s32
      %s33 = sphi 0, %s30
      %s34 = sphi 0, %s33
      %s50 = sphi 0, %s34
      %s54 = sphi 0, %s54
      %s56 = sphi 0, %s54
      %s57 = sphi 0, %s56
      %s71 = sphi 0, %s57
      %s75 = sphi 0, %s75
      %s77 = sphi 0, %s75
      %s78 = sphi 0, %s77
      %s92 = sphi 0, %s78
      %s96 = sphi 0, %s96
      %s98 = sphi 0, %s96
      %s99 = sphi 0, %s98
      %s113 = sphi 0, %s99
      %s117 = sphi 0, %s117
      %s119 = sphi 0, %s117
      %s120 = sphi 0, %s119
      %s134 = sphi 0, %s120
      %s138 = sphi 0, %s138
      %s140 = sphi 0, %s138
      %s141 = sphi 0, %s140
      %s155 = sphi 0, %s141
      %s161 = sphi 0, %s163
      %s164 = sphi 0, %s161
      %s165 = sphi 0, %s164
      %s181 = sphi 0, %s165
    $region4: #{tpu_custom_call.1} parent=1 // loop_header_branch
      %23 = sbr.rel (%p21) target = $region8
    $region5: #{tpu_custom_call.1} parent=1 // loop_body
      %s25 = ssub.s32 %s20, 1
      %s26 = ssub.s32 %s20, 2
      %s27 = sadd.s32 %s20, 1
      %s28 = ssub.s32 %s20, %s27
      %p29 = scmp.eq.s32.totalorder %s28, 0
      %s31 = sadd.s32 %s30, 1
      %s32 = scalar_select %p29, %s30, %s31
      %p35 = pneg %p29
      %p36 = scmp.eq.s32.totalorder %s20, 1
      %p37 = por %p35, %p36
      %p38 = scmp.ne.s32.totalorder %s30, %s33
      %p39 = scmp.eq.s32.totalorder %s20, 0
      %p40 = por %p38, %p39
      %p41 = scmp.ne.s32.totalorder %s30, %s33
      %p42 = scmp.eq.s32.totalorder %s25, 1
      %p43 = por %p41, %p42
      %p44 = scmp.ne.s32.totalorder %s33, %s34
      %p45 = scmp.eq.s32.totalorder %s25, 0
      %p46 = por %p44, %p45
      %p47 = scmp.ne.s32.totalorder %s33, %s34
      %p48 = scmp.eq.s32.totalorder %s26, 1
      %p49 = por %p47, %p48
      %p51 = scmp.ne.s32.totalorder %s34, %s50
      %p52 = scmp.eq.s32.totalorder %s26, 0
      %p53 = por %p51, %p52
      %s55 = sadd.s32 %s54, 1
      %p58 = scmp.eq.s32.totalorder %s20, 1
      %p59 = scmp.ne.s32.totalorder %s54, %s56
      %p60 = scmp.eq.s32.totalorder %s20, 0
      %p61 = por %p59, %p60
      %p62 = scmp.ne.s32.totalorder %s54, %s56
      %p63 = scmp.eq.s32.totalorder %s25, 1
      %p64 = por %p62, %p63
      %p65 = scmp.ne.s32.totalorder %s56, %s57
      %p66 = scmp.eq.s32.totalorder %s25, 0
      %p67 = por %p65, %p66
      %p68 = scmp.ne.s32.totalorder %s56, %s57
      %p69 = scmp.eq.s32.totalorder %s26, 1
      %p70 = por %p68, %p69
      %p72 = scmp.ne.s32.totalorder %s57, %s71
      %p73 = scmp.eq.s32.totalorder %s26, 0
      %p74 = por %p72, %p73
      %s76 = sadd.s32 %s75, 1
      %p79 = scmp.eq.s32.totalorder %s20, 1
      %p80 = scmp.ne.s32.totalorder %s75, %s77
      %p81 = scmp.eq.s32.totalorder %s20, 0
      %p82 = por %p80, %p81
      %p83 = scmp.ne.s32.totalorder %s75, %s77
      %p84 = scmp.eq.s32.totalorder %s25, 1
      %p85 = por %p83, %p84
      %p86 = scmp.ne.s32.totalorder %s77, %s78
      %p87 = scmp.eq.s32.totalorder %s25, 0
      %p88 = por %p86, %p87
      %p89 = scmp.ne.s32.totalorder %s77, %s78
      %p90 = scmp.eq.s32.totalorder %s26, 1
      %p91 = por %p89, %p90
      %p93 = scmp.ne.s32.totalorder %s78, %s92
      %p94 = scmp.eq.s32.totalorder %s26, 0
      %p95 = por %p93, %p94
      %s97 = sadd.s32 %s96, 1
      %p100 = scmp.eq.s32.totalorder %s20, 1
      %p101 = scmp.ne.s32.totalorder %s96, %s98
      %p102 = scmp.eq.s32.totalorder %s20, 0
      %p103 = por %p101, %p102
      %p104 = scmp.ne.s32.totalorder %s96, %s98
      %p105 = scmp.eq.s32.totalorder %s25, 1
      %p106 = por %p104, %p105
      %p107 = scmp.ne.s32.totalorder %s98, %s99
      %p108 = scmp.eq.s32.totalorder %s25, 0
      %p109 = por %p107, %p108
      %p110 = scmp.ne.s32.totalorder %s98, %s99
      %p111 = scmp.eq.s32.totalorder %s26, 1
      %p112 = por %p110, %p111
      %p114 = scmp.ne.s32.totalorder %s99, %s113
      %p115 = scmp.eq.s32.totalorder %s26, 0
      %p116 = por %p114, %p115
      %s118 = sadd.s32 %s117, 1
      %p121 = scmp.eq.s32.totalorder %s20, 1
      %p122 = scmp.ne.s32.totalorder %s117, %s119
      %p123 = scmp.eq.s32.totalorder %s20, 0
      %p124 = por %p122, %p123
      %p125 = scmp.ne.s32.totalorder %s117, %s119
      %p126 = scmp.eq.s32.totalorder %s25, 1
      %p127 = por %p125, %p126
      %p128 = scmp.ne.s32.totalorder %s119, %s120
      %p129 = scmp.eq.s32.totalorder %s25, 0
      %p130 = por %p128, %p129
      %p131 = scmp.ne.s32.totalorder %s119, %s120
      %p132 = scmp.eq.s32.totalorder %s26, 1
      %p133 = por %p131, %p132
      %p135 = scmp.ne.s32.totalorder %s120, %s134
      %p136 = scmp.eq.s32.totalorder %s26, 0
      %p137 = por %p135, %p136
      %s139 = sadd.s32 %s138, 1
      %p142 = scmp.eq.s32.totalorder %s20, 1
      %p143 = scmp.ne.s32.totalorder %s138, %s140
      %p144 = scmp.eq.s32.totalorder %s20, 0
      %p145 = por %p143, %p144
      %p146 = scmp.ne.s32.totalorder %s138, %s140
      %p147 = scmp.eq.s32.totalorder %s25, 1
      %p148 = por %p146, %p147
      %p149 = scmp.ne.s32.totalorder %s140, %s141
      %p150 = scmp.eq.s32.totalorder %s25, 0
      %p151 = por %p149, %p150
      %p152 = scmp.ne.s32.totalorder %s140, %s141
      %p153 = scmp.eq.s32.totalorder %s26, 1
      %p154 = por %p152, %p153
      %p156 = scmp.ne.s32.totalorder %s141, %s155
      %p157 = scmp.eq.s32.totalorder %s26, 0
      %p158 = por %p156, %p157
      %s159 = ssub.s32 %s20, %s27
      %p160 = scmp.eq.s32.totalorder %s159, 0
      %s162 = sadd.s32 %s161, 1
      %s163 = scalar_select %p160, %s161, %s162
      %p166 = pneg %p160
      %p167 = scmp.eq.s32.totalorder %s20, 1
      %p168 = por %p166, %p167
      %p169 = scmp.ne.s32.totalorder %s161, %s164
      %p170 = scmp.eq.s32.totalorder %s20, 0
      %p171 = por %p169, %p170
      %p172 = scmp.ne.s32.totalorder %s161, %s164
      %p173 = scmp.eq.s32.totalorder %s25, 1
      %p174 = por %p172, %p173
      %p175 = scmp.ne.s32.totalorder %s164, %s165
      %p176 = scmp.eq.s32.totalorder %s25, 0
      %p177 = por %p175, %p176
      %p178 = scmp.ne.s32.totalorder %s164, %s165
      %p179 = scmp.eq.s32.totalorder %s26, 1
      %p180 = por %p178, %p179
      %p182 = scmp.ne.s32.totalorder %s165, %s181
      %p183 = scmp.eq.s32.totalorder %s26, 0
      %p184 = por %p182, %p183
      %p185 = scmp.le.s32.totalorder 1, %s20
      %p186 = scmp.lt.s32.totalorder %s20, 3
      %p187 = pnand %p185, %p186
      %p188 = pneg %p187
      // Predicated region
      $region9: #{tpu_custom_call.1} parent=5 // pred_check
        _
      $region10: #{tpu_custom_call.1} parent=5 // pred_check_branch
        %190 = sbr.rel (%p187) target = $region12
      $region11: #{tpu_custom_call.1} parent=5 // pred_region
        %s191 = ssub.s32 %s20, 1
        // Predicated region
        $region13: #{tpu_custom_call.1} parent=11 // pred_check
          %p192 = pneg %p67
        $region14: #{tpu_custom_call.1} parent=11 // pred_check_branch
          %194 = sbr.rel (%p192) target = $region16
        $region15: #{tpu_custom_call.1} parent=11 // pred_region
          %s196 = ssub.s32 1024, 1024
          %197 = vsyncadd [#allocation6], %s196
          %s198 = sshll.u32 [#allocation5], 4
          %s199 = int_to_ptr.vmem [resolvable:$true] %s198
          %204 = dma.hbm_to_vmem [thread:$0]  %s1, 1024, %s199, [#allocation6], 64, 64, 4
        $region16: #{tpu_custom_call.1} parent=11 // pred_fallthru
          _
        // Predicated region
        $region17: #{tpu_custom_call.1} parent=11 // pred_check
          %p205 = pneg %p88
        $region18: #{tpu_custom_call.1} parent=11 // pred_check_branch
          %207 = sbr.rel (%p205) target = $region20
        $region19: #{tpu_custom_call.1} parent=11 // pred_region
          _
        $region20: #{tpu_custom_call.1} parent=11 // pred_fallthru
          _
        // Predicated region
        $region21: #{tpu_custom_call.1} parent=11 // pred_check
          %p208 = pneg %p109
        $region22: #{tpu_custom_call.1} parent=11 // pred_check_branch
          %210 = sbr.rel (%p208) target = $region24
        $region23: #{tpu_custom_call.1} parent=11 // pred_region
          %s212 = ssub.s32 8192, 8192
          %213 = vsyncadd [#allocation6], %s212
          %s214 = sshll.u32 [#allocation7], 4
          %s215 = int_to_ptr.vmem [resolvable:$true] %s214
          %220 = dma.hbm_to_vmem [thread:$0]  %s3, 8192, %s215, [#allocation6], 128, 128, 8
        $region24: #{tpu_custom_call.1} parent=11 // pred_fallthru
          _
        // Predicated region
        $region25: #{tpu_custom_call.1} parent=11 // pred_check
          %p221 = pneg %p130
        $region26: #{tpu_custom_call.1} parent=11 // pred_check_branch
          %223 = sbr.rel (%p221) target = $region28
        $region27: #{tpu_custom_call.1} parent=11 // pred_region
          %s225 = ssub.s32 1024, 1024
          %226 = vsyncadd [#allocation9], %s225
          %s227 = sshll.u32 [#allocation8], 4
          %s228 = int_to_ptr.vmem [resolvable:$true] %s227
          %233 = dma.hbm_to_vmem [thread:$0]  %s4, 1024, %s228, [#allocation9], 64, 64, 4
        $region28: #{tpu_custom_call.1} parent=11 // pred_fallthru
          _
        // Predicated region
        $region29: #{tpu_custom_call.1} parent=11 // pred_check
          %p234 = pneg %p151
        $region30: #{tpu_custom_call.1} parent=11 // pred_check_branch
          %236 = sbr.rel (%p234) target = $region32
        $region31: #{tpu_custom_call.1} parent=11 // pred_region
          _
        $region32: #{tpu_custom_call.1} parent=11 // pred_fallthru
          _
      $region12: #{tpu_custom_call.1} parent=5 // pred_fallthru
        _
      %p237 = scmp.lt.s32.totalorder %s20, 2
      // Predicated region
      $region33: #{tpu_custom_call.1} parent=5 // pred_check
        %p238 = pneg %p237
      $region34: #{tpu_custom_call.1} parent=5 // pred_check_branch
        %240 = sbr.rel (%p238) target = $region36
      $region35: #{tpu_custom_call.1} parent=5 // pred_region
        // Predicated region
        $region37: #{tpu_custom_call.1} parent=35 // pred_check
          %p241 = pneg %p40
        $region38: #{tpu_custom_call.1} parent=35 // pred_check_branch
          %243 = sbr.rel (%p241) target = $region40
        $region39: #{tpu_custom_call.1} parent=35 // pred_region
          %s244 = sand.u32 %s30, 1
          %s245 = scalar_lea.sflag [#allocation3], %s244
          %s246 = sand.u32 %s30, 1
          %s247 = smul.addr %s246, 256
          %s248 = scalar_lea.vmem [#allocation2], %s247
          %s250 = ssub.s32 4096, 4096
          %251 = vsyncadd %s245, %s250
          %s252 = smul.addr %s20, 32
          %s253 = smul.addr %s252, 128
          %s254 = scalar_lea.hbm %s0, %s253
          %s255 = sshll.u32 %s248, 4
          %s256 = int_to_ptr.vmem [resolvable:$true] %s255
          %261 = dma.hbm_to_vmem [thread:$0]  %s254, 4096, %s256, %s245, 128, 128, 8
        $region40: #{tpu_custom_call.1} parent=35 // pred_fallthru
          _
      $region36: #{tpu_custom_call.1} parent=5 // pred_fallthru
        _
      %p262 = scmp.le.s32.totalorder 1, %s20
      %p263 = scmp.lt.s32.totalorder %s20, 3
      %p264 = pnand %p262, %p263
      %p265 = pneg %p264
      // Predicated region
      $region41: #{tpu_custom_call.1} parent=5 // pred_check
        _
      $region42: #{tpu_custom_call.1} parent=5 // pred_check_branch
        %267 = sbr.rel (%p264) target = $region44
      $region43: #{tpu_custom_call.1} parent=5 // pred_region
        %s268 = ssub.s32 %s20, 1
        %s269 = sand.u32 %s33, 1
        %s270 = scalar_lea.sflag [#allocation3], %s269
        %s271 = sand.u32 %s33, 1
        %s272 = smul.addr %s271, 256
        %s273 = scalar_lea.vmem [#allocation2], %s272
        // Predicated region
        $region45: #{tpu_custom_call.1} parent=43 // pred_check
          %p274 = pneg %p46
        $region46: #{tpu_custom_call.1} parent=43 // pred_check_branch
          %276 = sbr.rel (%p274) target = $region48
        $region47: #{tpu_custom_call.1} parent=43 // pred_region
          %277 = dma.done %s270, 4096
        $region48: #{tpu_custom_call.1} parent=43 // pred_fallthru
          _
        // Predicated region
        $region49: #{tpu_custom_call.1} parent=43 // pred_check
          %p278 = pneg %p67
        $region50: #{tpu_custom_call.1} parent=43 // pred_check_branch
          %280 = sbr.rel (%p278) target = $region52
        $region51: #{tpu_custom_call.1} parent=43 // pred_region
          %281 = dma.done [#allocation6], 1024
        $region52: #{tpu_custom_call.1} parent=43 // pred_fallthru
          _
        // Predicated region
        $region53: #{tpu_custom_call.1} parent=43 // pred_check
          %p282 = pneg %p109
        $region54: #{tpu_custom_call.1} parent=43 // pred_check_branch
          %284 = sbr.rel (%p282) target = $region56
        $region55: #{tpu_custom_call.1} parent=43 // pred_region
          %285 = dma.done [#allocation6], 8192
        $region56: #{tpu_custom_call.1} parent=43 // pred_fallthru
          _
        // Predicated region
        $region57: #{tpu_custom_call.1} parent=43 // pred_check
          %p286 = pneg %p130
        $region58: #{tpu_custom_call.1} parent=43 // pred_check_branch
          %288 = sbr.rel (%p286) target = $region60
        $region59: #{tpu_custom_call.1} parent=43 // pred_region
          %289 = dma.done [#allocation9], 1024
        $region60: #{tpu_custom_call.1} parent=43 // pred_fallthru
          _
        %s290 = sand.u32 %s33, 1
        %s291 = scalar_lea.sflag [#allocation3], %s290
        %s292 = sand.u32 %s33, 1
        %s293 = smul.addr %s292, 256
        %s294 = scalar_lea.vmem [#allocation2], %s293
        %p295 = pneg %p46
        %p296 = pneg %p43
        %p297 = pneg %p67
        %p298 = pneg %p64
        %p299 = pneg %p88
        %p300 = pneg %p85
        %p301 = pneg %p109
        %p302 = pneg %p106
        %p303 = pneg %p130
        %p304 = pneg %p127
        %p305 = pneg %p151
        %p306 = pneg %p148
        %p307 = pneg %p177
        %p308 = pneg %p174
        %s309 = sand.u32 %s164, 1
        %s310 = scalar_lea.sflag [#allocation4], %s309
        %s311 = sand.u32 %s164, 1
        %s312 = smul.addr %s311, 256
        %s313 = scalar_lea.vmem [#allocation10], %s312
        %v315 = vld [vmem:[%s5] sm:$0x1]
        %v316 = vld [vmem:[%s273] sm:$0xff]
        %v317 = vld [vmem:[%s273 + $0x8] sm:$0xff]
        %v318 = vld [vmem:[%s273 + $0x10] sm:$0xff]
        %v319 = vld [vmem:[%s273 + $0x18] sm:$0xff]
        %v320 = vld [vmem:[%s273 + $0x20] sm:$0xff]
        %v321 = vld [vmem:[%s273 + $0x28] sm:$0xff]
        %v322 = vld [vmem:[%s273 + $0x30] sm:$0xff]
        %v323 = vld [vmem:[%s273 + $0x38] sm:$0xff]
        %v324 = vld [vmem:[%s273 + $0x40] sm:$0xff]
        %v325 = vld [vmem:[%s273 + $0x48] sm:$0xff]
        %v326 = vld [vmem:[%s273 + $0x50] sm:$0xff]
        %v327 = vld [vmem:[%s273 + $0x58] sm:$0xff]
        %v328 = vld [vmem:[%s273 + $0x60] sm:$0xff]
        %v329 = vld [vmem:[%s273 + $0x68] sm:$0xff]
        %v330 = vld [vmem:[%s273 + $0x70] sm:$0xff]
        %v331 = vld [vmem:[%s273 + $0x78] sm:$0xff]
        %v332 = vld [vmem:[%s273 + $0x80] sm:$0xff]
        %v333 = vld [vmem:[%s273 + $0x88] sm:$0xff]
        %v334 = vld [vmem:[%s273 + $0x90] sm:$0xff]
        %v335 = vld [vmem:[%s273 + $0x98] sm:$0xff]
        %v336 = vld [vmem:[%s273 + $0xa0] sm:$0xff]
        %v337 = vld [vmem:[%s273 + $0xa8] sm:$0xff]
        %v338 = vld [vmem:[%s273 + $0xb0] sm:$0xff]
        %v339 = vld [vmem:[%s273 + $0xb8] sm:$0xff]
        %v340 = vld [vmem:[%s273 + $0xc0] sm:$0xff]
        %v341 = vld [vmem:[%s273 + $0xc8] sm:$0xff]
        %v342 = vld [vmem:[%s273 + $0xd0] sm:$0xff]
        %v343 = vld [vmem:[%s273 + $0xd8] sm:$0xff]
        %v344 = vld [vmem:[%s273 + $0xe0] sm:$0xff]
        %v345 = vld [vmem:[%s273 + $0xe8] sm:$0xff]
        %v346 = vld [vmem:[%s273 + $0xf0] sm:$0xff]
        %v347 = vld [vmem:[%s273 + $0xf8] sm:$0xff]
        %v348 = vpack.c.bf16 %v317, %v316
        %v349 = vpack.c.bf16 %v319, %v318
        %v350 = vpack.c.bf16 %v321, %v320
        %v351 = vpack.c.bf16 %v323, %v322
        %v352 = vpack.c.bf16 %v325, %v324
        %v353 = vpack.c.bf16 %v327, %v326
        %v354 = vpack.c.bf16 %v329, %v328
        %v355 = vpack.c.bf16 %v331, %v330
        %v356 = vpack.c.bf16 %v333, %v332
        %v357 = vpack.c.bf16 %v335, %v334
        %v358 = vpack.c.bf16 %v337, %v336
        %v359 = vpack.c.bf16 %v339, %v338
        %v360 = vpack.c.bf16 %v341, %v340
        %v361 = vpack.c.bf16 %v343, %v342
        %v362 = vpack.c.bf16 %v345, %v344
        %v363 = vpack.c.bf16 %v347, %v346
        %v364 = vld [vmem:[#allocation5] sm:$0xf]
        %v365 = vld [vmem:[#allocation5 + $0x4] sm:$0xf]
        %v366 = vld [vmem:[#allocation5 + $0x8] sm:$0xf]
        %v367 = vld [vmem:[#allocation5 + $0xc] sm:$0xf]
        %v368 = vld [vmem:[#allocation5 + $0x10] sm:$0xf]
        %v369 = vld [vmem:[#allocation5 + $0x14] sm:$0xf]
        %v370 = vld [vmem:[#allocation5 + $0x18] sm:$0xf]
        %v371 = vld [vmem:[#allocation5 + $0x1c] sm:$0xf]
        %v372 = vld [vmem:[%s2] sm:$0x1]
        %v374 = vlaneseq
        %v375 = vshrl.u32 %v374, 7
        %v376 = vsub.s32 0, %v375
        %v377 = vrot.slane %v372, %v376
        %v387 = vunpack.c.l.b16 %v364
        %v388 = vunpack.c.l.b16 %v365
        %v389 = vunpack.c.l.b16 %v366
        %v390 = vunpack.c.l.b16 %v367
        %v391 = vunpack.c.l.b16 %v368
        %v392 = vunpack.c.l.b16 %v369
        %v393 = vunpack.c.l.b16 %v370
        %v394 = vunpack.c.l.b16 %v371
        %v395 = vpack.c.b16 %v388, %v387
        %v396 = vpack.c.b16 %v390, %v389
        %v397 = vpack.c.b16 %v392, %v391
        %v398 = vpack.c.b16 %v394, %v393
        %vm403 = vcmask 523264
        %v405 = vsel %vm403, %v348, 0
        %v408 = vsel %vm403, %v349, 0
        %v411 = vsel %vm403, %v350, 0
        %v414 = vsel %vm403, %v351, 0
        %v417 = vsel %vm403, %v352, 0
        %v420 = vsel %vm403, %v353, 0
        %v423 = vsel %vm403, %v354, 0
        %v426 = vsel %vm403, %v355, 0
        %v429 = vsel %vm403, %v356, 0
        %v432 = vsel %vm403, %v357, 0
        %v435 = vsel %vm403, %v358, 0
        %v438 = vsel %vm403, %v359, 0
        %v441 = vsel %vm403, %v360, 0
        %v444 = vsel %vm403, %v361, 0
        %v447 = vsel %vm403, %v362, 0
        %v450 = vsel %vm403, %v363, 0
        %452 = vmatprep.subr.bf16.mxu0 0
        %453 = vmatpush1.bf16.msra.mxu0 %v395
        %454 = vmatprep.subr.bf16.mxu0 0
        %455 = vmatpush1.bf16.msra.mxu0 %v396
        %456 = vmatprep.subr.bf16.mxu0 0
        %457 = vmatpush1.bf16.msra.mxu0 %v397
        %458 = vmatprep.subr.bf16.mxu0 0
        %459 = vmatpush1.bf16.msra.mxu0 %v398
        %460 = vmatprep.subr.bf16.mxu0 0
        %461 = vmatpush1.bf16.msra.mxu0 0
        %462 = vmatprep.subr.bf16.mxu0 0
        %463 = vmatpush1.bf16.msra.mxu0 0
        %464 = vmatprep.subr.bf16.mxu0 0
        %465 = vmatpush1.bf16.msra.mxu0 0
        %466 = vmatprep.subr.bf16.mxu0 0
        %467 = vmatpush1.bf16.msra.mxu0 0
        %468 = vmatprep.subr.bf16.mxu0 0
        %469 = vmatpush1.bf16.msra.mxu0 0
        %470 = vmatprep.subr.bf16.mxu0 0
        %471 = vmatpush1.bf16.msra.mxu0 0
        %472 = vmatprep.subr.bf16.mxu0 0
        %473 = vmatpush1.bf16.msra.mxu0 0
        %474 = vmatprep.subr.bf16.mxu0 0
        %475 = vmatpush1.bf16.msra.mxu0 0
        %476 = vmatprep.subr.bf16.mxu0 0
        %477 = vmatpush1.bf16.msra.mxu0 0
        %478 = vmatprep.subr.bf16.mxu0 0
        %479 = vmatpush1.bf16.msra.mxu0 0
        %480 = vmatprep.subr.bf16.mxu0 0
        %481 = vmatpush1.bf16.msra.mxu0 0
        %482 = vmatprep.subr.bf16.mxu0 0
        %483 = vmatpush1.bf16.msra.mxu0 0
        %484 = vmatprep.mubr.bf16.mxu0 0
        %485 = vmatmul.mubr.bf16.gmra.mrb[0].mxu0 %v405
        %v486 = vpop.f32.mrb[0].mxu0
        %v487 = vadd.f32 %v377, %v486
        %v488 = vpop.f32.mrb[0].mxu0
        %v489 = vpop.f32.mrb[0].mxu0
        %v490 = vadd.f32 %v377, %v489
        %v491 = vpop.f32.mrb[0].mxu0
        %492 = vmatprep.mubr.bf16.mxu0 0
        %493 = vmatmul.mubr.bf16.gmra.mrb[0].mxu0 %v408
        %v494 = vpop.f32.mrb[0].mxu0
        %v495 = vadd.f32 %v377, %v494
        %v496 = vpop.f32.mrb[0].mxu0
        %v497 = vpop.f32.mrb[0].mxu0
        %v498 = vadd.f32 %v377, %v497
        %v499 = vpop.f32.mrb[0].mxu0
        %500 = vmatprep.mubr.bf16.mxu0 0
        %501 = vmatmul.mubr.bf16.gmra.mrb[0].mxu0 %v411
        %v502 = vpop.f32.mrb[0].mxu0
        %v503 = vadd.f32 %v377, %v502
        %v504 = vpop.f32.mrb[0].mxu0
        %v505 = vpop.f32.mrb[0].mxu0
        %v506 = vadd.f32 %v377, %v505
        %v507 = vpop.f32.mrb[0].mxu0
        %508 = vmatprep.mubr.bf16.mxu0 0
        %509 = vmatmul.mubr.bf16.gmra.mrb[0].mxu0 %v414
        %v510 = vpop.f32.mrb[0].mxu0
        %v511 = vadd.f32 %v377, %v510
        %v512 = vpop.f32.mrb[0].mxu0
        %v513 = vpop.f32.mrb[0].mxu0
        %v514 = vadd.f32 %v377, %v513
        %v515 = vpop.f32.mrb[0].mxu0
        %516 = vmatprep.mubr.bf16.mxu0 0
        %517 = vmatmul.mubr.bf16.gmra.mrb[0].mxu0 %v417
        %v518 = vpop.f32.mrb[0].mxu0
        %v519 = vadd.f32 %v377, %v518
        %v520 = vpop.f32.mrb[0].mxu0
        %v521 = vpop.f32.mrb[0].mxu0
        %v522 = vadd.f32 %v377, %v521
        %v523 = vpop.f32.mrb[0].mxu0
        %524 = vmatprep.mubr.bf16.mxu0 0
        %525 = vmatmul.mubr.bf16.gmra.mrb[0].mxu0 %v420
        %v526 = vpop.f32.mrb[0].mxu0
        %v527 = vadd.f32 %v377, %v526
        %v528 = vpop.f32.mrb[0].mxu0
        %v529 = vpop.f32.mrb[0].mxu0
        %v530 = vadd.f32 %v377, %v529
        %v531 = vpop.f32.mrb[0].mxu0
        %532 = vmatprep.mubr.bf16.mxu0 0
        %533 = vmatmul.mubr.bf16.gmra.mrb[0].mxu0 %v423
        %v534 = vpop.f32.mrb[0].mxu0
        %v535 = vadd.f32 %v377, %v534
        %v536 = vpop.f32.mrb[0].mxu0
        %v537 = vpop.f32.mrb[0].mxu0
        %v538 = vadd.f32 %v377, %v537
        %v539 = vpop.f32.mrb[0].mxu0
        %540 = vmatprep.mubr.bf16.mxu0 0
        %541 = vmatmul.mubr.bf16.gmra.mrb[0].mxu0 %v426
        %v542 = vpop.f32.mrb[0].mxu0
        %v543 = vadd.f32 %v377, %v542
        %v544 = vpop.f32.mrb[0].mxu0
        %v545 = vpop.f32.mrb[0].mxu0
        %v546 = vadd.f32 %v377, %v545
        %v547 = vpop.f32.mrb[0].mxu0
        %548 = vmatprep.mubr.bf16.mxu0 0
        %549 = vmatmul.mubr.bf16.gmra.mrb[0].mxu0 %v429
        %v550 = vpop.f32.mrb[0].mxu0
        %v551 = vadd.f32 %v377, %v550
        %v552 = vpop.f32.mrb[0].mxu0
        %v553 = vpop.f32.mrb[0].mxu0
        %v554 = vadd.f32 %v377, %v553
        %v555 = vpop.f32.mrb[0].mxu0
        %556 = vmatprep.mubr.bf16.mxu0 0
        %557 = vmatmul.mubr.bf16.gmra.mrb[0].mxu0 %v432
        %v558 = vpop.f32.mrb[0].mxu0
        %v559 = vadd.f32 %v377, %v558
        %v560 = vpop.f32.mrb[0].mxu0
        %v561 = vpop.f32.mrb[0].mxu0
        %v562 = vadd.f32 %v377, %v561
        %v563 = vpop.f32.mrb[0].mxu0
        %564 = vmatprep.mubr.bf16.mxu0 0
        %565 = vmatmul.mubr.bf16.gmra.mrb[0].mxu0 %v435
        %v566 = vpop.f32.mrb[0].mxu0
        %v567 = vadd.f32 %v377, %v566
        %v568 = vpop.f32.mrb[0].mxu0
        %v569 = vpop.f32.mrb[0].mxu0
        %v570 = vadd.f32 %v377, %v569
        %v571 = vpop.f32.mrb[0].mxu0
        %572 = vmatprep.mubr.bf16.mxu0 0
        %573 = vmatmul.mubr.bf16.gmra.mrb[0].mxu0 %v438
        %v574 = vpop.f32.mrb[0].mxu0
        %v575 = vadd.f32 %v377, %v574
        %v576 = vpop.f32.mrb[0].mxu0
        %v577 = vpop.f32.mrb[0].mxu0
        %v578 = vadd.f32 %v377, %v577
        %v579 = vpop.f32.mrb[0].mxu0
        %580 = vmatprep.mubr.bf16.mxu0 0
        %581 = vmatmul.mubr.bf16.gmra.mrb[0].mxu0 %v441
        %v582 = vpop.f32.mrb[0].mxu0
        %v583 = vadd.f32 %v377, %v582
        %v584 = vpop.f32.mrb[0].mxu0
        %v585 = vpop.f32.mrb[0].mxu0
        %v586 = vadd.f32 %v377, %v585
        %v587 = vpop.f32.mrb[0].mxu0
        %588 = vmatprep.mubr.bf16.mxu0 0
        %589 = vmatmul.mubr.bf16.gmra.mrb[0].mxu0 %v444
        %v590 = vpop.f32.mrb[0].mxu0
        %v591 = vadd.f32 %v377, %v590
        %v592 = vpop.f32.mrb[0].mxu0
        %v593 = vpop.f32.mrb[0].mxu0
        %v594 = vadd.f32 %v377, %v593
        %v595 = vpop.f32.mrb[0].mxu0
        %596 = vmatprep.mubr.bf16.mxu0 0
        %597 = vmatmul.mubr.bf16.gmra.mrb[0].mxu0 %v447
        %v598 = vpop.f32.mrb[0].mxu0
        %v599 = vadd.f32 %v377, %v598
        %v600 = vpop.f32.mrb[0].mxu0
        %v601 = vpop.f32.mrb[0].mxu0
        %v602 = vadd.f32 %v377, %v601
        %v603 = vpop.f32.mrb[0].mxu0
        %604 = vmatprep.mubr.bf16.mxu0 0
        %605 = vmatmul.mubr.bf16.gmra.mrb[0].mxu0 %v450
        %v606 = vpop.f32.mrb[0].mxu0
        %v607 = vadd.f32 %v377, %v606
        %v608 = vpop.f32.mrb[0].mxu0
        %v609 = vpop.f32.mrb[0].mxu0
        %v610 = vadd.f32 %v377, %v609
        %v611 = vpop.f32.mrb[0].mxu0
        %612 = vdwg.mxu0
        %v613 = vpack.c.bf16 %v490, %v487
        %v614 = vpack.c.bf16 %v498, %v495
        %v615 = vpack.c.bf16 %v506, %v503
        %v616 = vpack.c.bf16 %v514, %v511
        %v617 = vpack.c.bf16 %v522, %v519
        %v618 = vpack.c.bf16 %v530, %v527
        %v619 = vpack.c.bf16 %v538, %v535
        %v620 = vpack.c.bf16 %v546, %v543
        %v621 = vpack.c.bf16 %v554, %v551
        %v622 = vpack.c.bf16 %v562, %v559
        %v623 = vpack.c.bf16 %v570, %v567
        %v624 = vpack.c.bf16 %v578, %v575
        %v625 = vpack.c.bf16 %v586, %v583
        %v626 = vpack.c.bf16 %v594, %v591
        %v627 = vpack.c.bf16 %v602, %v599
        %v628 = vpack.c.bf16 %v610, %v607
        %v629 = vld [vmem:[#allocation7] sm:$0xff]
        %v630 = vld [vmem:[#allocation7 + $0x8] sm:$0xff]
        %v631 = vld [vmem:[#allocation7 + $0x10] sm:$0xff]
        %v632 = vld [vmem:[#allocation7 + $0x18] sm:$0xff]
        %v633 = vld [vmem:[#allocation7 + $0x20] sm:$0xff]
        %v634 = vld [vmem:[#allocation7 + $0x28] sm:$0xff]
        %v635 = vld [vmem:[#allocation7 + $0x30] sm:$0xff]
        %v636 = vld [vmem:[#allocation7 + $0x38] sm:$0xff]
        %v637 = vld [vmem:[#allocation7 + $0x40] sm:$0xff]
        %v638 = vld [vmem:[#allocation7 + $0x48] sm:$0xff]
        %v639 = vld [vmem:[#allocation7 + $0x50] sm:$0xff]
        %v640 = vld [vmem:[#allocation7 + $0x58] sm:$0xff]
        %v641 = vld [vmem:[#allocation7 + $0x60] sm:$0xff]
        %v642 = vld [vmem:[#allocation7 + $0x68] sm:$0xff]
        %v643 = vld [vmem:[#allocation7 + $0x70] sm:$0xff]
        %v644 = vld [vmem:[#allocation7 + $0x78] sm:$0xff]
        %v645 = vunpack.c.l.bf16 %v629
        %v646 = vunpack.c.h.bf16 %v629
        %v647 = vunpack.c.l.bf16 %v630
        %v648 = vunpack.c.h.bf16 %v630
        %v649 = vunpack.c.l.bf16 %v631
        %v650 = vunpack.c.h.bf16 %v631
        %v651 = vunpack.c.l.bf16 %v632
        %v652 = vunpack.c.h.bf16 %v632
        %v653 = vunpack.c.l.bf16 %v633
        %v654 = vunpack.c.h.bf16 %v633
        %v655 = vunpack.c.l.bf16 %v634
        %v656 = vunpack.c.h.bf16 %v634
        %v657 = vunpack.c.l.bf16 %v635
        %v658 = vunpack.c.h.bf16 %v635
        %v659 = vunpack.c.l.bf16 %v636
        %v660 = vunpack.c.h.bf16 %v636
        %v661 = vunpack.c.l.bf16 %v637
        %v662 = vunpack.c.h.bf16 %v637
        %v663 = vunpack.c.l.bf16 %v638
        %v664 = vunpack.c.h.bf16 %v638
        %v665 = vunpack.c.l.bf16 %v639
        %v666 = vunpack.c.h.bf16 %v639
        %v667 = vunpack.c.l.bf16 %v640
        %v668 = vunpack.c.h.bf16 %v640
        %v669 = vunpack.c.l.bf16 %v641
        %v670 = vunpack.c.h.bf16 %v641
        %v671 = vunpack.c.l.bf16 %v642
        %v672 = vunpack.c.h.bf16 %v642
        %v673 = vunpack.c.l.bf16 %v643
        %v674 = vunpack.c.h.bf16 %v643
        %v675 = vunpack.c.l.bf16 %v644
        %v676 = vunpack.c.h.bf16 %v644
        %693 = vrot.lane.b32.xlu0 %v613, 112
        %v694 = vpop.permute.xlu0 %693
        %695 = vrot.lane.b32.xlu0 %v614, 112
        %v696 = vpop.permute.xlu0 %695
        %697 = vrot.lane.b32.xlu0 %v615, 112
        %v698 = vpop.permute.xlu0 %697
        %699 = vrot.lane.b32.xlu0 %v616, 112
        %v700 = vpop.permute.xlu0 %699
        %701 = vrot.lane.b32.xlu0 %v617, 112
        %v702 = vpop.permute.xlu0 %701
        %703 = vrot.lane.b32.xlu0 %v618, 112
        %v704 = vpop.permute.xlu0 %703
        %705 = vrot.lane.b32.xlu0 %v619, 112
        %v706 = vpop.permute.xlu0 %705
        %707 = vrot.lane.b32.xlu0 %v620, 112
        %v708 = vpop.permute.xlu0 %707
        %709 = vrot.lane.b32.xlu0 %v621, 112
        %v710 = vpop.permute.xlu0 %709
        %711 = vrot.lane.b32.xlu0 %v622, 112
        %v712 = vpop.permute.xlu0 %711
        %713 = vrot.lane.b32.xlu0 %v623, 112
        %v714 = vpop.permute.xlu0 %713
        %715 = vrot.lane.b32.xlu0 %v624, 112
        %v716 = vpop.permute.xlu0 %715
        %717 = vrot.lane.b32.xlu0 %v625, 112
        %v718 = vpop.permute.xlu0 %717
        %719 = vrot.lane.b32.xlu0 %v626, 112
        %v720 = vpop.permute.xlu0 %719
        %721 = vrot.lane.b32.xlu0 %v627, 112
        %v722 = vpop.permute.xlu0 %721
        %723 = vrot.lane.b32.xlu0 %v628, 112
        %v724 = vpop.permute.xlu0 %723
        %vm725 = vcmask 130048
        %v727 = vsel %vm725, %v613, 0
        %v730 = vsel %vm725, %v614, 0
        %v733 = vsel %vm725, %v615, 0
        %v736 = vsel %vm725, %v616, 0
        %v739 = vsel %vm725, %v617, 0
        %v742 = vsel %vm725, %v618, 0
        %v745 = vsel %vm725, %v619, 0
        %v748 = vsel %vm725, %v620, 0
        %v751 = vsel %vm725, %v694, 0
        %v754 = vsel %vm725, %v696, 0
        %v757 = vsel %vm725, %v698, 0
        %v760 = vsel %vm725, %v700, 0
        %v763 = vsel %vm725, %v702, 0
        %v766 = vsel %vm725, %v704, 0
        %v769 = vsel %vm725, %v706, 0
        %v772 = vsel %vm725, %v708, 0
        %v775 = vsel %vm725, %v710, 0
        %v778 = vsel %vm725, %v712, 0
        %v781 = vsel %vm725, %v714, 0
        %v784 = vsel %vm725, %v716, 0
        %v787 = vsel %vm725, %v718, 0
        %v790 = vsel %vm725, %v720, 0
        %v793 = vsel %vm725, %v722, 0
        %v796 = vsel %vm725, %v724, 0
        %798 = vmatprep.subr.bf16.mxu0 0
        %799 = vmatpush1.bf16.xpose.msra.mxu0 %v751
        %800 = vmatprep.subr.bf16.mxu0 0
        %801 = vmatpush1.bf16.xpose.msra.mxu0 %v754
        %802 = vmatprep.subr.bf16.mxu0 0
        %803 = vmatpush1.bf16.xpose.msra.mxu0 %v757
        %804 = vmatprep.subr.bf16.mxu0 0
        %805 = vmatpush1.bf16.xpose.msra.mxu0 %v760
        %806 = vmatprep.subr.bf16.mxu0 0
        %807 = vmatpush1.bf16.xpose.msra.mxu0 %v763
        %808 = vmatprep.subr.bf16.mxu0 0
        %809 = vmatpush1.bf16.xpose.msra.mxu0 %v766
        %810 = vmatprep.subr.bf16.mxu0 0
        %811 = vmatpush1.bf16.xpose.msra.mxu0 %v769
        %812 = vmatprep.subr.bf16.mxu0 0
        %813 = vmatpush1.bf16.xpose.msra.mxu0 %v772
        %814 = vmatprep.subr.bf16.mxu0 0
        %815 = vmatpush1.bf16.xpose.msra.mxu0 %v775
        %816 = vmatprep.subr.bf16.mxu0 0
        %817 = vmatpush1.bf16.xpose.msra.mxu0 %v778
        %818 = vmatprep.subr.bf16.mxu0 0
        %819 = vmatpush1.bf16.xpose.msra.mxu0 %v781
        %820 = vmatprep.subr.bf16.mxu0 0
        %821 = vmatpush1.bf16.xpose.msra.mxu0 %v784
        %822 = vmatprep.subr.bf16.mxu0 0
        %823 = vmatpush1.bf16.xpose.msra.mxu0 %v787
        %824 = vmatprep.subr.bf16.mxu0 0
        %825 = vmatpush1.bf16.xpose.msra.mxu0 %v790
        %826 = vmatprep.subr.bf16.mxu0 0
        %827 = vmatpush1.bf16.xpose.msra.mxu0 %v793
        %828 = vmatprep.subr.bf16.mxu0 0
        %829 = vmatpush1.bf16.xpose.msra.mxu0 %v796
        %830 = vmatprep.mubr.bf16.mxu0 0
        %831 = vmatmul.mubr.bf16.gmra.mrb[0].mxu0 %v727
        %v832 = vpop.f32.mrb[0].mxu0
        %v833 = vadd.f32 %v645, %v832
        %v834 = vpop.f32.mrb[0].mxu0
        %v835 = vadd.f32 %v646, %v834
        %v836 = vpop.f32.mrb[0].mxu0
        %v837 = vadd.f32 %v647, %v836
        %v838 = vpop.f32.mrb[0].mxu0
        %v839 = vadd.f32 %v648, %v838
        %840 = vmatprep.mubr.bf16.mxu0 0
        %841 = vmatmul.mubr.bf16.gmra.mrb[0].mxu0 %v730
        %v842 = vpop.f32.mrb[0].mxu0
        %v843 = vadd.f32 %v649, %v842
        %v844 = vpop.f32.mrb[0].mxu0
        %v845 = vadd.f32 %v650, %v844
        %v846 = vpop.f32.mrb[0].mxu0
        %v847 = vadd.f32 %v651, %v846
        %v848 = vpop.f32.mrb[0].mxu0
        %v849 = vadd.f32 %v652, %v848
        %850 = vmatprep.mubr.bf16.mxu0 0
        %851 = vmatmul.mubr.bf16.gmra.mrb[0].mxu0 %v733
        %v852 = vpop.f32.mrb[0].mxu0
        %v853 = vadd.f32 %v653, %v852
        %v854 = vpop.f32.mrb[0].mxu0
        %v855 = vadd.f32 %v654, %v854
        %v856 = vpop.f32.mrb[0].mxu0
        %v857 = vadd.f32 %v655, %v856
        %v858 = vpop.f32.mrb[0].mxu0
        %v859 = vadd.f32 %v656, %v858
        %860 = vmatprep.mubr.bf16.mxu0 0
        %861 = vmatmul.mubr.bf16.gmra.mrb[0].mxu0 %v736
        %v862 = vpop.f32.mrb[0].mxu0
        %v863 = vadd.f32 %v657, %v862
        %v864 = vpop.f32.mrb[0].mxu0
        %v865 = vadd.f32 %v658, %v864
        %v866 = vpop.f32.mrb[0].mxu0
        %v867 = vadd.f32 %v659, %v866
        %v868 = vpop.f32.mrb[0].mxu0
        %v869 = vadd.f32 %v660, %v868
        %870 = vmatprep.mubr.bf16.mxu0 0
        %871 = vmatmul.mubr.bf16.gmra.mrb[0].mxu0 %v739
        %v872 = vpop.f32.mrb[0].mxu0
        %v873 = vadd.f32 %v661, %v872
        %v874 = vpop.f32.mrb[0].mxu0
        %v875 = vadd.f32 %v662, %v874
        %v876 = vpop.f32.mrb[0].mxu0
        %v877 = vadd.f32 %v663, %v876
        %v878 = vpop.f32.mrb[0].mxu0
        %v879 = vadd.f32 %v664, %v878
        %880 = vmatprep.mubr.bf16.mxu0 0
        %881 = vmatmul.mubr.bf16.gmra.mrb[0].mxu0 %v742
        %v882 = vpop.f32.mrb[0].mxu0
        %v883 = vadd.f32 %v665, %v882
        %v884 = vpop.f32.mrb[0].mxu0
        %v885 = vadd.f32 %v666, %v884
        %v886 = vpop.f32.mrb[0].mxu0
        %v887 = vadd.f32 %v667, %v886
        %v888 = vpop.f32.mrb[0].mxu0
        %v889 = vadd.f32 %v668, %v888
        %890 = vmatprep.mubr.bf16.mxu0 0
        %891 = vmatmul.mubr.bf16.gmra.mrb[0].mxu0 %v745
        %v892 = vpop.f32.mrb[0].mxu0
        %v893 = vadd.f32 %v669, %v892
        %v894 = vpop.f32.mrb[0].mxu0
        %v895 = vadd.f32 %v670, %v894
        %v896 = vpop.f32.mrb[0].mxu0
        %v897 = vadd.f32 %v671, %v896
        %v898 = vpop.f32.mrb[0].mxu0
        %v899 = vadd.f32 %v672, %v898
        %900 = vmatprep.mubr.bf16.mxu0 0
        %901 = vmatmul.mubr.bf16.gmra.mrb[0].mxu0 %v748
        %v902 = vpop.f32.mrb[0].mxu0
        %v903 = vadd.f32 %v673, %v902
        %v904 = vpop.f32.mrb[0].mxu0
        %v905 = vadd.f32 %v674, %v904
        %v906 = vpop.f32.mrb[0].mxu0
        %v907 = vadd.f32 %v675, %v906
        %v908 = vpop.f32.mrb[0].mxu0
        %v909 = vadd.f32 %v676, %v908
        %910 = vdwg.mxu0
        %v911 = vmax.f32 %v833, %v835
        %912 = vmax.xlane.f32.xlu0 %v911
        %v913 = vpop.xlane.xlu0 %912
        %v914 = vmax.f32 %v837, %v839
        %915 = vmax.xlane.f32.xlu0 %v914
        %v916 = vpop.xlane.xlu0 %915
        %v917 = vmax.f32 %v843, %v845
        %918 = vmax.xlane.f32.xlu0 %v917
        %v919 = vpop.xlane.xlu0 %918
        %v920 = vmax.f32 %v847, %v849
        %921 = vmax.xlane.f32.xlu0 %v920
        %v922 = vpop.xlane.xlu0 %921
        %v923 = vmax.f32 %v853, %v855
        %924 = vmax.xlane.f32.xlu0 %v923
        %v925 = vpop.xlane.xlu0 %924
        %v926 = vmax.f32 %v857, %v859
        %927 = vmax.xlane.f32.xlu0 %v926
        %v928 = vpop.xlane.xlu0 %927
        %v929 = vmax.f32 %v863, %v865
        %930 = vmax.xlane.f32.xlu0 %v929
        %v931 = vpop.xlane.xlu0 %930
        %v932 = vmax.f32 %v867, %v869
        %933 = vmax.xlane.f32.xlu0 %v932
        %v934 = vpop.xlane.xlu0 %933
        %v935 = vmax.f32 %v873, %v875
        %936 = vmax.xlane.f32.xlu0 %v935
        %v937 = vpop.xlane.xlu0 %936
        %v938 = vmax.f32 %v877, %v879
        %939 = vmax.xlane.f32.xlu0 %v938
        %v940 = vpop.xlane.xlu0 %939
        %v941 = vmax.f32 %v883, %v885
        %942 = vmax.xlane.f32.xlu0 %v941
        %v943 = vpop.xlane.xlu0 %942
        %v944 = vmax.f32 %v887, %v889
        %945 = vmax.xlane.f32.xlu0 %v944
        %v946 = vpop.xlane.xlu0 %945
        %v947 = vmax.f32 %v893, %v895
        %948 = vmax.xlane.f32.xlu0 %v947
        %v949 = vpop.xlane.xlu0 %948
        %v950 = vmax.f32 %v897, %v899
        %951 = vmax.xlane.f32.xlu0 %v950
        %v952 = vpop.xlane.xlu0 %951
        %v953 = vmax.f32 %v903, %v905
        %954 = vmax.xlane.f32.xlu0 %v953
        %v955 = vpop.xlane.xlu0 %954
        %v956 = vmax.f32 %v907, %v909
        %957 = vmax.xlane.f32.xlu0 %v956
        %v958 = vpop.xlane.xlu0 %957
        %v959 = vsub.f32 %v833, %v913
        %v960 = vsub.f32 %v835, %v913
        %v961 = vsub.f32 %v837, %v916
        %v962 = vsub.f32 %v839, %v916
        %v963 = vsub.f32 %v843, %v919
        %v964 = vsub.f32 %v845, %v919
        %v965 = vsub.f32 %v847, %v922
        %v966 = vsub.f32 %v849, %v922
        %v967 = vsub.f32 %v853, %v925
        %v968 = vsub.f32 %v855, %v925
        %v969 = vsub.f32 %v857, %v928
        %v970 = vsub.f32 %v859, %v928
        %v971 = vsub.f32 %v863, %v931
        %v972 = vsub.f32 %v865, %v931
        %v973 = vsub.f32 %v867, %v934
        %v974 = vsub.f32 %v869, %v934
        %v975 = vsub.f32 %v873, %v937
        %v976 = vsub.f32 %v875, %v937
        %v977 = vsub.f32 %v877, %v940
        %v978 = vsub.f32 %v879, %v940
        %v979 = vsub.f32 %v883, %v943
        %v980 = vsub.f32 %v885, %v943
        %v981 = vsub.f32 %v887, %v946
        %v982 = vsub.f32 %v889, %v946
        %v983 = vsub.f32 %v893, %v949
        %v984 = vsub.f32 %v895, %v949
        %v985 = vsub.f32 %v897, %v952
        %v986 = vsub.f32 %v899, %v952
        %v987 = vsub.f32 %v903, %v955
        %v988 = vsub.f32 %v905, %v955
        %v989 = vsub.f32 %v907, %v958
        %v990 = vsub.f32 %v909, %v958
        %v991 = vmul.f32 %v959, 1.442695
        %v992 = vpow.pop %v991
        %v993 = vmul.f32 %v960, 1.442695
        %v994 = vpow.pop %v993
        %v995 = vmul.f32 %v961, 1.442695
        %v996 = vpow.pop %v995
        %v997 = vmul.f32 %v962, 1.442695
        %v998 = vpow.pop %v997
        %v999 = vmul.f32 %v963, 1.442695
        %v1000 = vpow.pop %v999
        %v1001 = vmul.f32 %v964, 1.442695
        %v1002 = vpow.pop %v1001
        %v1003 = vmul.f32 %v965, 1.442695
        %v1004 = vpow.pop %v1003
        %v1005 = vmul.f32 %v966, 1.442695
        %v1006 = vpow.pop %v1005
        %v1007 = vmul.f32 %v967, 1.442695
        %v1008 = vpow.pop %v1007
        %v1009 = vmul.f32 %v968, 1.442695
        %v1010 = vpow.pop %v1009
        %v1011 = vmul.f32 %v969, 1.442695
        %v1012 = vpow.pop %v1011
        %v1013 = vmul.f32 %v970, 1.442695
        %v1014 = vpow.pop %v1013
        %v1015 = vmul.f32 %v971, 1.442695
        %v1016 = vpow.pop %v1015
        %v1017 = vmul.f32 %v972, 1.442695
        %v1018 = vpow.pop %v1017
        %v1019 = vmul.f32 %v973, 1.442695
        %v1020 = vpow.pop %v1019
        %v1021 = vmul.f32 %v974, 1.442695
        %v1022 = vpow.pop %v1021
        %v1023 = vmul.f32 %v975, 1.442695
        %v1024 = vpow.pop %v1023
        %v1025 = vmul.f32 %v976, 1.442695
        %v1026 = vpow.pop %v1025
        %v1027 = vmul.f32 %v977, 1.442695
        %v1028 = vpow.pop %v1027
        %v1029 = vmul.f32 %v978, 1.442695
        %v1030 = vpow.pop %v1029
        %v1031 = vmul.f32 %v979, 1.442695
        %v1032 = vpow.pop %v1031
        %v1033 = vmul.f32 %v980, 1.442695
        %v1034 = vpow.pop %v1033
        %v1035 = vmul.f32 %v981, 1.442695
        %v1036 = vpow.pop %v1035
        %v1037 = vmul.f32 %v982, 1.442695
        %v1038 = vpow.pop %v1037
        %v1039 = vmul.f32 %v983, 1.442695
        %v1040 = vpow.pop %v1039
        %v1041 = vmul.f32 %v984, 1.442695
        %v1042 = vpow.pop %v1041
        %v1043 = vmul.f32 %v985, 1.442695
        %v1044 = vpow.pop %v1043
        %v1045 = vmul.f32 %v986, 1.442695
        %v1046 = vpow.pop %v1045
        %v1047 = vmul.f32 %v987, 1.442695
        %v1048 = vpow.pop %v1047
        %v1049 = vmul.f32 %v988, 1.442695
        %v1050 = vpow.pop %v1049
        %v1051 = vmul.f32 %v989, 1.442695
        %v1052 = vpow.pop %v1051
        %v1053 = vmul.f32 %v990, 1.442695
        %v1054 = vpow.pop %v1053
        %v1055 = vadd.f32 %v992, %v994
        %1056 = vadd.xlane.f32.xlu0 %v1055
        %v1057 = vpop.xlane.xlu0 %1056
        %v1058 = vadd.f32 %v996, %v998
        %1059 = vadd.xlane.f32.xlu0 %v1058
        %v1060 = vpop.xlane.xlu0 %1059
        %v1061 = vadd.f32 %v1000, %v1002
        %1062 = vadd.xlane.f32.xlu0 %v1061
        %v1063 = vpop.xlane.xlu0 %1062
        %v1064 = vadd.f32 %v1004, %v1006
        %1065 = vadd.xlane.f32.xlu0 %v1064
        %v1066 = vpop.xlane.xlu0 %1065
        %v1067 = vadd.f32 %v1008, %v1010
        %1068 = vadd.xlane.f32.xlu0 %v1067
        %v1069 = vpop.xlane.xlu0 %1068
        %v1070 = vadd.f32 %v1012, %v1014
        %1071 = vadd.xlane.f32.xlu0 %v1070
        %v1072 = vpop.xlane.xlu0 %1071
        %v1073 = vadd.f32 %v1016, %v1018
        %1074 = vadd.xlane.f32.xlu0 %v1073
        %v1075 = vpop.xlane.xlu0 %1074
        %v1076 = vadd.f32 %v1020, %v1022
        %1077 = vadd.xlane.f32.xlu0 %v1076
        %v1078 = vpop.xlane.xlu0 %1077
        %v1079 = vadd.f32 %v1024, %v1026
        %1080 = vadd.xlane.f32.xlu0 %v1079
        %v1081 = vpop.xlane.xlu0 %1080
        %v1082 = vadd.f32 %v1028, %v1030
        %1083 = vadd.xlane.f32.xlu0 %v1082
        %v1084 = vpop.xlane.xlu0 %1083
        %v1085 = vadd.f32 %v1032, %v1034
        %1086 = vadd.xlane.f32.xlu0 %v1085
        %v1087 = vpop.xlane.xlu0 %1086
        %v1088 = vadd.f32 %v1036, %v1038
        %1089 = vadd.xlane.f32.xlu0 %v1088
        %v1090 = vpop.xlane.xlu0 %1089
        %v1091 = vadd.f32 %v1040, %v1042
        %1092 = vadd.xlane.f32.xlu0 %v1091
        %v1093 = vpop.xlane.xlu0 %1092
        %v1094 = vadd.f32 %v1044, %v1046
        %1095 = vadd.xlane.f32.xlu0 %v1094
        %v1096 = vpop.xlane.xlu0 %1095
        %v1097 = vadd.f32 %v1048, %v1050
        %1098 = vadd.xlane.f32.xlu0 %v1097
        %v1099 = vpop.xlane.xlu0 %1098
        %v1100 = vadd.f32 %v1052, %v1054
        %1101 = vadd.xlane.f32.xlu0 %v1100
        %v1102 = vpop.xlane.xlu0 %1101
        %v1103 = vpack.c.bf16 %v996, %v992
        %v1104 = vpack.c.bf16 %v998, %v994
        %v1105 = vpack.c.bf16 %v1004, %v1000
        %v1106 = vpack.c.bf16 %v1006, %v1002
        %v1107 = vpack.c.bf16 %v1012, %v1008
        %v1108 = vpack.c.bf16 %v1014, %v1010
        %v1109 = vpack.c.bf16 %v1020, %v1016
        %v1110 = vpack.c.bf16 %v1022, %v1018
        %v1111 = vpack.c.bf16 %v1028, %v1024
        %v1112 = vpack.c.bf16 %v1030, %v1026
        %v1113 = vpack.c.bf16 %v1036, %v1032
        %v1114 = vpack.c.bf16 %v1038, %v1034
        %v1115 = vpack.c.bf16 %v1044, %v1040
        %v1116 = vpack.c.bf16 %v1046, %v1042
        %v1117 = vpack.c.bf16 %v1052, %v1048
        %v1118 = vpack.c.bf16 %v1054, %v1050
        %1119 = vrot.lane.b32.xlu0 %v613, 96
        %v1120 = vpop.permute.xlu0 %1119
        %1121 = vrot.lane.b32.xlu0 %v614, 96
        %v1122 = vpop.permute.xlu0 %1121
        %1123 = vrot.lane.b32.xlu0 %v615, 96
        %v1124 = vpop.permute.xlu0 %1123
        %1125 = vrot.lane.b32.xlu0 %v616, 96
        %v1126 = vpop.permute.xlu0 %1125
        %1127 = vrot.lane.b32.xlu0 %v617, 96
        %v1128 = vpop.permute.xlu0 %1127
        %1129 = vrot.lane.b32.xlu0 %v618, 96
        %v1130 = vpop.permute.xlu0 %1129
        %1131 = vrot.lane.b32.xlu0 %v619, 96
        %v1132 = vpop.permute.xlu0 %1131
        %1133 = vrot.lane.b32.xlu0 %v620, 96
        %v1134 = vpop.permute.xlu0 %1133
        %1135 = vrot.lane.b32.xlu0 %v621, 96
        %v1136 = vpop.permute.xlu0 %1135
        %1137 = vrot.lane.b32.xlu0 %v622, 96
        %v1138 = vpop.permute.xlu0 %1137
        %1139 = vrot.lane.b32.xlu0 %v623, 96
        %v1140 = vpop.permute.xlu0 %1139
        %1141 = vrot.lane.b32.xlu0 %v624, 96
        %v1142 = vpop.permute.xlu0 %1141
        %1143 = vrot.lane.b32.xlu0 %v625, 96
        %v1144 = vpop.permute.xlu0 %1143
        %1145 = vrot.lane.b32.xlu0 %v626, 96
        %v1146 = vpop.permute.xlu0 %1145
        %1147 = vrot.lane.b32.xlu0 %v627, 96
        %v1148 = vpop.permute.xlu0 %1147
        %1149 = vrot.lane.b32.xlu0 %v628, 96
        %v1150 = vpop.permute.xlu0 %1149
        %1167 = vmatprep.subr.bf16.mxu0 0
        %1168 = vmatpush1.bf16.msra.mxu0 %v1120
        %1169 = vmatprep.subr.bf16.mxu0 0
        %1170 = vmatpush1.bf16.msra.mxu0 %v1122
        %1171 = vmatprep.subr.bf16.mxu0 0
        %1172 = vmatpush1.bf16.msra.mxu0 %v1124
        %1173 = vmatprep.subr.bf16.mxu0 0
        %1174 = vmatpush1.bf16.msra.mxu0 %v1126
        %1175 = vmatprep.subr.bf16.mxu0 0
        %1176 = vmatpush1.bf16.msra.mxu0 %v1128
        %1177 = vmatprep.subr.bf16.mxu0 0
        %1178 = vmatpush1.bf16.msra.mxu0 %v1130
        %1179 = vmatprep.subr.bf16.mxu0 0
        %1180 = vmatpush1.bf16.msra.mxu0 %v1132
        %1181 = vmatprep.subr.bf16.mxu0 0
        %1182 = vmatpush1.bf16.msra.mxu0 %v1134
        %1183 = vmatprep.subr.bf16.mxu0 0
        %1184 = vmatpush1.bf16.msra.mxu0 %v1136
        %1185 = vmatprep.subr.bf16.mxu0 0
        %1186 = vmatpush1.bf16.msra.mxu0 %v1138
        %1187 = vmatprep.subr.bf16.mxu0 0
        %1188 = vmatpush1.bf16.msra.mxu0 %v1140
        %1189 = vmatprep.subr.bf16.mxu0 0
        %1190 = vmatpush1.bf16.msra.mxu0 %v1142
        %1191 = vmatprep.subr.bf16.mxu0 0
        %1192 = vmatpush1.bf16.msra.mxu0 %v1144
        %1193 = vmatprep.subr.bf16.mxu0 0
        %1194 = vmatpush1.bf16.msra.mxu0 %v1146
        %1195 = vmatprep.subr.bf16.mxu0 0
        %1196 = vmatpush1.bf16.msra.mxu0 %v1148
        %1197 = vmatprep.subr.bf16.mxu0 0
        %1198 = vmatpush1.bf16.msra.mxu0 %v1150
        %1199 = vmatprep.mubr.bf16.mxu0 %v1104
        %1200 = vmatmul.mubr.bf16.gmra.mrb[0].mxu0 %v1103
        %v1201 = vpop.f32.mrb[0].mxu0
        %v1202 = vadd.f32 0.0, %v1201
        %v1203 = vpop.f32.mrb[0].mxu0
        %v1204 = vpop.f32.mrb[0].mxu0
        %v1205 = vadd.f32 0.0, %v1204
        %v1206 = vpop.f32.mrb[0].mxu0
        %1207 = vmatprep.mubr.bf16.mxu0 %v1106
        %1208 = vmatmul.mubr.bf16.gmra.mrb[0].mxu0 %v1105
        %v1209 = vpop.f32.mrb[0].mxu0
        %v1210 = vadd.f32 0.0, %v1209
        %v1211 = vpop.f32.mrb[0].mxu0
        %v1212 = vpop.f32.mrb[0].mxu0
        %v1213 = vadd.f32 0.0, %v1212
        %v1214 = vpop.f32.mrb[0].mxu0
        %1215 = vmatprep.mubr.bf16.mxu0 %v1108
        %1216 = vmatmul.mubr.bf16.gmra.mrb[0].mxu0 %v1107
        %v1217 = vpop.f32.mrb[0].mxu0
        %v1218 = vadd.f32 0.0, %v1217
        %v1219 = vpop.f32.mrb[0].mxu0
        %v1220 = vpop.f32.mrb[0].mxu0
        %v1221 = vadd.f32 0.0, %v1220
        %v1222 = vpop.f32.mrb[0].mxu0
        %1223 = vmatprep.mubr.bf16.mxu0 %v1110
        %1224 = vmatmul.mubr.bf16.gmra.mrb[0].mxu0 %v1109
        %v1225 = vpop.f32.mrb[0].mxu0
        %v1226 = vadd.f32 0.0, %v1225
        %v1227 = vpop.f32.mrb[0].mxu0
        %v1228 = vpop.f32.mrb[0].mxu0
        %v1229 = vadd.f32 0.0, %v1228
        %v1230 = vpop.f32.mrb[0].mxu0
        %1231 = vmatprep.mubr.bf16.mxu0 %v1112
        %1232 = vmatmul.mubr.bf16.gmra.mrb[0].mxu0 %v1111
        %v1233 = vpop.f32.mrb[0].mxu0
        %v1234 = vadd.f32 0.0, %v1233
        %v1235 = vpop.f32.mrb[0].mxu0
        %v1236 = vpop.f32.mrb[0].mxu0
        %v1237 = vadd.f32 0.0, %v1236
        %v1238 = vpop.f32.mrb[0].mxu0
        %1239 = vmatprep.mubr.bf16.mxu0 %v1114
        %1240 = vmatmul.mubr.bf16.gmra.mrb[0].mxu0 %v1113
        %v1241 = vpop.f32.mrb[0].mxu0
        %v1242 = vadd.f32 0.0, %v1241
        %v1243 = vpop.f32.mrb[0].mxu0
        %v1244 = vpop.f32.mrb[0].mxu0
        %v1245 = vadd.f32 0.0, %v1244
        %v1246 = vpop.f32.mrb[0].mxu0
        %1247 = vmatprep.mubr.bf16.mxu0 %v1116
        %1248 = vmatmul.mubr.bf16.gmra.mrb[0].mxu0 %v1115
        %v1249 = vpop.f32.mrb[0].mxu0
        %v1250 = vadd.f32 0.0, %v1249
        %v1251 = vpop.f32.mrb[0].mxu0
        %v1252 = vpop.f32.mrb[0].mxu0
        %v1253 = vadd.f32 0.0, %v1252
        %v1254 = vpop.f32.mrb[0].mxu0
        %1255 = vmatprep.mubr.bf16.mxu0 %v1118
        %1256 = vmatmul.mubr.bf16.gmra.mrb[0].mxu0 %v1117
        %v1257 = vpop.f32.mrb[0].mxu0
        %v1258 = vadd.f32 0.0, %v1257
        %v1259 = vpop.f32.mrb[0].mxu0
        %v1260 = vpop.f32.mrb[0].mxu0
        %v1261 = vadd.f32 0.0, %v1260
        %v1262 = vpop.f32.mrb[0].mxu0
        %1263 = vdwg.mxu0
        %v1264 = vrcp.pop %v1057
        %v1265 = vrcp.pop %v1060
        %v1266 = vrcp.pop %v1063
        %v1267 = vrcp.pop %v1066
        %v1268 = vrcp.pop %v1069
        %v1269 = vrcp.pop %v1072
        %v1270 = vrcp.pop %v1075
        %v1271 = vrcp.pop %v1078
        %v1272 = vrcp.pop %v1081
        %v1273 = vrcp.pop %v1084
        %v1274 = vrcp.pop %v1087
        %v1275 = vrcp.pop %v1090
        %v1276 = vrcp.pop %v1093
        %v1277 = vrcp.pop %v1096
        %v1278 = vrcp.pop %v1099
        %v1279 = vrcp.pop %v1102
        %v1280 = vmul.f32 %v1202, %v1264
        %v1281 = vmul.f32 %v1205, %v1265
        %v1282 = vmul.f32 %v1210, %v1266
        %v1283 = vmul.f32 %v1213, %v1267
        %v1284 = vmul.f32 %v1218, %v1268
        %v1285 = vmul.f32 %v1221, %v1269
        %v1286 = vmul.f32 %v1226, %v1270
        %v1287 = vmul.f32 %v1229, %v1271
        %v1288 = vmul.f32 %v1234, %v1272
        %v1289 = vmul.f32 %v1237, %v1273
        %v1290 = vmul.f32 %v1242, %v1274
        %v1291 = vmul.f32 %v1245, %v1275
        %v1292 = vmul.f32 %v1250, %v1276
        %v1293 = vmul.f32 %v1253, %v1277
        %v1294 = vmul.f32 %v1258, %v1278
        %v1295 = vmul.f32 %v1261, %v1279
        %v1296 = vmax.f32 %v1280, 0.0
        %v1297 = vmax.f32 %v1281, 0.0
        %v1298 = vmax.f32 %v1282, 0.0
        %v1299 = vmax.f32 %v1283, 0.0
        %v1300 = vmax.f32 %v1284, 0.0
        %v1301 = vmax.f32 %v1285, 0.0
        %v1302 = vmax.f32 %v1286, 0.0
        %v1303 = vmax.f32 %v1287, 0.0
        %v1304 = vmax.f32 %v1288, 0.0
        %v1305 = vmax.f32 %v1289, 0.0
        %v1306 = vmax.f32 %v1290, 0.0
        %v1307 = vmax.f32 %v1291, 0.0
        %v1308 = vmax.f32 %v1292, 0.0
        %v1309 = vmax.f32 %v1293, 0.0
        %v1310 = vmax.f32 %v1294, 0.0
        %v1311 = vmax.f32 %v1295, 0.0
        %v1312 = vpack.c.bf16 %v1297, %v1296
        %v1313 = vpack.c.bf16 %v1299, %v1298
        %v1314 = vpack.c.bf16 %v1301, %v1300
        %v1315 = vpack.c.bf16 %v1303, %v1302
        %v1316 = vpack.c.bf16 %v1305, %v1304
        %v1317 = vpack.c.bf16 %v1307, %v1306
        %v1318 = vpack.c.bf16 %v1309, %v1308
        %v1319 = vpack.c.bf16 %v1311, %v1310
        %v1320 = vld [vmem:[#allocation8] sm:$0xf]
        %v1321 = vld [vmem:[#allocation8 + $0x4] sm:$0xf]
        %v1322 = vld [vmem:[#allocation8 + $0x8] sm:$0xf]
        %v1323 = vld [vmem:[#allocation8 + $0xc] sm:$0xf]
        %v1324 = vld [vmem:[#allocation8 + $0x10] sm:$0xf]
        %v1325 = vld [vmem:[#allocation8 + $0x14] sm:$0xf]
        %v1326 = vld [vmem:[#allocation8 + $0x18] sm:$0xf]
        %v1327 = vld [vmem:[#allocation8 + $0x1c] sm:$0xf]
        %v1329 = vlaneseq
        %v1330 = vshrl.u32 %v1329, 7
        %v1331 = vsub.s32 0, %v1330
        %v1332 = vrot.slane %v315, %v1331
        %v1342 = vunpack.c.l.b16 %v1320
        %v1343 = vunpack.c.l.b16 %v1321
        %v1344 = vunpack.c.l.b16 %v1322
        %v1345 = vunpack.c.l.b16 %v1323
        %v1346 = vunpack.c.l.b16 %v1324
        %v1347 = vunpack.c.l.b16 %v1325
        %v1348 = vunpack.c.l.b16 %v1326
        %v1349 = vunpack.c.l.b16 %v1327
        %v1350 = vpack.c.b16 %v1343, %v1342
        %v1351 = vpack.c.b16 %v1345, %v1344
        %v1352 = vpack.c.b16 %v1347, %v1346
        %v1353 = vpack.c.b16 %v1349, %v1348
        %v1359 = vsel %vm403, %v1312, 0
        %v1362 = vsel %vm403, %v1313, 0
        %v1365 = vsel %vm403, %v1314, 0
        %v1368 = vsel %vm403, %v1315, 0
        %v1371 = vsel %vm403, %v1316, 0
        %v1374 = vsel %vm403, %v1317, 0
        %v1377 = vsel %vm403, %v1318, 0
        %v1380 = vsel %vm403, %v1319, 0
        %1382 = vmatprep.subr.bf16.mxu0 0
        %1383 = vmatpush1.bf16.msra.mxu0 %v1350
        %1384 = vmatprep.subr.bf16.mxu0 0
        %1385 = vmatpush1.bf16.msra.mxu0 %v1351
        %1386 = vmatprep.subr.bf16.mxu0 0
        %1387 = vmatpush1.bf16.msra.mxu0 %v1352
        %1388 = vmatprep.subr.bf16.mxu0 0
        %1389 = vmatpush1.bf16.msra.mxu0 %v1353
        %1390 = vmatprep.subr.bf16.mxu0 0
        %1391 = vmatpush1.bf16.msra.mxu0 0
        %1392 = vmatprep.subr.bf16.mxu0 0
        %1393 = vmatpush1.bf16.msra.mxu0 0
        %1394 = vmatprep.subr.bf16.mxu0 0
        %1395 = vmatpush1.bf16.msra.mxu0 0
        %1396 = vmatprep.subr.bf16.mxu0 0
        %1397 = vmatpush1.bf16.msra.mxu0 0
        %1398 = vmatprep.subr.bf16.mxu0 0
        %1399 = vmatpush1.bf16.msra.mxu0 0
        %1400 = vmatprep.subr.bf16.mxu0 0
        %1401 = vmatpush1.bf16.msra.mxu0 0
        %1402 = vmatprep.subr.bf16.mxu0 0
        %1403 = vmatpush1.bf16.msra.mxu0 0
        %1404 = vmatprep.subr.bf16.mxu0 0
        %1405 = vmatpush1.bf16.msra.mxu0 0
        %1406 = vmatprep.subr.bf16.mxu0 0
        %1407 = vmatpush1.bf16.msra.mxu0 0
        %1408 = vmatprep.subr.bf16.mxu0 0
        %1409 = vmatpush1.bf16.msra.mxu0 0
        %1410 = vmatprep.subr.bf16.mxu0 0
        %1411 = vmatpush1.bf16.msra.mxu0 0
        %1412 = vmatprep.subr.bf16.mxu0 0
        %1413 = vmatpush1.bf16.msra.mxu0 0
        %1414 = vmatprep.mubr.bf16.mxu0 0
        %1415 = vmatmul.mubr.bf16.gmra.mrb[0].mxu0 %v1359
        %v1416 = vpop.f32.mrb[0].mxu0
        %v1417 = vadd.f32 %v1332, %v1416
        %v1418 = vpop.f32.mrb[0].mxu0
        %v1419 = vpop.f32.mrb[0].mxu0
        %v1420 = vadd.f32 %v1332, %v1419
        %v1421 = vpop.f32.mrb[0].mxu0
        %1422 = vmatprep.mubr.bf16.mxu0 0
        %1423 = vmatmul.mubr.bf16.gmra.mrb[0].mxu0 %v1362
        %v1424 = vpop.f32.mrb[0].mxu0
        %v1425 = vadd.f32 %v1332, %v1424
        %v1426 = vpop.f32.mrb[0].mxu0
        %v1427 = vpop.f32.mrb[0].mxu0
        %v1428 = vadd.f32 %v1332, %v1427
        %v1429 = vpop.f32.mrb[0].mxu0
        %1430 = vmatprep.mubr.bf16.mxu0 0
        %1431 = vmatmul.mubr.bf16.gmra.mrb[0].mxu0 %v1365
        %v1432 = vpop.f32.mrb[0].mxu0
        %v1433 = vadd.f32 %v1332, %v1432
        %v1434 = vpop.f32.mrb[0].mxu0
        %v1435 = vpop.f32.mrb[0].mxu0
        %v1436 = vadd.f32 %v1332, %v1435
        %v1437 = vpop.f32.mrb[0].mxu0
        %1438 = vmatprep.mubr.bf16.mxu0 0
        %1439 = vmatmul.mubr.bf16.gmra.mrb[0].mxu0 %v1368
        %v1440 = vpop.f32.mrb[0].mxu0
        %v1441 = vadd.f32 %v1332, %v1440
        %v1442 = vpop.f32.mrb[0].mxu0
        %v1443 = vpop.f32.mrb[0].mxu0
        %v1444 = vadd.f32 %v1332, %v1443
        %v1445 = vpop.f32.mrb[0].mxu0
        %1446 = vmatprep.mubr.bf16.mxu0 0
        %1447 = vmatmul.mubr.bf16.gmra.mrb[0].mxu0 %v1371
        %v1448 = vpop.f32.mrb[0].mxu0
        %v1449 = vadd.f32 %v1332, %v1448
        %v1450 = vpop.f32.mrb[0].mxu0
        %v1451 = vpop.f32.mrb[0].mxu0
        %v1452 = vadd.f32 %v1332, %v1451
        %v1453 = vpop.f32.mrb[0].mxu0
        %1454 = vmatprep.mubr.bf16.mxu0 0
        %1455 = vmatmul.mubr.bf16.gmra.mrb[0].mxu0 %v1374
        %v1456 = vpop.f32.mrb[0].mxu0
        %v1457 = vadd.f32 %v1332, %v1456
        %v1458 = vpop.f32.mrb[0].mxu0
        %v1459 = vpop.f32.mrb[0].mxu0
        %v1460 = vadd.f32 %v1332, %v1459
        %v1461 = vpop.f32.mrb[0].mxu0
        %1462 = vmatprep.mubr.bf16.mxu0 0
        %1463 = vmatmul.mubr.bf16.gmra.mrb[0].mxu0 %v1377
        %v1464 = vpop.f32.mrb[0].mxu0
        %v1465 = vadd.f32 %v1332, %v1464
        %v1466 = vpop.f32.mrb[0].mxu0
        %v1467 = vpop.f32.mrb[0].mxu0
        %v1468 = vadd.f32 %v1332, %v1467
        %v1469 = vpop.f32.mrb[0].mxu0
        %1470 = vmatprep.mubr.bf16.mxu0 0
        %1471 = vmatmul.mubr.bf16.gmra.mrb[0].mxu0 %v1380
        %v1472 = vpop.f32.mrb[0].mxu0
        %v1473 = vadd.f32 %v1332, %v1472
        %v1474 = vpop.f32.mrb[0].mxu0
        %v1475 = vpop.f32.mrb[0].mxu0
        %v1476 = vadd.f32 %v1332, %v1475
        %v1477 = vpop.f32.mrb[0].mxu0
        %1478 = vdwg.mxu0
        %1479 = vst [vmem:[%s313] sm:$0xff] %v1417
        %1480 = vst [vmem:[%s313 + $0x8] sm:$0xff] %v1420
        %1481 = vst [vmem:[%s313 + $0x10] sm:$0xff] %v1425
        %1482 = vst [vmem:[%s313 + $0x18] sm:$0xff] %v1428
        %1483 = vst [vmem:[%s313 + $0x20] sm:$0xff] %v1433
        %1484 = vst [vmem:[%s313 + $0x28] sm:$0xff] %v1436
        %1485 = vst [vmem:[%s313 + $0x30] sm:$0xff] %v1441
        %1486 = vst [vmem:[%s313 + $0x38] sm:$0xff] %v1444
        %1487 = vst [vmem:[%s313 + $0x40] sm:$0xff] %v1449
        %1488 = vst [vmem:[%s313 + $0x48] sm:$0xff] %v1452
        %1489 = vst [vmem:[%s313 + $0x50] sm:$0xff] %v1457
        %1490 = vst [vmem:[%s313 + $0x58] sm:$0xff] %v1460
        %1491 = vst [vmem:[%s313 + $0x60] sm:$0xff] %v1465
        %1492 = vst [vmem:[%s313 + $0x68] sm:$0xff] %v1468
        %1493 = vst [vmem:[%s313 + $0x70] sm:$0xff] %v1473
        %1494 = vst [vmem:[%s313 + $0x78] sm:$0xff] %v1476
        %v1495 = vld [vmem:[#allocation7 + $0x80] sm:$0xff]
        %v1496 = vld [vmem:[#allocation7 + $0x88] sm:$0xff]
        %v1497 = vld [vmem:[#allocation7 + $0x90] sm:$0xff]
        %v1498 = vld [vmem:[#allocation7 + $0x98] sm:$0xff]
        %v1499 = vld [vmem:[#allocation7 + $0xa0] sm:$0xff]
        %v1500 = vld [vmem:[#allocation7 + $0xa8] sm:$0xff]
        %v1501 = vld [vmem:[#allocation7 + $0xb0] sm:$0xff]
        %v1502 = vld [vmem:[#allocation7 + $0xb8] sm:$0xff]
        %v1503 = vld [vmem:[#allocation7 + $0xc0] sm:$0xff]
        %v1504 = vld [vmem:[#allocation7 + $0xc8] sm:$0xff]
        %v1505 = vld [vmem:[#allocation7 + $0xd0] sm:$0xff]
        %v1506 = vld [vmem:[#allocation7 + $0xd8] sm:$0xff]
        %v1507 = vld [vmem:[#allocation7 + $0xe0] sm:$0xff]
        %v1508 = vld [vmem:[#allocation7 + $0xe8] sm:$0xff]
        %v1509 = vld [vmem:[#allocation7 + $0xf0] sm:$0xff]
        %v1510 = vld [vmem:[#allocation7 + $0xf8] sm:$0xff]
        %v1511 = vunpack.c.l.bf16 %v1495
        %v1512 = vunpack.c.h.bf16 %v1495
        %v1513 = vunpack.c.l.bf16 %v1496
        %v1514 = vunpack.c.h.bf16 %v1496
        %v1515 = vunpack.c.l.bf16 %v1497
        %v1516 = vunpack.c.h.bf16 %v1497
        %v1517 = vunpack.c.l.bf16 %v1498
        %v1518 = vunpack.c.h.bf16 %v1498
        %v1519 = vunpack.c.l.bf16 %v1499
        %v1520 = vunpack.c.h.bf16 %v1499
        %v1521 = vunpack.c.l.bf16 %v1500
        %v1522 = vunpack.c.h.bf16 %v1500
        %v1523 = vunpack.c.l.bf16 %v1501
        %v1524 = vunpack.c.h.bf16 %v1501
        %v1525 = vunpack.c.l.bf16 %v1502
        %v1526 = vunpack.c.h.bf16 %v1502
        %v1527 = vunpack.c.l.bf16 %v1503
        %v1528 = vunpack.c.h.bf16 %v1503
        %v1529 = vunpack.c.l.bf16 %v1504
        %v1530 = vunpack.c.h.bf16 %v1504
        %v1531 = vunpack.c.l.bf16 %v1505
        %v1532 = vunpack.c.h.bf16 %v1505
        %v1533 = vunpack.c.l.bf16 %v1506
        %v1534 = vunpack.c.h.bf16 %v1506
        %v1535 = vunpack.c.l.bf16 %v1507
        %v1536 = vunpack.c.h.bf16 %v1507
        %v1537 = vunpack.c.l.bf16 %v1508
        %v1538 = vunpack.c.h.bf16 %v1508
        %v1539 = vunpack.c.l.bf16 %v1509
        %v1540 = vunpack.c.h.bf16 %v1509
        %v1541 = vunpack.c.l.bf16 %v1510
        %v1542 = vunpack.c.h.bf16 %v1510
        %v1544 = vsel %vm725, %v621, 0
        %v1547 = vsel %vm725, %v622, 0
        %v1550 = vsel %vm725, %v623, 0
        %v1553 = vsel %vm725, %v624, 0
        %v1556 = vsel %vm725, %v625, 0
        %v1559 = vsel %vm725, %v626, 0
        %v1562 = vsel %vm725, %v627, 0
        %v1565 = vsel %vm725, %v628, 0
        %1567 = vmatprep.subr.bf16.mxu0 0
        %1568 = vmatpush1.bf16.xpose.msra.mxu0 %v751
        %1569 = vmatprep.subr.bf16.mxu0 0
        %1570 = vmatpush1.bf16.xpose.msra.mxu0 %v754
        %1571 = vmatprep.subr.bf16.mxu0 0
        %1572 = vmatpush1.bf16.xpose.msra.mxu0 %v757
        %1573 = vmatprep.subr.bf16.mxu0 0
        %1574 = vmatpush1.bf16.xpose.msra.mxu0 %v760
        %1575 = vmatprep.subr.bf16.mxu0 0
        %1576 = vmatpush1.bf16.xpose.msra.mxu0 %v763
        %1577 = vmatprep.subr.bf16.mxu0 0
        %1578 = vmatpush1.bf16.xpose.msra.mxu0 %v766
        %1579 = vmatprep.subr.bf16.mxu0 0
        %1580 = vmatpush1.bf16.xpose.msra.mxu0 %v769
        %1581 = vmatprep.subr.bf16.mxu0 0
        %1582 = vmatpush1.bf16.xpose.msra.mxu0 %v772
        %1583 = vmatprep.subr.bf16.mxu0 0
        %1584 = vmatpush1.bf16.xpose.msra.mxu0 %v775
        %1585 = vmatprep.subr.bf16.mxu0 0
        %1586 = vmatpush1.bf16.xpose.msra.mxu0 %v778
        %1587 = vmatprep.subr.bf16.mxu0 0
        %1588 = vmatpush1.bf16.xpose.msra.mxu0 %v781
        %1589 = vmatprep.subr.bf16.mxu0 0
        %1590 = vmatpush1.bf16.xpose.msra.mxu0 %v784
        %1591 = vmatprep.subr.bf16.mxu0 0
        %1592 = vmatpush1.bf16.xpose.msra.mxu0 %v787
        %1593 = vmatprep.subr.bf16.mxu0 0
        %1594 = vmatpush1.bf16.xpose.msra.mxu0 %v790
        %1595 = vmatprep.subr.bf16.mxu0 0
        %1596 = vmatpush1.bf16.xpose.msra.mxu0 %v793
        %1597 = vmatprep.subr.bf16.mxu0 0
        %1598 = vmatpush1.bf16.xpose.msra.mxu0 %v796
        %1599 = vmatprep.mubr.bf16.mxu0 0
        %1600 = vmatmul.mubr.bf16.gmra.mrb[0].mxu0 %v1544
        %v1601 = vpop.f32.mrb[0].mxu0
        %v1602 = vadd.f32 %v1511, %v1601
        %v1603 = vpop.f32.mrb[0].mxu0
        %v1604 = vadd.f32 %v1512, %v1603
        %v1605 = vpop.f32.mrb[0].mxu0
        %v1606 = vadd.f32 %v1513, %v1605
        %v1607 = vpop.f32.mrb[0].mxu0
        %v1608 = vadd.f32 %v1514, %v1607
        %1609 = vmatprep.mubr.bf16.mxu0 0
        %1610 = vmatmul.mubr.bf16.gmra.mrb[0].mxu0 %v1547
        %v1611 = vpop.f32.mrb[0].mxu0
        %v1612 = vadd.f32 %v1515, %v1611
        %v1613 = vpop.f32.mrb[0].mxu0
        %v1614 = vadd.f32 %v1516, %v1613
        %v1615 = vpop.f32.mrb[0].mxu0
        %v1616 = vadd.f32 %v1517, %v1615
        %v1617 = vpop.f32.mrb[0].mxu0
        %v1618 = vadd.f32 %v1518, %v1617
        %1619 = vmatprep.mubr.bf16.mxu0 0
        %1620 = vmatmul.mubr.bf16.gmra.mrb[0].mxu0 %v1550
        %v1621 = vpop.f32.mrb[0].mxu0
        %v1622 = vadd.f32 %v1519, %v1621
        %v1623 = vpop.f32.mrb[0].mxu0
        %v1624 = vadd.f32 %v1520, %v1623
        %v1625 = vpop.f32.mrb[0].mxu0
        %v1626 = vadd.f32 %v1521, %v1625
        %v1627 = vpop.f32.mrb[0].mxu0
        %v1628 = vadd.f32 %v1522, %v1627
        %1629 = vmatprep.mubr.bf16.mxu0 0
        %1630 = vmatmul.mubr.bf16.gmra.mrb[0].mxu0 %v1553
        %v1631 = vpop.f32.mrb[0].mxu0
        %v1632 = vadd.f32 %v1523, %v1631
        %v1633 = vpop.f32.mrb[0].mxu0
        %v1634 = vadd.f32 %v1524, %v1633
        %v1635 = vpop.f32.mrb[0].mxu0
        %v1636 = vadd.f32 %v1525, %v1635
        %v1637 = vpop.f32.mrb[0].mxu0
        %v1638 = vadd.f32 %v1526, %v1637
        %1639 = vmatprep.mubr.bf16.mxu0 0
        %1640 = vmatmul.mubr.bf16.gmra.mrb[0].mxu0 %v1556
        %v1641 = vpop.f32.mrb[0].mxu0
        %v1642 = vadd.f32 %v1527, %v1641
        %v1643 = vpop.f32.mrb[0].mxu0
        %v1644 = vadd.f32 %v1528, %v1643
        %v1645 = vpop.f32.mrb[0].mxu0
        %v1646 = vadd.f32 %v1529, %v1645
        %v1647 = vpop.f32.mrb[0].mxu0
        %v1648 = vadd.f32 %v1530, %v1647
        %1649 = vmatprep.mubr.bf16.mxu0 0
        %1650 = vmatmul.mubr.bf16.gmra.mrb[0].mxu0 %v1559
        %v1651 = vpop.f32.mrb[0].mxu0
        %v1652 = vadd.f32 %v1531, %v1651
        %v1653 = vpop.f32.mrb[0].mxu0
        %v1654 = vadd.f32 %v1532, %v1653
        %v1655 = vpop.f32.mrb[0].mxu0
        %v1656 = vadd.f32 %v1533, %v1655
        %v1657 = vpop.f32.mrb[0].mxu0
        %v1658 = vadd.f32 %v1534, %v1657
        %1659 = vmatprep.mubr.bf16.mxu0 0
        %1660 = vmatmul.mubr.bf16.gmra.mrb[0].mxu0 %v1562
        %v1661 = vpop.f32.mrb[0].mxu0
        %v1662 = vadd.f32 %v1535, %v1661
        %v1663 = vpop.f32.mrb[0].mxu0
        %v1664 = vadd.f32 %v1536, %v1663
        %v1665 = vpop.f32.mrb[0].mxu0
        %v1666 = vadd.f32 %v1537, %v1665
        %v1667 = vpop.f32.mrb[0].mxu0
        %v1668 = vadd.f32 %v1538, %v1667
        %1669 = vmatprep.mubr.bf16.mxu0 0
        %1670 = vmatmul.mubr.bf16.gmra.mrb[0].mxu0 %v1565
        %v1671 = vpop.f32.mrb[0].mxu0
        %v1672 = vadd.f32 %v1539, %v1671
        %v1673 = vpop.f32.mrb[0].mxu0
        %v1674 = vadd.f32 %v1540, %v1673
        %v1675 = vpop.f32.mrb[0].mxu0
        %v1676 = vadd.f32 %v1541, %v1675
        %v1677 = vpop.f32.mrb[0].mxu0
        %v1678 = vadd.f32 %v1542, %v1677
        %1679 = vdwg.mxu0
        %v1680 = vmax.f32 %v1602, %v1604
        %1681 = vmax.xlane.f32.xlu0 %v1680
        %v1682 = vpop.xlane.xlu0 %1681
        %v1683 = vmax.f32 %v1606, %v1608
        %1684 = vmax.xlane.f32.xlu0 %v1683
        %v1685 = vpop.xlane.xlu0 %1684
        %v1686 = vmax.f32 %v1612, %v1614
        %1687 = vmax.xlane.f32.xlu0 %v1686
        %v1688 = vpop.xlane.xlu0 %1687
        %v1689 = vmax.f32 %v1616, %v1618
        %1690 = vmax.xlane.f32.xlu0 %v1689
        %v1691 = vpop.xlane.xlu0 %1690
        %v1692 = vmax.f32 %v1622, %v1624
        %1693 = vmax.xlane.f32.xlu0 %v1692
        %v1694 = vpop.xlane.xlu0 %1693
        %v1695 = vmax.f32 %v1626, %v1628
        %1696 = vmax.xlane.f32.xlu0 %v1695
        %v1697 = vpop.xlane.xlu0 %1696
        %v1698 = vmax.f32 %v1632, %v1634
        %1699 = vmax.xlane.f32.xlu0 %v1698
        %v1700 = vpop.xlane.xlu0 %1699
        %v1701 = vmax.f32 %v1636, %v1638
        %1702 = vmax.xlane.f32.xlu0 %v1701
        %v1703 = vpop.xlane.xlu0 %1702
        %v1704 = vmax.f32 %v1642, %v1644
        %1705 = vmax.xlane.f32.xlu0 %v1704
        %v1706 = vpop.xlane.xlu0 %1705
        %v1707 = vmax.f32 %v1646, %v1648
        %1708 = vmax.xlane.f32.xlu0 %v1707
        %v1709 = vpop.xlane.xlu0 %1708
        %v1710 = vmax.f32 %v1652, %v1654
        %1711 = vmax.xlane.f32.xlu0 %v1710
        %v1712 = vpop.xlane.xlu0 %1711
        %v1713 = vmax.f32 %v1656, %v1658
        %1714 = vmax.xlane.f32.xlu0 %v1713
        %v1715 = vpop.xlane.xlu0 %1714
        %v1716 = vmax.f32 %v1662, %v1664
        %1717 = vmax.xlane.f32.xlu0 %v1716
        %v1718 = vpop.xlane.xlu0 %1717
        %v1719 = vmax.f32 %v1666, %v1668
        %1720 = vmax.xlane.f32.xlu0 %v1719
        %v1721 = vpop.xlane.xlu0 %1720
        %v1722 = vmax.f32 %v1672, %v1674
        %1723 = vmax.xlane.f32.xlu0 %v1722
        %v1724 = vpop.xlane.xlu0 %1723
        %v1725 = vmax.f32 %v1676, %v1678
        %1726 = vmax.xlane.f32.xlu0 %v1725
        %v1727 = vpop.xlane.xlu0 %1726
        %v1728 = vsub.f32 %v1602, %v1682
        %v1729 = vsub.f32 %v1604, %v1682
        %v1730 = vsub.f32 %v1606, %v1685
        %v1731 = vsub.f32 %v1608, %v1685
        %v1732 = vsub.f32 %v1612, %v1688
        %v1733 = vsub.f32 %v1614, %v1688
        %v1734 = vsub.f32 %v1616, %v1691
        %v1735 = vsub.f32 %v1618, %v1691
        %v1736 = vsub.f32 %v1622, %v1694
        %v1737 = vsub.f32 %v1624, %v1694
        %v1738 = vsub.f32 %v1626, %v1697
        %v1739 = vsub.f32 %v1628, %v1697
        %v1740 = vsub.f32 %v1632, %v1700
        %v1741 = vsub.f32 %v1634, %v1700
        %v1742 = vsub.f32 %v1636, %v1703
        %v1743 = vsub.f32 %v1638, %v1703
        %v1744 = vsub.f32 %v1642, %v1706
        %v1745 = vsub.f32 %v1644, %v1706
        %v1746 = vsub.f32 %v1646, %v1709
        %v1747 = vsub.f32 %v1648, %v1709
        %v1748 = vsub.f32 %v1652, %v1712
        %v1749 = vsub.f32 %v1654, %v1712
        %v1750 = vsub.f32 %v1656, %v1715
        %v1751 = vsub.f32 %v1658, %v1715
        %v1752 = vsub.f32 %v1662, %v1718
        %v1753 = vsub.f32 %v1664, %v1718
        %v1754 = vsub.f32 %v1666, %v1721
        %v1755 = vsub.f32 %v1668, %v1721
        %v1756 = vsub.f32 %v1672, %v1724
        %v1757 = vsub.f32 %v1674, %v1724
        %v1758 = vsub.f32 %v1676, %v1727
        %v1759 = vsub.f32 %v1678, %v1727
        %v1760 = vmul.f32 %v1728, 1.442695
        %v1761 = vpow.pop %v1760
        %v1762 = vmul.f32 %v1729, 1.442695
        %v1763 = vpow.pop %v1762
        %v1764 = vmul.f32 %v1730, 1.442695
        %v1765 = vpow.pop %v1764
        %v1766 = vmul.f32 %v1731, 1.442695
        %v1767 = vpow.pop %v1766
        %v1768 = vmul.f32 %v1732, 1.442695
        %v1769 = vpow.pop %v1768
        %v1770 = vmul.f32 %v1733, 1.442695
        %v1771 = vpow.pop %v1770
        %v1772 = vmul.f32 %v1734, 1.442695
        %v1773 = vpow.pop %v1772
        %v1774 = vmul.f32 %v1735, 1.442695
        %v1775 = vpow.pop %v1774
        %v1776 = vmul.f32 %v1736, 1.442695
        %v1777 = vpow.pop %v1776
        %v1778 = vmul.f32 %v1737, 1.442695
        %v1779 = vpow.pop %v1778
        %v1780 = vmul.f32 %v1738, 1.442695
        %v1781 = vpow.pop %v1780
        %v1782 = vmul.f32 %v1739, 1.442695
        %v1783 = vpow.pop %v1782
        %v1784 = vmul.f32 %v1740, 1.442695
        %v1785 = vpow.pop %v1784
        %v1786 = vmul.f32 %v1741, 1.442695
        %v1787 = vpow.pop %v1786
        %v1788 = vmul.f32 %v1742, 1.442695
        %v1789 = vpow.pop %v1788
        %v1790 = vmul.f32 %v1743, 1.442695
        %v1791 = vpow.pop %v1790
        %v1792 = vmul.f32 %v1744, 1.442695
        %v1793 = vpow.pop %v1792
        %v1794 = vmul.f32 %v1745, 1.442695
        %v1795 = vpow.pop %v1794
        %v1796 = vmul.f32 %v1746, 1.442695
        %v1797 = vpow.pop %v1796
        %v1798 = vmul.f32 %v1747, 1.442695
        %v1799 = vpow.pop %v1798
        %v1800 = vmul.f32 %v1748, 1.442695
        %v1801 = vpow.pop %v1800
        %v1802 = vmul.f32 %v1749, 1.442695
        %v1803 = vpow.pop %v1802
        %v1804 = vmul.f32 %v1750, 1.442695
        %v1805 = vpow.pop %v1804
        %v1806 = vmul.f32 %v1751, 1.442695
        %v1807 = vpow.pop %v1806
        %v1808 = vmul.f32 %v1752, 1.442695
        %v1809 = vpow.pop %v1808
        %v1810 = vmul.f32 %v1753, 1.442695
        %v1811 = vpow.pop %v1810
        %v1812 = vmul.f32 %v1754, 1.442695
        %v1813 = vpow.pop %v1812
        %v1814 = vmul.f32 %v1755, 1.442695
        %v1815 = vpow.pop %v1814
        %v1816 = vmul.f32 %v1756, 1.442695
        %v1817 = vpow.pop %v1816
        %v1818 = vmul.f32 %v1757, 1.442695
        %v1819 = vpow.pop %v1818
        %v1820 = vmul.f32 %v1758, 1.442695
        %v1821 = vpow.pop %v1820
        %v1822 = vmul.f32 %v1759, 1.442695
        %v1823 = vpow.pop %v1822
        %v1824 = vadd.f32 %v1761, %v1763
        %1825 = vadd.xlane.f32.xlu0 %v1824
        %v1826 = vpop.xlane.xlu0 %1825
        %v1827 = vadd.f32 %v1765, %v1767
        %1828 = vadd.xlane.f32.xlu0 %v1827
        %v1829 = vpop.xlane.xlu0 %1828
        %v1830 = vadd.f32 %v1769, %v1771
        %1831 = vadd.xlane.f32.xlu0 %v1830
        %v1832 = vpop.xlane.xlu0 %1831
        %v1833 = vadd.f32 %v1773, %v1775
        %1834 = vadd.xlane.f32.xlu0 %v1833
        %v1835 = vpop.xlane.xlu0 %1834
        %v1836 = vadd.f32 %v1777, %v1779
        %1837 = vadd.xlane.f32.xlu0 %v1836
        %v1838 = vpop.xlane.xlu0 %1837
        %v1839 = vadd.f32 %v1781, %v1783
        %1840 = vadd.xlane.f32.xlu0 %v1839
        %v1841 = vpop.xlane.xlu0 %1840
        %v1842 = vadd.f32 %v1785, %v1787
        %1843 = vadd.xlane.f32.xlu0 %v1842
        %v1844 = vpop.xlane.xlu0 %1843
        %v1845 = vadd.f32 %v1789, %v1791
        %1846 = vadd.xlane.f32.xlu0 %v1845
        %v1847 = vpop.xlane.xlu0 %1846
        %v1848 = vadd.f32 %v1793, %v1795
        %1849 = vadd.xlane.f32.xlu0 %v1848
        %v1850 = vpop.xlane.xlu0 %1849
        %v1851 = vadd.f32 %v1797, %v1799
        %1852 = vadd.xlane.f32.xlu0 %v1851
        %v1853 = vpop.xlane.xlu0 %1852
        %v1854 = vadd.f32 %v1801, %v1803
        %1855 = vadd.xlane.f32.xlu0 %v1854
        %v1856 = vpop.xlane.xlu0 %1855
        %v1857 = vadd.f32 %v1805, %v1807
        %1858 = vadd.xlane.f32.xlu0 %v1857
        %v1859 = vpop.xlane.xlu0 %1858
        %v1860 = vadd.f32 %v1809, %v1811
        %1861 = vadd.xlane.f32.xlu0 %v1860
        %v1862 = vpop.xlane.xlu0 %1861
        %v1863 = vadd.f32 %v1813, %v1815
        %1864 = vadd.xlane.f32.xlu0 %v1863
        %v1865 = vpop.xlane.xlu0 %1864
        %v1866 = vadd.f32 %v1817, %v1819
        %1867 = vadd.xlane.f32.xlu0 %v1866
        %v1868 = vpop.xlane.xlu0 %1867
        %v1869 = vadd.f32 %v1821, %v1823
        %1870 = vadd.xlane.f32.xlu0 %v1869
        %v1871 = vpop.xlane.xlu0 %1870
        %v1872 = vpack.c.bf16 %v1765, %v1761
        %v1873 = vpack.c.bf16 %v1767, %v1763
        %v1874 = vpack.c.bf16 %v1773, %v1769
        %v1875 = vpack.c.bf16 %v1775, %v1771
        %v1876 = vpack.c.bf16 %v1781, %v1777
        %v1877 = vpack.c.bf16 %v1783, %v1779
        %v1878 = vpack.c.bf16 %v1789, %v1785
        %v1879 = vpack.c.bf16 %v1791, %v1787
        %v1880 = vpack.c.bf16 %v1797, %v1793
        %v1881 = vpack.c.bf16 %v1799, %v1795
        %v1882 = vpack.c.bf16 %v1805, %v1801
        %v1883 = vpack.c.bf16 %v1807, %v1803
        %v1884 = vpack.c.bf16 %v1813, %v1809
        %v1885 = vpack.c.bf16 %v1815, %v1811
        %v1886 = vpack.c.bf16 %v1821, %v1817
        %v1887 = vpack.c.bf16 %v1823, %v1819
        %1888 = vmatprep.subr.bf16.mxu0 0
        %1889 = vmatpush1.bf16.msra.mxu0 %v1120
        %1890 = vmatprep.subr.bf16.mxu0 0
        %1891 = vmatpush1.bf16.msra.mxu0 %v1122
        %1892 = vmatprep.subr.bf16.mxu0 0
        %1893 = vmatpush1.bf16.msra.mxu0 %v1124
        %1894 = vmatprep.subr.bf16.mxu0 0
        %1895 = vmatpush1.bf16.msra.mxu0 %v1126
        %1896 = vmatprep.subr.bf16.mxu0 0
        %1897 = vmatpush1.bf16.msra.mxu0 %v1128
        %1898 = vmatprep.subr.bf16.mxu0 0
        %1899 = vmatpush1.bf16.msra.mxu0 %v1130
        %1900 = vmatprep.subr.bf16.mxu0 0
        %1901 = vmatpush1.bf16.msra.mxu0 %v1132
        %1902 = vmatprep.subr.bf16.mxu0 0
        %1903 = vmatpush1.bf16.msra.mxu0 %v1134
        %1904 = vmatprep.subr.bf16.mxu0 0
        %1905 = vmatpush1.bf16.msra.mxu0 %v1136
        %1906 = vmatprep.subr.bf16.mxu0 0
        %1907 = vmatpush1.bf16.msra.mxu0 %v1138
        %1908 = vmatprep.subr.bf16.mxu0 0
        %1909 = vmatpush1.bf16.msra.mxu0 %v1140
        %1910 = vmatprep.subr.bf16.mxu0 0
        %1911 = vmatpush1.bf16.msra.mxu0 %v1142
        %1912 = vmatprep.subr.bf16.mxu0 0
        %1913 = vmatpush1.bf16.msra.mxu0 %v1144
        %1914 = vmatprep.subr.bf16.mxu0 0
        %1915 = vmatpush1.bf16.msra.mxu0 %v1146
        %1916 = vmatprep.subr.bf16.mxu0 0
        %1917 = vmatpush1.bf16.msra.mxu0 %v1148
        %1918 = vmatprep.subr.bf16.mxu0 0
        %1919 = vmatpush1.bf16.msra.mxu0 %v1150
        %1920 = vmatprep.mubr.bf16.mxu0 %v1873
        %1921 = vmatmul.mubr.bf16.gmra.mrb[0].mxu0 %v1872
        %v1922 = vpop.f32.mrb[0].mxu0
        %v1923 = vadd.f32 0.0, %v1922
        %v1924 = vpop.f32.mrb[0].mxu0
        %v1925 = vpop.f32.mrb[0].mxu0
        %v1926 = vadd.f32 0.0, %v1925
        %v1927 = vpop.f32.mrb[0].mxu0
        %1928 = vmatprep.mubr.bf16.mxu0 %v1875
        %1929 = vmatmul.mubr.bf16.gmra.mrb[0].mxu0 %v1874
        %v1930 = vpop.f32.mrb[0].mxu0
        %v1931 = vadd.f32 0.0, %v1930
        %v1932 = vpop.f32.mrb[0].mxu0
        %v1933 = vpop.f32.mrb[0].mxu0
        %v1934 = vadd.f32 0.0, %v1933
        %v1935 = vpop.f32.mrb[0].mxu0
        %1936 = vmatprep.mubr.bf16.mxu0 %v1877
        %1937 = vmatmul.mubr.bf16.gmra.mrb[0].mxu0 %v1876
        %v1938 = vpop.f32.mrb[0].mxu0
        %v1939 = vadd.f32 0.0, %v1938
        %v1940 = vpop.f32.mrb[0].mxu0
        %v1941 = vpop.f32.mrb[0].mxu0
        %v1942 = vadd.f32 0.0, %v1941
        %v1943 = vpop.f32.mrb[0].mxu0
        %1944 = vmatprep.mubr.bf16.mxu0 %v1879
        %1945 = vmatmul.mubr.bf16.gmra.mrb[0].mxu0 %v1878
        %v1946 = vpop.f32.mrb[0].mxu0
        %v1947 = vadd.f32 0.0, %v1946
        %v1948 = vpop.f32.mrb[0].mxu0
        %v1949 = vpop.f32.mrb[0].mxu0
        %v1950 = vadd.f32 0.0, %v1949
        %v1951 = vpop.f32.mrb[0].mxu0
        %1952 = vmatprep.mubr.bf16.mxu0 %v1881
        %1953 = vmatmul.mubr.bf16.gmra.mrb[0].mxu0 %v1880
        %v1954 = vpop.f32.mrb[0].mxu0
        %v1955 = vadd.f32 0.0, %v1954
        %v1956 = vpop.f32.mrb[0].mxu0
        %v1957 = vpop.f32.mrb[0].mxu0
        %v1958 = vadd.f32 0.0, %v1957
        %v1959 = vpop.f32.mrb[0].mxu0
        %1960 = vmatprep.mubr.bf16.mxu0 %v1883
        %1961 = vmatmul.mubr.bf16.gmra.mrb[0].mxu0 %v1882
        %v1962 = vpop.f32.mrb[0].mxu0
        %v1963 = vadd.f32 0.0, %v1962
        %v1964 = vpop.f32.mrb[0].mxu0
        %v1965 = vpop.f32.mrb[0].mxu0
        %v1966 = vadd.f32 0.0, %v1965
        %v1967 = vpop.f32.mrb[0].mxu0
        %1968 = vmatprep.mubr.bf16.mxu0 %v1885
        %1969 = vmatmul.mubr.bf16.gmra.mrb[0].mxu0 %v1884
        %v1970 = vpop.f32.mrb[0].mxu0
        %v1971 = vadd.f32 0.0, %v1970
        %v1972 = vpop.f32.mrb[0].mxu0
        %v1973 = vpop.f32.mrb[0].mxu0
        %v1974 = vadd.f32 0.0, %v1973
        %v1975 = vpop.f32.mrb[0].mxu0
        %1976 = vmatprep.mubr.bf16.mxu0 %v1887
        %1977 = vmatmul.mubr.bf16.gmra.mrb[0].mxu0 %v1886
        %v1978 = vpop.f32.mrb[0].mxu0
        %v1979 = vadd.f32 0.0, %v1978
        %v1980 = vpop.f32.mrb[0].mxu0
        %v1981 = vpop.f32.mrb[0].mxu0
        %v1982 = vadd.f32 0.0, %v1981
        %v1983 = vpop.f32.mrb[0].mxu0
        %1984 = vdwg.mxu0
        %v1985 = vrcp.pop %v1826
        %v1986 = vrcp.pop %v1829
        %v1987 = vrcp.pop %v1832
        %v1988 = vrcp.pop %v1835
        %v1989 = vrcp.pop %v1838
        %v1990 = vrcp.pop %v1841
        %v1991 = vrcp.pop %v1844
        %v1992 = vrcp.pop %v1847
        %v1993 = vrcp.pop %v1850
        %v1994 = vrcp.pop %v1853
        %v1995 = vrcp.pop %v1856
        %v1996 = vrcp.pop %v1859
        %v1997 = vrcp.pop %v1862
        %v1998 = vrcp.pop %v1865
        %v1999 = vrcp.pop %v1868
        %v2000 = vrcp.pop %v1871
        %v2001 = vmul.f32 %v1923, %v1985
        %v2002 = vmul.f32 %v1926, %v1986
        %v2003 = vmul.f32 %v1931, %v1987
        %v2004 = vmul.f32 %v1934, %v1988
        %v2005 = vmul.f32 %v1939, %v1989
        %v2006 = vmul.f32 %v1942, %v1990
        %v2007 = vmul.f32 %v1947, %v1991
        %v2008 = vmul.f32 %v1950, %v1992
        %v2009 = vmul.f32 %v1955, %v1993
        %v2010 = vmul.f32 %v1958, %v1994
        %v2011 = vmul.f32 %v1963, %v1995
        %v2012 = vmul.f32 %v1966, %v1996
        %v2013 = vmul.f32 %v1971, %v1997
        %v2014 = vmul.f32 %v1974, %v1998
        %v2015 = vmul.f32 %v1979, %v1999
        %v2016 = vmul.f32 %v1982, %v2000
        %v2017 = vmax.f32 %v2001, 0.0
        %v2018 = vmax.f32 %v2002, 0.0
        %v2019 = vmax.f32 %v2003, 0.0
        %v2020 = vmax.f32 %v2004, 0.0
        %v2021 = vmax.f32 %v2005, 0.0
        %v2022 = vmax.f32 %v2006, 0.0
        %v2023 = vmax.f32 %v2007, 0.0
        %v2024 = vmax.f32 %v2008, 0.0
        %v2025 = vmax.f32 %v2009, 0.0
        %v2026 = vmax.f32 %v2010, 0.0
        %v2027 = vmax.f32 %v2011, 0.0
        %v2028 = vmax.f32 %v2012, 0.0
        %v2029 = vmax.f32 %v2013, 0.0
        %v2030 = vmax.f32 %v2014, 0.0
        %v2031 = vmax.f32 %v2015, 0.0
        %v2032 = vmax.f32 %v2016, 0.0
        %v2033 = vpack.c.bf16 %v2018, %v2017
        %v2034 = vpack.c.bf16 %v2020, %v2019
        %v2035 = vpack.c.bf16 %v2022, %v2021
        %v2036 = vpack.c.bf16 %v2024, %v2023
        %v2037 = vpack.c.bf16 %v2026, %v2025
        %v2038 = vpack.c.bf16 %v2028, %v2027
        %v2039 = vpack.c.bf16 %v2030, %v2029
        %v2040 = vpack.c.bf16 %v2032, %v2031
        %v2041 = vld [vmem:[#allocation8] sm:$0xf]
        %v2042 = vld [vmem:[#allocation8 + $0x4] sm:$0xf]
        %v2043 = vld [vmem:[#allocation8 + $0x8] sm:$0xf]
        %v2044 = vld [vmem:[#allocation8 + $0xc] sm:$0xf]
        %v2045 = vld [vmem:[#allocation8 + $0x10] sm:$0xf]
        %v2046 = vld [vmem:[#allocation8 + $0x14] sm:$0xf]
        %v2047 = vld [vmem:[#allocation8 + $0x18] sm:$0xf]
        %v2048 = vld [vmem:[#allocation8 + $0x1c] sm:$0xf]
        %v2057 = vunpack.c.l.b16 %v2041
        %v2058 = vunpack.c.l.b16 %v2042
        %v2059 = vunpack.c.l.b16 %v2043
        %v2060 = vunpack.c.l.b16 %v2044
        %v2061 = vunpack.c.l.b16 %v2045
        %v2062 = vunpack.c.l.b16 %v2046
        %v2063 = vunpack.c.l.b16 %v2047
        %v2064 = vunpack.c.l.b16 %v2048
        %v2065 = vpack.c.b16 %v2058, %v2057
        %v2066 = vpack.c.b16 %v2060, %v2059
        %v2067 = vpack.c.b16 %v2062, %v2061
        %v2068 = vpack.c.b16 %v2064, %v2063
        %v2074 = vsel %vm403, %v2033, 0
        %v2077 = vsel %vm403, %v2034, 0
        %v2080 = vsel %vm403, %v2035, 0
        %v2083 = vsel %vm403, %v2036, 0
        %v2086 = vsel %vm403, %v2037, 0
        %v2089 = vsel %vm403, %v2038, 0
        %v2092 = vsel %vm403, %v2039, 0
        %v2095 = vsel %vm403, %v2040, 0
        %2097 = vmatprep.subr.bf16.mxu0 0
        %2098 = vmatpush1.bf16.msra.mxu0 %v2065
        %2099 = vmatprep.subr.bf16.mxu0 0
        %2100 = vmatpush1.bf16.msra.mxu0 %v2066
        %2101 = vmatprep.subr.bf16.mxu0 0
        %2102 = vmatpush1.bf16.msra.mxu0 %v2067
        %2103 = vmatprep.subr.bf16.mxu0 0
        %2104 = vmatpush1.bf16.msra.mxu0 %v2068
        %2105 = vmatprep.subr.bf16.mxu0 0
        %2106 = vmatpush1.bf16.msra.mxu0 0
        %2107 = vmatprep.subr.bf16.mxu0 0
        %2108 = vmatpush1.bf16.msra.mxu0 0
        %2109 = vmatprep.subr.bf16.mxu0 0
        %2110 = vmatpush1.bf16.msra.mxu0 0
        %2111 = vmatprep.subr.bf16.mxu0 0
        %2112 = vmatpush1.bf16.msra.mxu0 0
        %2113 = vmatprep.subr.bf16.mxu0 0
        %2114 = vmatpush1.bf16.msra.mxu0 0
        %2115 = vmatprep.subr.bf16.mxu0 0
        %2116 = vmatpush1.bf16.msra.mxu0 0
        %2117 = vmatprep.subr.bf16.mxu0 0
        %2118 = vmatpush1.bf16.msra.mxu0 0
        %2119 = vmatprep.subr.bf16.mxu0 0
        %2120 = vmatpush1.bf16.msra.mxu0 0
        %2121 = vmatprep.subr.bf16.mxu0 0
        %2122 = vmatpush1.bf16.msra.mxu0 0
        %2123 = vmatprep.subr.bf16.mxu0 0
        %2124 = vmatpush1.bf16.msra.mxu0 0
        %2125 = vmatprep.subr.bf16.mxu0 0
        %2126 = vmatpush1.bf16.msra.mxu0 0
        %2127 = vmatprep.subr.bf16.mxu0 0
        %2128 = vmatpush1.bf16.msra.mxu0 0
        %2129 = vmatprep.mubr.bf16.mxu0 0
        %2130 = vmatmul.mubr.bf16.gmra.mrb[0].mxu0 %v2074
        %v2131 = vpop.f32.mrb[0].mxu0
        %v2132 = vadd.f32 %v1332, %v2131
        %v2133 = vpop.f32.mrb[0].mxu0
        %v2134 = vpop.f32.mrb[0].mxu0
        %v2135 = vadd.f32 %v1332, %v2134
        %v2136 = vpop.f32.mrb[0].mxu0
        %2137 = vmatprep.mubr.bf16.mxu0 0
        %2138 = vmatmul.mubr.bf16.gmra.mrb[0].mxu0 %v2077
        %v2139 = vpop.f32.mrb[0].mxu0
        %v2140 = vadd.f32 %v1332, %v2139
        %v2141 = vpop.f32.mrb[0].mxu0
        %v2142 = vpop.f32.mrb[0].mxu0
        %v2143 = vadd.f32 %v1332, %v2142
        %v2144 = vpop.f32.mrb[0].mxu0
        %2145 = vmatprep.mubr.bf16.mxu0 0
        %2146 = vmatmul.mubr.bf16.gmra.mrb[0].mxu0 %v2080
        %v2147 = vpop.f32.mrb[0].mxu0
        %v2148 = vadd.f32 %v1332, %v2147
        %v2149 = vpop.f32.mrb[0].mxu0
        %v2150 = vpop.f32.mrb[0].mxu0
        %v2151 = vadd.f32 %v1332, %v2150
        %v2152 = vpop.f32.mrb[0].mxu0
        %2153 = vmatprep.mubr.bf16.mxu0 0
        %2154 = vmatmul.mubr.bf16.gmra.mrb[0].mxu0 %v2083
        %v2155 = vpop.f32.mrb[0].mxu0
        %v2156 = vadd.f32 %v1332, %v2155
        %v2157 = vpop.f32.mrb[0].mxu0
        %v2158 = vpop.f32.mrb[0].mxu0
        %v2159 = vadd.f32 %v1332, %v2158
        %v2160 = vpop.f32.mrb[0].mxu0
        %2161 = vmatprep.mubr.bf16.mxu0 0
        %2162 = vmatmul.mubr.bf16.gmra.mrb[0].mxu0 %v2086
        %v2163 = vpop.f32.mrb[0].mxu0
        %v2164 = vadd.f32 %v1332, %v2163
        %v2165 = vpop.f32.mrb[0].mxu0
        %v2166 = vpop.f32.mrb[0].mxu0
        %v2167 = vadd.f32 %v1332, %v2166
        %v2168 = vpop.f32.mrb[0].mxu0
        %2169 = vmatprep.mubr.bf16.mxu0 0
        %2170 = vmatmul.mubr.bf16.gmra.mrb[0].mxu0 %v2089
        %v2171 = vpop.f32.mrb[0].mxu0
        %v2172 = vadd.f32 %v1332, %v2171
        %v2173 = vpop.f32.mrb[0].mxu0
        %v2174 = vpop.f32.mrb[0].mxu0
        %v2175 = vadd.f32 %v1332, %v2174
        %v2176 = vpop.f32.mrb[0].mxu0
        %2177 = vmatprep.mubr.bf16.mxu0 0
        %2178 = vmatmul.mubr.bf16.gmra.mrb[0].mxu0 %v2092
        %v2179 = vpop.f32.mrb[0].mxu0
        %v2180 = vadd.f32 %v1332, %v2179
        %v2181 = vpop.f32.mrb[0].mxu0
        %v2182 = vpop.f32.mrb[0].mxu0
        %v2183 = vadd.f32 %v1332, %v2182
        %v2184 = vpop.f32.mrb[0].mxu0
        %2185 = vmatprep.mubr.bf16.mxu0 0
        %2186 = vmatmul.mubr.bf16.gmra.mrb[0].mxu0 %v2095
        %v2187 = vpop.f32.mrb[0].mxu0
        %v2188 = vadd.f32 %v1332, %v2187
        %v2189 = vpop.f32.mrb[0].mxu0
        %v2190 = vpop.f32.mrb[0].mxu0
        %v2191 = vadd.f32 %v1332, %v2190
        %v2192 = vpop.f32.mrb[0].mxu0
        %2193 = vdwg.mxu0
        %2194 = vst [vmem:[%s313 + $0x80] sm:$0xff] %v2132
        %2195 = vst [vmem:[%s313 + $0x88] sm:$0xff] %v2135
        %2196 = vst [vmem:[%s313 + $0x90] sm:$0xff] %v2140
        %2197 = vst [vmem:[%s313 + $0x98] sm:$0xff] %v2143
        %2198 = vst [vmem:[%s313 + $0xa0] sm:$0xff] %v2148
        %2199 = vst [vmem:[%s313 + $0xa8] sm:$0xff] %v2151
        %2200 = vst [vmem:[%s313 + $0xb0] sm:$0xff] %v2156
        %2201 = vst [vmem:[%s313 + $0xb8] sm:$0xff] %v2159
        %2202 = vst [vmem:[%s313 + $0xc0] sm:$0xff] %v2164
        %2203 = vst [vmem:[%s313 + $0xc8] sm:$0xff] %v2167
        %2204 = vst [vmem:[%s313 + $0xd0] sm:$0xff] %v2172
        %2205 = vst [vmem:[%s313 + $0xd8] sm:$0xff] %v2175
        %2206 = vst [vmem:[%s313 + $0xe0] sm:$0xff] %v2180
        %2207 = vst [vmem:[%s313 + $0xe8] sm:$0xff] %v2183
        %2208 = vst [vmem:[%s313 + $0xf0] sm:$0xff] %v2188
        %2209 = vst [vmem:[%s313 + $0xf8] sm:$0xff] %v2191
        %2242 = vrot.lane.b32.xlu0 %v316, 64
        %v2243 = vpop.permute.xlu0 %2242
        %2244 = vrot.lane.b32.xlu0 %v317, 64
        %v2245 = vpop.permute.xlu0 %2244
        %2246 = vrot.lane.b32.xlu0 %v318, 64
        %v2247 = vpop.permute.xlu0 %2246
        %2248 = vrot.lane.b32.xlu0 %v319, 64
        %v2249 = vpop.permute.xlu0 %2248
        %2250 = vrot.lane.b32.xlu0 %v320, 64
        %v2251 = vpop.permute.xlu0 %2250
        %2252 = vrot.lane.b32.xlu0 %v321, 64
        %v2253 = vpop.permute.xlu0 %2252
        %2254 = vrot.lane.b32.xlu0 %v322, 64
        %v2255 = vpop.permute.xlu0 %2254
        %2256 = vrot.lane.b32.xlu0 %v323, 64
        %v2257 = vpop.permute.xlu0 %2256
        %2258 = vrot.lane.b32.xlu0 %v324, 64
        %v2259 = vpop.permute.xlu0 %2258
        %2260 = vrot.lane.b32.xlu0 %v325, 64
        %v2261 = vpop.permute.xlu0 %2260
        %2262 = vrot.lane.b32.xlu0 %v326, 64
        %v2263 = vpop.permute.xlu0 %2262
        %2264 = vrot.lane.b32.xlu0 %v327, 64
        %v2265 = vpop.permute.xlu0 %2264
        %2266 = vrot.lane.b32.xlu0 %v328, 64
        %v2267 = vpop.permute.xlu0 %2266
        %2268 = vrot.lane.b32.xlu0 %v329, 64
        %v2269 = vpop.permute.xlu0 %2268
        %2270 = vrot.lane.b32.xlu0 %v330, 64
        %v2271 = vpop.permute.xlu0 %2270
        %2272 = vrot.lane.b32.xlu0 %v331, 64
        %v2273 = vpop.permute.xlu0 %2272
        %2274 = vrot.lane.b32.xlu0 %v332, 64
        %v2275 = vpop.permute.xlu0 %2274
        %2276 = vrot.lane.b32.xlu0 %v333, 64
        %v2277 = vpop.permute.xlu0 %2276
        %2278 = vrot.lane.b32.xlu0 %v334, 64
        %v2279 = vpop.permute.xlu0 %2278
        %2280 = vrot.lane.b32.xlu0 %v335, 64
        %v2281 = vpop.permute.xlu0 %2280
        %2282 = vrot.lane.b32.xlu0 %v336, 64
        %v2283 = vpop.permute.xlu0 %2282
        %2284 = vrot.lane.b32.xlu0 %v337, 64
        %v2285 = vpop.permute.xlu0 %2284
        %2286 = vrot.lane.b32.xlu0 %v338, 64
        %v2287 = vpop.permute.xlu0 %2286
        %2288 = vrot.lane.b32.xlu0 %v339, 64
        %v2289 = vpop.permute.xlu0 %2288
        %2290 = vrot.lane.b32.xlu0 %v340, 64
        %v2291 = vpop.permute.xlu0 %2290
        %2292 = vrot.lane.b32.xlu0 %v341, 64
        %v2293 = vpop.permute.xlu0 %2292
        %2294 = vrot.lane.b32.xlu0 %v342, 64
        %v2295 = vpop.permute.xlu0 %2294
        %2296 = vrot.lane.b32.xlu0 %v343, 64
        %v2297 = vpop.permute.xlu0 %2296
        %2298 = vrot.lane.b32.xlu0 %v344, 64
        %v2299 = vpop.permute.xlu0 %2298
        %2300 = vrot.lane.b32.xlu0 %v345, 64
        %v2301 = vpop.permute.xlu0 %2300
        %2302 = vrot.lane.b32.xlu0 %v346, 64
        %v2303 = vpop.permute.xlu0 %2302
        %2304 = vrot.lane.b32.xlu0 %v347, 64
        %v2305 = vpop.permute.xlu0 %2304
        %v2338 = vadd.f32 %v1280, %v2243
        %v2339 = vadd.f32 %v1281, %v2245
        %v2340 = vadd.f32 %v1282, %v2247
        %v2341 = vadd.f32 %v1283, %v2249
        %v2342 = vadd.f32 %v1284, %v2251
        %v2343 = vadd.f32 %v1285, %v2253
        %v2344 = vadd.f32 %v1286, %v2255
        %v2345 = vadd.f32 %v1287, %v2257
        %v2346 = vadd.f32 %v1288, %v2259
        %v2347 = vadd.f32 %v1289, %v2261
        %v2348 = vadd.f32 %v1290, %v2263
        %v2349 = vadd.f32 %v1291, %v2265
        %v2350 = vadd.f32 %v1292, %v2267
        %v2351 = vadd.f32 %v1293, %v2269
        %v2352 = vadd.f32 %v1294, %v2271
        %v2353 = vadd.f32 %v1295, %v2273
        %v2354 = vadd.f32 %v2001, %v2275
        %v2355 = vadd.f32 %v2002, %v2277
        %v2356 = vadd.f32 %v2003, %v2279
        %v2357 = vadd.f32 %v2004, %v2281
        %v2358 = vadd.f32 %v2005, %v2283
        %v2359 = vadd.f32 %v2006, %v2285
        %v2360 = vadd.f32 %v2007, %v2287
        %v2361 = vadd.f32 %v2008, %v2289
        %v2362 = vadd.f32 %v2009, %v2291
        %v2363 = vadd.f32 %v2010, %v2293
        %v2364 = vadd.f32 %v2011, %v2295
        %v2365 = vadd.f32 %v2012, %v2297
        %v2366 = vadd.f32 %v2013, %v2299
        %v2367 = vadd.f32 %v2014, %v2301
        %v2368 = vadd.f32 %v2015, %v2303
        %v2369 = vadd.f32 %v2016, %v2305
        %v2370 = vpack.c.bf16 %v2339, %v2338
        %v2371 = vpack.c.bf16 %v2341, %v2340
        %v2372 = vpack.c.bf16 %v2343, %v2342
        %v2373 = vpack.c.bf16 %v2345, %v2344
        %v2374 = vpack.c.bf16 %v2347, %v2346
        %v2375 = vpack.c.bf16 %v2349, %v2348
        %v2376 = vpack.c.bf16 %v2351, %v2350
        %v2377 = vpack.c.bf16 %v2353, %v2352
        %v2378 = vpack.c.bf16 %v2355, %v2354
        %v2379 = vpack.c.bf16 %v2357, %v2356
        %v2380 = vpack.c.bf16 %v2359, %v2358
        %v2381 = vpack.c.bf16 %v2361, %v2360
        %v2382 = vpack.c.bf16 %v2363, %v2362
        %v2383 = vpack.c.bf16 %v2365, %v2364
        %v2384 = vpack.c.bf16 %v2367, %v2366
        %v2385 = vpack.c.bf16 %v2369, %v2368
        %s2386 = scalar_lea.vmem [#allocation5], 32
        %v2387 = vld [vmem:[%s2386] sm:$0xf]
        %v2388 = vld [vmem:[%s2386 + $0x4] sm:$0xf]
        %v2389 = vld [vmem:[%s2386 + $0x8] sm:$0xf]
        %v2390 = vld [vmem:[%s2386 + $0xc] sm:$0xf]
        %v2391 = vld [vmem:[%s2386 + $0x10] sm:$0xf]
        %v2392 = vld [vmem:[%s2386 + $0x14] sm:$0xf]
        %v2393 = vld [vmem:[%s2386 + $0x18] sm:$0xf]
        %v2394 = vld [vmem:[%s2386 + $0x1c] sm:$0xf]
        %s2395 = scalar_lea.vmem %s2, 1
        %v2396 = vld [vmem:[%s2395] sm:$0x1]
        %v2398 = vlaneseq
        %v2399 = vshrl.u32 %v2398, 7
        %v2400 = vsub.s32 0, %v2399
        %v2401 = vrot.slane %v2396, %v2400
        %v2411 = vunpack.c.l.b16 %v2387
        %v2412 = vunpack.c.l.b16 %v2388
        %v2413 = vunpack.c.l.b16 %v2389
        %v2414 = vunpack.c.l.b16 %v2390
        %v2415 = vunpack.c.l.b16 %v2391
        %v2416 = vunpack.c.l.b16 %v2392
        %v2417 = vunpack.c.l.b16 %v2393
        %v2418 = vunpack.c.l.b16 %v2394
        %v2419 = vpack.c.b16 %v2412, %v2411
        %v2420 = vpack.c.b16 %v2414, %v2413
        %v2421 = vpack.c.b16 %v2416, %v2415
        %v2422 = vpack.c.b16 %v2418, %v2417
        %v2428 = vsel %vm403, %v2370, 0
        %v2431 = vsel %vm403, %v2371, 0
        %v2434 = vsel %vm403, %v2372, 0
        %v2437 = vsel %vm403, %v2373, 0
        %v2440 = vsel %vm403, %v2374, 0
        %v2443 = vsel %vm403, %v2375, 0
        %v2446 = vsel %vm403, %v2376, 0
        %v2449 = vsel %vm403, %v2377, 0
        %v2452 = vsel %vm403, %v2378, 0
        %v2455 = vsel %vm403, %v2379, 0
        %v2458 = vsel %vm403, %v2380, 0
        %v2461 = vsel %vm403, %v2381, 0
        %v2464 = vsel %vm403, %v2382, 0
        %v2467 = vsel %vm403, %v2383, 0
        %v2470 = vsel %vm403, %v2384, 0
        %v2473 = vsel %vm403, %v2385, 0
        %2475 = vmatprep.subr.bf16.mxu0 0
        %2476 = vmatpush1.bf16.msra.mxu0 %v2419
        %2477 = vmatprep.subr.bf16.mxu0 0
        %2478 = vmatpush1.bf16.msra.mxu0 %v2420
        %2479 = vmatprep.subr.bf16.mxu0 0
        %2480 = vmatpush1.bf16.msra.mxu0 %v2421
        %2481 = vmatprep.subr.bf16.mxu0 0
        %2482 = vmatpush1.bf16.msra.mxu0 %v2422
        %2483 = vmatprep.subr.bf16.mxu0 0
        %2484 = vmatpush1.bf16.msra.mxu0 0
        %2485 = vmatprep.subr.bf16.mxu0 0
        %2486 = vmatpush1.bf16.msra.mxu0 0
        %2487 = vmatprep.subr.bf16.mxu0 0
        %2488 = vmatpush1.bf16.msra.mxu0 0
        %2489 = vmatprep.subr.bf16.mxu0 0
        %2490 = vmatpush1.bf16.msra.mxu0 0
        %2491 = vmatprep.subr.bf16.mxu0 0
        %2492 = vmatpush1.bf16.msra.mxu0 0
        %2493 = vmatprep.subr.bf16.mxu0 0
        %2494 = vmatpush1.bf16.msra.mxu0 0
        %2495 = vmatprep.subr.bf16.mxu0 0
        %2496 = vmatpush1.bf16.msra.mxu0 0
        %2497 = vmatprep.subr.bf16.mxu0 0
        %2498 = vmatpush1.bf16.msra.mxu0 0
        %2499 = vmatprep.subr.bf16.mxu0 0
        %2500 = vmatpush1.bf16.msra.mxu0 0
        %2501 = vmatprep.subr.bf16.mxu0 0
        %2502 = vmatpush1.bf16.msra.mxu0 0
        %2503 = vmatprep.subr.bf16.mxu0 0
        %2504 = vmatpush1.bf16.msra.mxu0 0
        %2505 = vmatprep.subr.bf16.mxu0 0
        %2506 = vmatpush1.bf16.msra.mxu0 0
        %2507 = vmatprep.mubr.bf16.mxu0 0
        %2508 = vmatmul.mubr.bf16.gmra.mrb[0].mxu0 %v2428
        %v2509 = vpop.f32.mrb[0].mxu0
        %v2510 = vadd.f32 %v2401, %v2509
        %v2511 = vpop.f32.mrb[0].mxu0
        %v2512 = vpop.f32.mrb[0].mxu0
        %v2513 = vadd.f32 %v2401, %v2512
        %v2514 = vpop.f32.mrb[0].mxu0
        %2515 = vmatprep.mubr.bf16.mxu0 0
        %2516 = vmatmul.mubr.bf16.gmra.mrb[0].mxu0 %v2431
        %v2517 = vpop.f32.mrb[0].mxu0
        %v2518 = vadd.f32 %v2401, %v2517
        %v2519 = vpop.f32.mrb[0].mxu0
        %v2520 = vpop.f32.mrb[0].mxu0
        %v2521 = vadd.f32 %v2401, %v2520
        %v2522 = vpop.f32.mrb[0].mxu0
        %2523 = vmatprep.mubr.bf16.mxu0 0
        %2524 = vmatmul.mubr.bf16.gmra.mrb[0].mxu0 %v2434
        %v2525 = vpop.f32.mrb[0].mxu0
        %v2526 = vadd.f32 %v2401, %v2525
        %v2527 = vpop.f32.mrb[0].mxu0
        %v2528 = vpop.f32.mrb[0].mxu0
        %v2529 = vadd.f32 %v2401, %v2528
        %v2530 = vpop.f32.mrb[0].mxu0
        %2531 = vmatprep.mubr.bf16.mxu0 0
        %2532 = vmatmul.mubr.bf16.gmra.mrb[0].mxu0 %v2437
        %v2533 = vpop.f32.mrb[0].mxu0
        %v2534 = vadd.f32 %v2401, %v2533
        %v2535 = vpop.f32.mrb[0].mxu0
        %v2536 = vpop.f32.mrb[0].mxu0
        %v2537 = vadd.f32 %v2401, %v2536
        %v2538 = vpop.f32.mrb[0].mxu0
        %2539 = vmatprep.mubr.bf16.mxu0 0
        %2540 = vmatmul.mubr.bf16.gmra.mrb[0].mxu0 %v2440
        %v2541 = vpop.f32.mrb[0].mxu0
        %v2542 = vadd.f32 %v2401, %v2541
        %v2543 = vpop.f32.mrb[0].mxu0
        %v2544 = vpop.f32.mrb[0].mxu0
        %v2545 = vadd.f32 %v2401, %v2544
        %v2546 = vpop.f32.mrb[0].mxu0
        %2547 = vmatprep.mubr.bf16.mxu0 0
        %2548 = vmatmul.mubr.bf16.gmra.mrb[0].mxu0 %v2443
        %v2549 = vpop.f32.mrb[0].mxu0
        %v2550 = vadd.f32 %v2401, %v2549
        %v2551 = vpop.f32.mrb[0].mxu0
        %v2552 = vpop.f32.mrb[0].mxu0
        %v2553 = vadd.f32 %v2401, %v2552
        %v2554 = vpop.f32.mrb[0].mxu0
        %2555 = vmatprep.mubr.bf16.mxu0 0
        %2556 = vmatmul.mubr.bf16.gmra.mrb[0].mxu0 %v2446
        %v2557 = vpop.f32.mrb[0].mxu0
        %v2558 = vadd.f32 %v2401, %v2557
        %v2559 = vpop.f32.mrb[0].mxu0
        %v2560 = vpop.f32.mrb[0].mxu0
        %v2561 = vadd.f32 %v2401, %v2560
        %v2562 = vpop.f32.mrb[0].mxu0
        %2563 = vmatprep.mubr.bf16.mxu0 0
        %2564 = vmatmul.mubr.bf16.gmra.mrb[0].mxu0 %v2449
        %v2565 = vpop.f32.mrb[0].mxu0
        %v2566 = vadd.f32 %v2401, %v2565
        %v2567 = vpop.f32.mrb[0].mxu0
        %v2568 = vpop.f32.mrb[0].mxu0
        %v2569 = vadd.f32 %v2401, %v2568
        %v2570 = vpop.f32.mrb[0].mxu0
        %2571 = vmatprep.mubr.bf16.mxu0 0
        %2572 = vmatmul.mubr.bf16.gmra.mrb[0].mxu0 %v2452
        %v2573 = vpop.f32.mrb[0].mxu0
        %v2574 = vadd.f32 %v2401, %v2573
        %v2575 = vpop.f32.mrb[0].mxu0
        %v2576 = vpop.f32.mrb[0].mxu0
        %v2577 = vadd.f32 %v2401, %v2576
        %v2578 = vpop.f32.mrb[0].mxu0
        %2579 = vmatprep.mubr.bf16.mxu0 0
        %2580 = vmatmul.mubr.bf16.gmra.mrb[0].mxu0 %v2455
        %v2581 = vpop.f32.mrb[0].mxu0
        %v2582 = vadd.f32 %v2401, %v2581
        %v2583 = vpop.f32.mrb[0].mxu0
        %v2584 = vpop.f32.mrb[0].mxu0
        %v2585 = vadd.f32 %v2401, %v2584
        %v2586 = vpop.f32.mrb[0].mxu0
        %2587 = vmatprep.mubr.bf16.mxu0 0
        %2588 = vmatmul.mubr.bf16.gmra.mrb[0].mxu0 %v2458
        %v2589 = vpop.f32.mrb[0].mxu0
        %v2590 = vadd.f32 %v2401, %v2589
        %v2591 = vpop.f32.mrb[0].mxu0
        %v2592 = vpop.f32.mrb[0].mxu0
        %v2593 = vadd.f32 %v2401, %v2592
        %v2594 = vpop.f32.mrb[0].mxu0
        %2595 = vmatprep.mubr.bf16.mxu0 0
        %2596 = vmatmul.mubr.bf16.gmra.mrb[0].mxu0 %v2461
        %v2597 = vpop.f32.mrb[0].mxu0
        %v2598 = vadd.f32 %v2401, %v2597
        %v2599 = vpop.f32.mrb[0].mxu0
        %v2600 = vpop.f32.mrb[0].mxu0
        %v2601 = vadd.f32 %v2401, %v2600
        %v2602 = vpop.f32.mrb[0].mxu0
        %2603 = vmatprep.mubr.bf16.mxu0 0
        %2604 = vmatmul.mubr.bf16.gmra.mrb[0].mxu0 %v2464
        %v2605 = vpop.f32.mrb[0].mxu0
        %v2606 = vadd.f32 %v2401, %v2605
        %v2607 = vpop.f32.mrb[0].mxu0
        %v2608 = vpop.f32.mrb[0].mxu0
        %v2609 = vadd.f32 %v2401, %v2608
        %v2610 = vpop.f32.mrb[0].mxu0
        %2611 = vmatprep.mubr.bf16.mxu0 0
        %2612 = vmatmul.mubr.bf16.gmra.mrb[0].mxu0 %v2467
        %v2613 = vpop.f32.mrb[0].mxu0
        %v2614 = vadd.f32 %v2401, %v2613
        %v2615 = vpop.f32.mrb[0].mxu0
        %v2616 = vpop.f32.mrb[0].mxu0
        %v2617 = vadd.f32 %v2401, %v2616
        %v2618 = vpop.f32.mrb[0].mxu0
        %2619 = vmatprep.mubr.bf16.mxu0 0
        %2620 = vmatmul.mubr.bf16.gmra.mrb[0].mxu0 %v2470
        %v2621 = vpop.f32.mrb[0].mxu0
        %v2622 = vadd.f32 %v2401, %v2621
        %v2623 = vpop.f32.mrb[0].mxu0
        %v2624 = vpop.f32.mrb[0].mxu0
        %v2625 = vadd.f32 %v2401, %v2624
        %v2626 = vpop.f32.mrb[0].mxu0
        %2627 = vmatprep.mubr.bf16.mxu0 0
        %2628 = vmatmul.mubr.bf16.gmra.mrb[0].mxu0 %v2473
        %v2629 = vpop.f32.mrb[0].mxu0
        %v2630 = vadd.f32 %v2401, %v2629
        %v2631 = vpop.f32.mrb[0].mxu0
        %v2632 = vpop.f32.mrb[0].mxu0
        %v2633 = vadd.f32 %v2401, %v2632
        %v2634 = vpop.f32.mrb[0].mxu0
        %2635 = vdwg.mxu0
        %v2636 = vpack.c.bf16 %v2513, %v2510
        %v2637 = vpack.c.bf16 %v2521, %v2518
        %v2638 = vpack.c.bf16 %v2529, %v2526
        %v2639 = vpack.c.bf16 %v2537, %v2534
        %v2640 = vpack.c.bf16 %v2545, %v2542
        %v2641 = vpack.c.bf16 %v2553, %v2550
        %v2642 = vpack.c.bf16 %v2561, %v2558
        %v2643 = vpack.c.bf16 %v2569, %v2566
        %v2644 = vpack.c.bf16 %v2577, %v2574
        %v2645 = vpack.c.bf16 %v2585, %v2582
        %v2646 = vpack.c.bf16 %v2593, %v2590
        %v2647 = vpack.c.bf16 %v2601, %v2598
        %v2648 = vpack.c.bf16 %v2609, %v2606
        %v2649 = vpack.c.bf16 %v2617, %v2614
        %v2650 = vpack.c.bf16 %v2625, %v2622
        %v2651 = vpack.c.bf16 %v2633, %v2630
        %s2652 = scalar_lea.vmem [#allocation7], 256
        %v2653 = vld [vmem:[%s2652] sm:$0xff]
        %v2654 = vld [vmem:[%s2652 + $0x8] sm:$0xff]
        %v2655 = vld [vmem:[%s2652 + $0x10] sm:$0xff]
        %v2656 = vld [vmem:[%s2652 + $0x18] sm:$0xff]
        %v2657 = vld [vmem:[%s2652 + $0x20] sm:$0xff]
        %v2658 = vld [vmem:[%s2652 + $0x28] sm:$0xff]
        %v2659 = vld [vmem:[%s2652 + $0x30] sm:$0xff]
        %v2660 = vld [vmem:[%s2652 + $0x38] sm:$0xff]
        %v2661 = vld [vmem:[%s2652 + $0x40] sm:$0xff]
        %v2662 = vld [vmem:[%s2652 + $0x48] sm:$0xff]
        %v2663 = vld [vmem:[%s2652 + $0x50] sm:$0xff]
        %v2664 = vld [vmem:[%s2652 + $0x58] sm:$0xff]
        %v2665 = vld [vmem:[%s2652 + $0x60] sm:$0xff]
        %v2666 = vld [vmem:[%s2652 + $0x68] sm:$0xff]
        %v2667 = vld [vmem:[%s2652 + $0x70] sm:$0xff]
        %v2668 = vld [vmem:[%s2652 + $0x78] sm:$0xff]
        %v2669 = vunpack.c.l.bf16 %v2653
        %v2670 = vunpack.c.h.bf16 %v2653
        %v2671 = vunpack.c.l.bf16 %v2654
        %v2672 = vunpack.c.h.bf16 %v2654
        %v2673 = vunpack.c.l.bf16 %v2655
        %v2674 = vunpack.c.h.bf16 %v2655
        %v2675 = vunpack.c.l.bf16 %v2656
        %v2676 = vunpack.c.h.bf16 %v2656
        %v2677 = vunpack.c.l.bf16 %v2657
        %v2678 = vunpack.c.h.bf16 %v2657
        %v2679 = vunpack.c.l.bf16 %v2658
        %v2680 = vunpack.c.h.bf16 %v2658
        %v2681 = vunpack.c.l.bf16 %v2659
        %v2682 = vunpack.c.h.bf16 %v2659
        %v2683 = vunpack.c.l.bf16 %v2660
        %v2684 = vunpack.c.h.bf16 %v2660
        %v2685 = vunpack.c.l.bf16 %v2661
        %v2686 = vunpack.c.h.bf16 %v2661
        %v2687 = vunpack.c.l.bf16 %v2662
        %v2688 = vunpack.c.h.bf16 %v2662
        %v2689 = vunpack.c.l.bf16 %v2663
        %v2690 = vunpack.c.h.bf16 %v2663
        %v2691 = vunpack.c.l.bf16 %v2664
        %v2692 = vunpack.c.h.bf16 %v2664
        %v2693 = vunpack.c.l.bf16 %v2665
        %v2694 = vunpack.c.h.bf16 %v2665
        %v2695 = vunpack.c.l.bf16 %v2666
        %v2696 = vunpack.c.h.bf16 %v2666
        %v2697 = vunpack.c.l.bf16 %v2667
        %v2698 = vunpack.c.h.bf16 %v2667
        %v2699 = vunpack.c.l.bf16 %v2668
        %v2700 = vunpack.c.h.bf16 %v2668
        %2717 = vrot.lane.b32.xlu0 %v2636, 112
        %v2718 = vpop.permute.xlu0 %2717
        %2719 = vrot.lane.b32.xlu0 %v2637, 112
        %v2720 = vpop.permute.xlu0 %2719
        %2721 = vrot.lane.b32.xlu0 %v2638, 112
        %v2722 = vpop.permute.xlu0 %2721
        %2723 = vrot.lane.b32.xlu0 %v2639, 112
        %v2724 = vpop.permute.xlu0 %2723
        %2725 = vrot.lane.b32.xlu0 %v2640, 112
        %v2726 = vpop.permute.xlu0 %2725
        %2727 = vrot.lane.b32.xlu0 %v2641, 112
        %v2728 = vpop.permute.xlu0 %2727
        %2729 = vrot.lane.b32.xlu0 %v2642, 112
        %v2730 = vpop.permute.xlu0 %2729
        %2731 = vrot.lane.b32.xlu0 %v2643, 112
        %v2732 = vpop.permute.xlu0 %2731
        %2733 = vrot.lane.b32.xlu0 %v2644, 112
        %v2734 = vpop.permute.xlu0 %2733
        %2735 = vrot.lane.b32.xlu0 %v2645, 112
        %v2736 = vpop.permute.xlu0 %2735
        %2737 = vrot.lane.b32.xlu0 %v2646, 112
        %v2738 = vpop.permute.xlu0 %2737
        %2739 = vrot.lane.b32.xlu0 %v2647, 112
        %v2740 = vpop.permute.xlu0 %2739
        %2741 = vrot.lane.b32.xlu0 %v2648, 112
        %v2742 = vpop.permute.xlu0 %2741
        %2743 = vrot.lane.b32.xlu0 %v2649, 112
        %v2744 = vpop.permute.xlu0 %2743
        %2745 = vrot.lane.b32.xlu0 %v2650, 112
        %v2746 = vpop.permute.xlu0 %2745
        %2747 = vrot.lane.b32.xlu0 %v2651, 112
        %v2748 = vpop.permute.xlu0 %2747
        %v2750 = vsel %vm725, %v2636, 0
        %v2753 = vsel %vm725, %v2637, 0
        %v2756 = vsel %vm725, %v2638, 0
        %v2759 = vsel %vm725, %v2639, 0
        %v2762 = vsel %vm725, %v2640, 0
        %v2765 = vsel %vm725, %v2641, 0
        %v2768 = vsel %vm725, %v2642, 0
        %v2771 = vsel %vm725, %v2643, 0
        %v2774 = vsel %vm725, %v2718, 0
        %v2777 = vsel %vm725, %v2720, 0
        %v2780 = vsel %vm725, %v2722, 0
        %v2783 = vsel %vm725, %v2724, 0
        %v2786 = vsel %vm725, %v2726, 0
        %v2789 = vsel %vm725, %v2728, 0
        %v2792 = vsel %vm725, %v2730, 0
        %v2795 = vsel %vm725, %v2732, 0
        %v2798 = vsel %vm725, %v2734, 0
        %v2801 = vsel %vm725, %v2736, 0
        %v2804 = vsel %vm725, %v2738, 0
        %v2807 = vsel %vm725, %v2740, 0
        %v2810 = vsel %vm725, %v2742, 0
        %v2813 = vsel %vm725, %v2744, 0
        %v2816 = vsel %vm725, %v2746, 0
        %v2819 = vsel %vm725, %v2748, 0
        %2821 = vmatprep.subr.bf16.mxu0 0
        %2822 = vmatpush1.bf16.xpose.msra.mxu0 %v2774
        %2823 = vmatprep.subr.bf16.mxu0 0
        %2824 = vmatpush1.bf16.xpose.msra.mxu0 %v2777
        %2825 = vmatprep.subr.bf16.mxu0 0
        %2826 = vmatpush1.bf16.xpose.msra.mxu0 %v2780
        %2827 = vmatprep.subr.bf16.mxu0 0
        %2828 = vmatpush1.bf16.xpose.msra.mxu0 %v2783
        %2829 = vmatprep.subr.bf16.mxu0 0
        %2830 = vmatpush1.bf16.xpose.msra.mxu0 %v2786
        %2831 = vmatprep.subr.bf16.mxu0 0
        %2832 = vmatpush1.bf16.xpose.msra.mxu0 %v2789
        %2833 = vmatprep.subr.bf16.mxu0 0
        %2834 = vmatpush1.bf16.xpose.msra.mxu0 %v2792
        %2835 = vmatprep.subr.bf16.mxu0 0
        %2836 = vmatpush1.bf16.xpose.msra.mxu0 %v2795
        %2837 = vmatprep.subr.bf16.mxu0 0
        %2838 = vmatpush1.bf16.xpose.msra.mxu0 %v2798
        %2839 = vmatprep.subr.bf16.mxu0 0
        %2840 = vmatpush1.bf16.xpose.msra.mxu0 %v2801
        %2841 = vmatprep.subr.bf16.mxu0 0
        %2842 = vmatpush1.bf16.xpose.msra.mxu0 %v2804
        %2843 = vmatprep.subr.bf16.mxu0 0
        %2844 = vmatpush1.bf16.xpose.msra.mxu0 %v2807
        %2845 = vmatprep.subr.bf16.mxu0 0
        %2846 = vmatpush1.bf16.xpose.msra.mxu0 %v2810
        %2847 = vmatprep.subr.bf16.mxu0 0
        %2848 = vmatpush1.bf16.xpose.msra.mxu0 %v2813
        %2849 = vmatprep.subr.bf16.mxu0 0
        %2850 = vmatpush1.bf16.xpose.msra.mxu0 %v2816
        %2851 = vmatprep.subr.bf16.mxu0 0
        %2852 = vmatpush1.bf16.xpose.msra.mxu0 %v2819
        %2853 = vmatprep.mubr.bf16.mxu0 0
        %2854 = vmatmul.mubr.bf16.gmra.mrb[0].mxu0 %v2750
        %v2855 = vpop.f32.mrb[0].mxu0
        %v2856 = vadd.f32 %v2669, %v2855
        %v2857 = vpop.f32.mrb[0].mxu0
        %v2858 = vadd.f32 %v2670, %v2857
        %v2859 = vpop.f32.mrb[0].mxu0
        %v2860 = vadd.f32 %v2671, %v2859
        %v2861 = vpop.f32.mrb[0].mxu0
        %v2862 = vadd.f32 %v2672, %v2861
        %2863 = vmatprep.mubr.bf16.mxu0 0
        %2864 = vmatmul.mubr.bf16.gmra.mrb[0].mxu0 %v2753
        %v2865 = vpop.f32.mrb[0].mxu0
        %v2866 = vadd.f32 %v2673, %v2865
        %v2867 = vpop.f32.mrb[0].mxu0
        %v2868 = vadd.f32 %v2674, %v2867
        %v2869 = vpop.f32.mrb[0].mxu0
        %v2870 = vadd.f32 %v2675, %v2869
        %v2871 = vpop.f32.mrb[0].mxu0
        %v2872 = vadd.f32 %v2676, %v2871
        %2873 = vmatprep.mubr.bf16.mxu0 0
        %2874 = vmatmul.mubr.bf16.gmra.mrb[0].mxu0 %v2756
        %v2875 = vpop.f32.mrb[0].mxu0
        %v2876 = vadd.f32 %v2677, %v2875
        %v2877 = vpop.f32.mrb[0].mxu0
        %v2878 = vadd.f32 %v2678, %v2877
        %v2879 = vpop.f32.mrb[0].mxu0
        %v2880 = vadd.f32 %v2679, %v2879
        %v2881 = vpop.f32.mrb[0].mxu0
        %v2882 = vadd.f32 %v2680, %v2881
        %2883 = vmatprep.mubr.bf16.mxu0 0
        %2884 = vmatmul.mubr.bf16.gmra.mrb[0].mxu0 %v2759
        %v2885 = vpop.f32.mrb[0].mxu0
        %v2886 = vadd.f32 %v2681, %v2885
        %v2887 = vpop.f32.mrb[0].mxu0
        %v2888 = vadd.f32 %v2682, %v2887
        %v2889 = vpop.f32.mrb[0].mxu0
        %v2890 = vadd.f32 %v2683, %v2889
        %v2891 = vpop.f32.mrb[0].mxu0
        %v2892 = vadd.f32 %v2684, %v2891
        %2893 = vmatprep.mubr.bf16.mxu0 0
        %2894 = vmatmul.mubr.bf16.gmra.mrb[0].mxu0 %v2762
        %v2895 = vpop.f32.mrb[0].mxu0
        %v2896 = vadd.f32 %v2685, %v2895
        %v2897 = vpop.f32.mrb[0].mxu0
        %v2898 = vadd.f32 %v2686, %v2897
        %v2899 = vpop.f32.mrb[0].mxu0
        %v2900 = vadd.f32 %v2687, %v2899
        %v2901 = vpop.f32.mrb[0].mxu0
        %v2902 = vadd.f32 %v2688, %v2901
        %2903 = vmatprep.mubr.bf16.mxu0 0
        %2904 = vmatmul.mubr.bf16.gmra.mrb[0].mxu0 %v2765
        %v2905 = vpop.f32.mrb[0].mxu0
        %v2906 = vadd.f32 %v2689, %v2905
        %v2907 = vpop.f32.mrb[0].mxu0
        %v2908 = vadd.f32 %v2690, %v2907
        %v2909 = vpop.f32.mrb[0].mxu0
        %v2910 = vadd.f32 %v2691, %v2909
        %v2911 = vpop.f32.mrb[0].mxu0
        %v2912 = vadd.f32 %v2692, %v2911
        %2913 = vmatprep.mubr.bf16.mxu0 0
        %2914 = vmatmul.mubr.bf16.gmra.mrb[0].mxu0 %v2768
        %v2915 = vpop.f32.mrb[0].mxu0
        %v2916 = vadd.f32 %v2693, %v2915
        %v2917 = vpop.f32.mrb[0].mxu0
        %v2918 = vadd.f32 %v2694, %v2917
        %v2919 = vpop.f32.mrb[0].mxu0
        %v2920 = vadd.f32 %v2695, %v2919
        %v2921 = vpop.f32.mrb[0].mxu0
        %v2922 = vadd.f32 %v2696, %v2921
        %2923 = vmatprep.mubr.bf16.mxu0 0
        %2924 = vmatmul.mubr.bf16.gmra.mrb[0].mxu0 %v2771
        %v2925 = vpop.f32.mrb[0].mxu0
        %v2926 = vadd.f32 %v2697, %v2925
        %v2927 = vpop.f32.mrb[0].mxu0
        %v2928 = vadd.f32 %v2698, %v2927
        %v2929 = vpop.f32.mrb[0].mxu0
        %v2930 = vadd.f32 %v2699, %v2929
        %v2931 = vpop.f32.mrb[0].mxu0
        %v2932 = vadd.f32 %v2700, %v2931
        %2933 = vdwg.mxu0
        %v2934 = vmax.f32 %v2856, %v2858
        %2935 = vmax.xlane.f32.xlu0 %v2934
        %v2936 = vpop.xlane.xlu0 %2935
        %v2937 = vmax.f32 %v2860, %v2862
        %2938 = vmax.xlane.f32.xlu0 %v2937
        %v2939 = vpop.xlane.xlu0 %2938
        %v2940 = vmax.f32 %v2866, %v2868
        %2941 = vmax.xlane.f32.xlu0 %v2940
        %v2942 = vpop.xlane.xlu0 %2941
        %v2943 = vmax.f32 %v2870, %v2872
        %2944 = vmax.xlane.f32.xlu0 %v2943
        %v2945 = vpop.xlane.xlu0 %2944
        %v2946 = vmax.f32 %v2876, %v2878
        %2947 = vmax.xlane.f32.xlu0 %v2946
        %v2948 = vpop.xlane.xlu0 %2947
        %v2949 = vmax.f32 %v2880, %v2882
        %2950 = vmax.xlane.f32.xlu0 %v2949
        %v2951 = vpop.xlane.xlu0 %2950
        %v2952 = vmax.f32 %v2886, %v2888
        %2953 = vmax.xlane.f32.xlu0 %v2952
        %v2954 = vpop.xlane.xlu0 %2953
        %v2955 = vmax.f32 %v2890, %v2892
        %2956 = vmax.xlane.f32.xlu0 %v2955
        %v2957 = vpop.xlane.xlu0 %2956
        %v2958 = vmax.f32 %v2896, %v2898
        %2959 = vmax.xlane.f32.xlu0 %v2958
        %v2960 = vpop.xlane.xlu0 %2959
        %v2961 = vmax.f32 %v2900, %v2902
        %2962 = vmax.xlane.f32.xlu0 %v2961
        %v2963 = vpop.xlane.xlu0 %2962
        %v2964 = vmax.f32 %v2906, %v2908
        %2965 = vmax.xlane.f32.xlu0 %v2964
        %v2966 = vpop.xlane.xlu0 %2965
        %v2967 = vmax.f32 %v2910, %v2912
        %2968 = vmax.xlane.f32.xlu0 %v2967
        %v2969 = vpop.xlane.xlu0 %2968
        %v2970 = vmax.f32 %v2916, %v2918
        %2971 = vmax.xlane.f32.xlu0 %v2970
        %v2972 = vpop.xlane.xlu0 %2971
        %v2973 = vmax.f32 %v2920, %v2922
        %2974 = vmax.xlane.f32.xlu0 %v2973
        %v2975 = vpop.xlane.xlu0 %2974
        %v2976 = vmax.f32 %v2926, %v2928
        %2977 = vmax.xlane.f32.xlu0 %v2976
        %v2978 = vpop.xlane.xlu0 %2977
        %v2979 = vmax.f32 %v2930, %v2932
        %2980 = vmax.xlane.f32.xlu0 %v2979
        %v2981 = vpop.xlane.xlu0 %2980
        %v2982 = vsub.f32 %v2856, %v2936
        %v2983 = vsub.f32 %v2858, %v2936
        %v2984 = vsub.f32 %v2860, %v2939
        %v2985 = vsub.f32 %v2862, %v2939
        %v2986 = vsub.f32 %v2866, %v2942
        %v2987 = vsub.f32 %v2868, %v2942
        %v2988 = vsub.f32 %v2870, %v2945
        %v2989 = vsub.f32 %v2872, %v2945
        %v2990 = vsub.f32 %v2876, %v2948
        %v2991 = vsub.f32 %v2878, %v2948
        %v2992 = vsub.f32 %v2880, %v2951
        %v2993 = vsub.f32 %v2882, %v2951
        %v2994 = vsub.f32 %v2886, %v2954
        %v2995 = vsub.f32 %v2888, %v2954
        %v2996 = vsub.f32 %v2890, %v2957
        %v2997 = vsub.f32 %v2892, %v2957
        %v2998 = vsub.f32 %v2896, %v2960
        %v2999 = vsub.f32 %v2898, %v2960
        %v3000 = vsub.f32 %v2900, %v2963
        %v3001 = vsub.f32 %v2902, %v2963
        %v3002 = vsub.f32 %v2906, %v2966
        %v3003 = vsub.f32 %v2908, %v2966
        %v3004 = vsub.f32 %v2910, %v2969
        %v3005 = vsub.f32 %v2912, %v2969
        %v3006 = vsub.f32 %v2916, %v2972
        %v3007 = vsub.f32 %v2918, %v2972
        %v3008 = vsub.f32 %v2920, %v2975
        %v3009 = vsub.f32 %v2922, %v2975
        %v3010 = vsub.f32 %v2926, %v2978
        %v3011 = vsub.f32 %v2928, %v2978
        %v3012 = vsub.f32 %v2930, %v2981
        %v3013 = vsub.f32 %v2932, %v2981
        %v3014 = vmul.f32 %v2982, 1.442695
        %v3015 = vpow.pop %v3014
        %v3016 = vmul.f32 %v2983, 1.442695
        %v3017 = vpow.pop %v3016
        %v3018 = vmul.f32 %v2984, 1.442695
        %v3019 = vpow.pop %v3018
        %v3020 = vmul.f32 %v2985, 1.442695
        %v3021 = vpow.pop %v3020
        %v3022 = vmul.f32 %v2986, 1.442695
        %v3023 = vpow.pop %v3022
        %v3024 = vmul.f32 %v2987, 1.442695
        %v3025 = vpow.pop %v3024
        %v3026 = vmul.f32 %v2988, 1.442695
        %v3027 = vpow.pop %v3026
        %v3028 = vmul.f32 %v2989, 1.442695
        %v3029 = vpow.pop %v3028
        %v3030 = vmul.f32 %v2990, 1.442695
        %v3031 = vpow.pop %v3030
        %v3032 = vmul.f32 %v2991, 1.442695
        %v3033 = vpow.pop %v3032
        %v3034 = vmul.f32 %v2992, 1.442695
        %v3035 = vpow.pop %v3034
        %v3036 = vmul.f32 %v2993, 1.442695
        %v3037 = vpow.pop %v3036
        %v3038 = vmul.f32 %v2994, 1.442695
        %v3039 = vpow.pop %v3038
        %v3040 = vmul.f32 %v2995, 1.442695
        %v3041 = vpow.pop %v3040
        %v3042 = vmul.f32 %v2996, 1.442695
        %v3043 = vpow.pop %v3042
        %v3044 = vmul.f32 %v2997, 1.442695
        %v3045 = vpow.pop %v3044
        %v3046 = vmul.f32 %v2998, 1.442695
        %v3047 = vpow.pop %v3046
        %v3048 = vmul.f32 %v2999, 1.442695
        %v3049 = vpow.pop %v3048
        %v3050 = vmul.f32 %v3000, 1.442695
        %v3051 = vpow.pop %v3050
        %v3052 = vmul.f32 %v3001, 1.442695
        %v3053 = vpow.pop %v3052
        %v3054 = vmul.f32 %v3002, 1.442695
        %v3055 = vpow.pop %v3054
        %v3056 = vmul.f32 %v3003, 1.442695
        %v3057 = vpow.pop %v3056
        %v3058 = vmul.f32 %v3004, 1.442695
        %v3059 = vpow.pop %v3058
        %v3060 = vmul.f32 %v3005, 1.442695
        %v3061 = vpow.pop %v3060
        %v3062 = vmul.f32 %v3006, 1.442695
        %v3063 = vpow.pop %v3062
        %v3064 = vmul.f32 %v3007, 1.442695
        %v3065 = vpow.pop %v3064
        %v3066 = vmul.f32 %v3008, 1.442695
        %v3067 = vpow.pop %v3066
        %v3068 = vmul.f32 %v3009, 1.442695
        %v3069 = vpow.pop %v3068
        %v3070 = vmul.f32 %v3010, 1.442695
        %v3071 = vpow.pop %v3070
        %v3072 = vmul.f32 %v3011, 1.442695
        %v3073 = vpow.pop %v3072
        %v3074 = vmul.f32 %v3012, 1.442695
        %v3075 = vpow.pop %v3074
        %v3076 = vmul.f32 %v3013, 1.442695
        %v3077 = vpow.pop %v3076
        %v3078 = vadd.f32 %v3015, %v3017
        %3079 = vadd.xlane.f32.xlu0 %v3078
        %v3080 = vpop.xlane.xlu0 %3079
        %v3081 = vadd.f32 %v3019, %v3021
        %3082 = vadd.xlane.f32.xlu0 %v3081
        %v3083 = vpop.xlane.xlu0 %3082
        %v3084 = vadd.f32 %v3023, %v3025
        %3085 = vadd.xlane.f32.xlu0 %v3084
        %v3086 = vpop.xlane.xlu0 %3085
        %v3087 = vadd.f32 %v3027, %v3029
        %3088 = vadd.xlane.f32.xlu0 %v3087
        %v3089 = vpop.xlane.xlu0 %3088
        %v3090 = vadd.f32 %v3031, %v3033
        %3091 = vadd.xlane.f32.xlu0 %v3090
        %v3092 = vpop.xlane.xlu0 %3091
        %v3093 = vadd.f32 %v3035, %v3037
        %3094 = vadd.xlane.f32.xlu0 %v3093
        %v3095 = vpop.xlane.xlu0 %3094
        %v3096 = vadd.f32 %v3039, %v3041
        %3097 = vadd.xlane.f32.xlu0 %v3096
        %v3098 = vpop.xlane.xlu0 %3097
        %v3099 = vadd.f32 %v3043, %v3045
        %3100 = vadd.xlane.f32.xlu0 %v3099
        %v3101 = vpop.xlane.xlu0 %3100
        %v3102 = vadd.f32 %v3047, %v3049
        %3103 = vadd.xlane.f32.xlu0 %v3102
        %v3104 = vpop.xlane.xlu0 %3103
        %v3105 = vadd.f32 %v3051, %v3053
        %3106 = vadd.xlane.f32.xlu0 %v3105
        %v3107 = vpop.xlane.xlu0 %3106
        %v3108 = vadd.f32 %v3055, %v3057
        %3109 = vadd.xlane.f32.xlu0 %v3108
        %v3110 = vpop.xlane.xlu0 %3109
        %v3111 = vadd.f32 %v3059, %v3061
        %3112 = vadd.xlane.f32.xlu0 %v3111
        %v3113 = vpop.xlane.xlu0 %3112
        %v3114 = vadd.f32 %v3063, %v3065
        %3115 = vadd.xlane.f32.xlu0 %v3114
        %v3116 = vpop.xlane.xlu0 %3115
        %v3117 = vadd.f32 %v3067, %v3069
        %3118 = vadd.xlane.f32.xlu0 %v3117
        %v3119 = vpop.xlane.xlu0 %3118
        %v3120 = vadd.f32 %v3071, %v3073
        %3121 = vadd.xlane.f32.xlu0 %v3120
        %v3122 = vpop.xlane.xlu0 %3121
        %v3123 = vadd.f32 %v3075, %v3077
        %3124 = vadd.xlane.f32.xlu0 %v3123
        %v3125 = vpop.xlane.xlu0 %3124
        %v3126 = vpack.c.bf16 %v3019, %v3015
        %v3127 = vpack.c.bf16 %v3021, %v3017
        %v3128 = vpack.c.bf16 %v3027, %v3023
        %v3129 = vpack.c.bf16 %v3029, %v3025
        %v3130 = vpack.c.bf16 %v3035, %v3031
        %v3131 = vpack.c.bf16 %v3037, %v3033
        %v3132 = vpack.c.bf16 %v3043, %v3039
        %v3133 = vpack.c.bf16 %v3045, %v3041
        %v3134 = vpack.c.bf16 %v3051, %v3047
        %v3135 = vpack.c.bf16 %v3053, %v3049
        %v3136 = vpack.c.bf16 %v3059, %v3055
        %v3137 = vpack.c.bf16 %v3061, %v3057
        %v3138 = vpack.c.bf16 %v3067, %v3063
        %v3139 = vpack.c.bf16 %v3069, %v3065
        %v3140 = vpack.c.bf16 %v3075, %v3071
        %v3141 = vpack.c.bf16 %v3077, %v3073
        %3142 = vrot.lane.b32.xlu0 %v2636, 96
        %v3143 = vpop.permute.xlu0 %3142
        %3144 = vrot.lane.b32.xlu0 %v2637, 96
        %v3145 = vpop.permute.xlu0 %3144
        %3146 = vrot.lane.b32.xlu0 %v2638, 96
        %v3147 = vpop.permute.xlu0 %3146
        %3148 = vrot.lane.b32.xlu0 %v2639, 96
        %v3149 = vpop.permute.xlu0 %3148
        %3150 = vrot.lane.b32.xlu0 %v2640, 96
        %v3151 = vpop.permute.xlu0 %3150
        %3152 = vrot.lane.b32.xlu0 %v2641, 96
        %v3153 = vpop.permute.xlu0 %3152
        %3154 = vrot.lane.b32.xlu0 %v2642, 96
        %v3155 = vpop.permute.xlu0 %3154
        %3156 = vrot.lane.b32.xlu0 %v2643, 96
        %v3157 = vpop.permute.xlu0 %3156
        %3158 = vrot.lane.b32.xlu0 %v2644, 96
        %v3159 = vpop.permute.xlu0 %3158
        %3160 = vrot.lane.b32.xlu0 %v2645, 96
        %v3161 = vpop.permute.xlu0 %3160
        %3162 = vrot.lane.b32.xlu0 %v2646, 96
        %v3163 = vpop.permute.xlu0 %3162
        %3164 = vrot.lane.b32.xlu0 %v2647, 96
        %v3165 = vpop.permute.xlu0 %3164
        %3166 = vrot.lane.b32.xlu0 %v2648, 96
        %v3167 = vpop.permute.xlu0 %3166
        %3168 = vrot.lane.b32.xlu0 %v2649, 96
        %v3169 = vpop.permute.xlu0 %3168
        %3170 = vrot.lane.b32.xlu0 %v2650, 96
        %v3171 = vpop.permute.xlu0 %3170
        %3172 = vrot.lane.b32.xlu0 %v2651, 96
        %v3173 = vpop.permute.xlu0 %3172
        %3190 = vmatprep.subr.bf16.mxu0 0
        %3191 = vmatpush1.bf16.msra.mxu0 %v3143
        %3192 = vmatprep.subr.bf16.mxu0 0
        %3193 = vmatpush1.bf16.msra.mxu0 %v3145
        %3194 = vmatprep.subr.bf16.mxu0 0
        %3195 = vmatpush1.bf16.msra.mxu0 %v3147
        %3196 = vmatprep.subr.bf16.mxu0 0
        %3197 = vmatpush1.bf16.msra.mxu0 %v3149
        %3198 = vmatprep.subr.bf16.mxu0 0
        %3199 = vmatpush1.bf16.msra.mxu0 %v3151
        %3200 = vmatprep.subr.bf16.mxu0 0
        %3201 = vmatpush1.bf16.msra.mxu0 %v3153
        %3202 = vmatprep.subr.bf16.mxu0 0
        %3203 = vmatpush1.bf16.msra.mxu0 %v3155
        %3204 = vmatprep.subr.bf16.mxu0 0
        %3205 = vmatpush1.bf16.msra.mxu0 %v3157
        %3206 = vmatprep.subr.bf16.mxu0 0
        %3207 = vmatpush1.bf16.msra.mxu0 %v3159
        %3208 = vmatprep.subr.bf16.mxu0 0
        %3209 = vmatpush1.bf16.msra.mxu0 %v3161
        %3210 = vmatprep.subr.bf16.mxu0 0
        %3211 = vmatpush1.bf16.msra.mxu0 %v3163
        %3212 = vmatprep.subr.bf16.mxu0 0
        %3213 = vmatpush1.bf16.msra.mxu0 %v3165
        %3214 = vmatprep.subr.bf16.mxu0 0
        %3215 = vmatpush1.bf16.msra.mxu0 %v3167
        %3216 = vmatprep.subr.bf16.mxu0 0
        %3217 = vmatpush1.bf16.msra.mxu0 %v3169
        %3218 = vmatprep.subr.bf16.mxu0 0
        %3219 = vmatpush1.bf16.msra.mxu0 %v3171
        %3220 = vmatprep.subr.bf16.mxu0 0
        %3221 = vmatpush1.bf16.msra.mxu0 %v3173
        %3222 = vmatprep.mubr.bf16.mxu0 %v3127
        %3223 = vmatmul.mubr.bf16.gmra.mrb[0].mxu0 %v3126
        %v3224 = vpop.f32.mrb[0].mxu0
        %v3225 = vadd.f32 0.0, %v3224
        %v3226 = vpop.f32.mrb[0].mxu0
        %v3227 = vpop.f32.mrb[0].mxu0
        %v3228 = vadd.f32 0.0, %v3227
        %v3229 = vpop.f32.mrb[0].mxu0
        %3230 = vmatprep.mubr.bf16.mxu0 %v3129
        %3231 = vmatmul.mubr.bf16.gmra.mrb[0].mxu0 %v3128
        %v3232 = vpop.f32.mrb[0].mxu0
        %v3233 = vadd.f32 0.0, %v3232
        %v3234 = vpop.f32.mrb[0].mxu0
        %v3235 = vpop.f32.mrb[0].mxu0
        %v3236 = vadd.f32 0.0, %v3235
        %v3237 = vpop.f32.mrb[0].mxu0
        %3238 = vmatprep.mubr.bf16.mxu0 %v3131
        %3239 = vmatmul.mubr.bf16.gmra.mrb[0].mxu0 %v3130
        %v3240 = vpop.f32.mrb[0].mxu0
        %v3241 = vadd.f32 0.0, %v3240
        %v3242 = vpop.f32.mrb[0].mxu0
        %v3243 = vpop.f32.mrb[0].mxu0
        %v3244 = vadd.f32 0.0, %v3243
        %v3245 = vpop.f32.mrb[0].mxu0
        %3246 = vmatprep.mubr.bf16.mxu0 %v3133
        %3247 = vmatmul.mubr.bf16.gmra.mrb[0].mxu0 %v3132
        %v3248 = vpop.f32.mrb[0].mxu0
        %v3249 = vadd.f32 0.0, %v3248
        %v3250 = vpop.f32.mrb[0].mxu0
        %v3251 = vpop.f32.mrb[0].mxu0
        %v3252 = vadd.f32 0.0, %v3251
        %v3253 = vpop.f32.mrb[0].mxu0
        %3254 = vmatprep.mubr.bf16.mxu0 %v3135
        %3255 = vmatmul.mubr.bf16.gmra.mrb[0].mxu0 %v3134
        %v3256 = vpop.f32.mrb[0].mxu0
        %v3257 = vadd.f32 0.0, %v3256
        %v3258 = vpop.f32.mrb[0].mxu0
        %v3259 = vpop.f32.mrb[0].mxu0
        %v3260 = vadd.f32 0.0, %v3259
        %v3261 = vpop.f32.mrb[0].mxu0
        %3262 = vmatprep.mubr.bf16.mxu0 %v3137
        %3263 = vmatmul.mubr.bf16.gmra.mrb[0].mxu0 %v3136
        %v3264 = vpop.f32.mrb[0].mxu0
        %v3265 = vadd.f32 0.0, %v3264
        %v3266 = vpop.f32.mrb[0].mxu0
        %v3267 = vpop.f32.mrb[0].mxu0
        %v3268 = vadd.f32 0.0, %v3267
        %v3269 = vpop.f32.mrb[0].mxu0
        %3270 = vmatprep.mubr.bf16.mxu0 %v3139
        %3271 = vmatmul.mubr.bf16.gmra.mrb[0].mxu0 %v3138
        %v3272 = vpop.f32.mrb[0].mxu0
        %v3273 = vadd.f32 0.0, %v3272
        %v3274 = vpop.f32.mrb[0].mxu0
        %v3275 = vpop.f32.mrb[0].mxu0
        %v3276 = vadd.f32 0.0, %v3275
        %v3277 = vpop.f32.mrb[0].mxu0
        %3278 = vmatprep.mubr.bf16.mxu0 %v3141
        %3279 = vmatmul.mubr.bf16.gmra.mrb[0].mxu0 %v3140
        %v3280 = vpop.f32.mrb[0].mxu0
        %v3281 = vadd.f32 0.0, %v3280
        %v3282 = vpop.f32.mrb[0].mxu0
        %v3283 = vpop.f32.mrb[0].mxu0
        %v3284 = vadd.f32 0.0, %v3283
        %v3285 = vpop.f32.mrb[0].mxu0
        %3286 = vdwg.mxu0
        %v3287 = vrcp.pop %v3080
        %v3288 = vrcp.pop %v3083
        %v3289 = vrcp.pop %v3086
        %v3290 = vrcp.pop %v3089
        %v3291 = vrcp.pop %v3092
        %v3292 = vrcp.pop %v3095
        %v3293 = vrcp.pop %v3098
        %v3294 = vrcp.pop %v3101
        %v3295 = vrcp.pop %v3104
        %v3296 = vrcp.pop %v3107
        %v3297 = vrcp.pop %v3110
        %v3298 = vrcp.pop %v3113
        %v3299 = vrcp.pop %v3116
        %v3300 = vrcp.pop %v3119
        %v3301 = vrcp.pop %v3122
        %v3302 = vrcp.pop %v3125
        %v3303 = vmul.f32 %v3225, %v3287
        %v3304 = vmul.f32 %v3228, %v3288
        %v3305 = vmul.f32 %v3233, %v3289
        %v3306 = vmul.f32 %v3236, %v3290
        %v3307 = vmul.f32 %v3241, %v3291
        %v3308 = vmul.f32 %v3244, %v3292
        %v3309 = vmul.f32 %v3249, %v3293
        %v3310 = vmul.f32 %v3252, %v3294
        %v3311 = vmul.f32 %v3257, %v3295
        %v3312 = vmul.f32 %v3260, %v3296
        %v3313 = vmul.f32 %v3265, %v3297
        %v3314 = vmul.f32 %v3268, %v3298
        %v3315 = vmul.f32 %v3273, %v3299
        %v3316 = vmul.f32 %v3276, %v3300
        %v3317 = vmul.f32 %v3281, %v3301
        %v3318 = vmul.f32 %v3284, %v3302
        %v3319 = vmax.f32 %v3303, 0.0
        %v3320 = vmax.f32 %v3304, 0.0
        %v3321 = vmax.f32 %v3305, 0.0
        %v3322 = vmax.f32 %v3306, 0.0
        %v3323 = vmax.f32 %v3307, 0.0
        %v3324 = vmax.f32 %v3308, 0.0
        %v3325 = vmax.f32 %v3309, 0.0
        %v3326 = vmax.f32 %v3310, 0.0
        %v3327 = vmax.f32 %v3311, 0.0
        %v3328 = vmax.f32 %v3312, 0.0
        %v3329 = vmax.f32 %v3313, 0.0
        %v3330 = vmax.f32 %v3314, 0.0
        %v3331 = vmax.f32 %v3315, 0.0
        %v3332 = vmax.f32 %v3316, 0.0
        %v3333 = vmax.f32 %v3317, 0.0
        %v3334 = vmax.f32 %v3318, 0.0
        %v3335 = vpack.c.bf16 %v3320, %v3319
        %v3336 = vpack.c.bf16 %v3322, %v3321
        %v3337 = vpack.c.bf16 %v3324, %v3323
        %v3338 = vpack.c.bf16 %v3326, %v3325
        %v3339 = vpack.c.bf16 %v3328, %v3327
        %v3340 = vpack.c.bf16 %v3330, %v3329
        %v3341 = vpack.c.bf16 %v3332, %v3331
        %v3342 = vpack.c.bf16 %v3334, %v3333
        %s3343 = scalar_lea.vmem [#allocation8], 32
        %v3344 = vld [vmem:[%s3343] sm:$0xf]
        %v3345 = vld [vmem:[%s3343 + $0x4] sm:$0xf]
        %v3346 = vld [vmem:[%s3343 + $0x8] sm:$0xf]
        %v3347 = vld [vmem:[%s3343 + $0xc] sm:$0xf]
        %v3348 = vld [vmem:[%s3343 + $0x10] sm:$0xf]
        %v3349 = vld [vmem:[%s3343 + $0x14] sm:$0xf]
        %v3350 = vld [vmem:[%s3343 + $0x18] sm:$0xf]
        %v3351 = vld [vmem:[%s3343 + $0x1c] sm:$0xf]
        %v3360 = vunpack.c.l.b16 %v3344
        %v3361 = vunpack.c.l.b16 %v3345
        %v3362 = vunpack.c.l.b16 %v3346
        %v3363 = vunpack.c.l.b16 %v3347
        %v3364 = vunpack.c.l.b16 %v3348
        %v3365 = vunpack.c.l.b16 %v3349
        %v3366 = vunpack.c.l.b16 %v3350
        %v3367 = vunpack.c.l.b16 %v3351
        %v3368 = vpack.c.b16 %v3361, %v3360
        %v3369 = vpack.c.b16 %v3363, %v3362
        %v3370 = vpack.c.b16 %v3365, %v3364
        %v3371 = vpack.c.b16 %v3367, %v3366
        %v3377 = vsel %vm403, %v3335, 0
        %v3380 = vsel %vm403, %v3336, 0
        %v3383 = vsel %vm403, %v3337, 0
        %v3386 = vsel %vm403, %v3338, 0
        %v3389 = vsel %vm403, %v3339, 0
        %v3392 = vsel %vm403, %v3340, 0
        %v3395 = vsel %vm403, %v3341, 0
        %v3398 = vsel %vm403, %v3342, 0
        %3400 = vmatprep.subr.bf16.mxu0 0
        %3401 = vmatpush1.bf16.msra.mxu0 %v3368
        %3402 = vmatprep.subr.bf16.mxu0 0
        %3403 = vmatpush1.bf16.msra.mxu0 %v3369
        %3404 = vmatprep.subr.bf16.mxu0 0
        %3405 = vmatpush1.bf16.msra.mxu0 %v3370
        %3406 = vmatprep.subr.bf16.mxu0 0
        %3407 = vmatpush1.bf16.msra.mxu0 %v3371
        %3408 = vmatprep.subr.bf16.mxu0 0
        %3409 = vmatpush1.bf16.msra.mxu0 0
        %3410 = vmatprep.subr.bf16.mxu0 0
        %3411 = vmatpush1.bf16.msra.mxu0 0
        %3412 = vmatprep.subr.bf16.mxu0 0
        %3413 = vmatpush1.bf16.msra.mxu0 0
        %3414 = vmatprep.subr.bf16.mxu0 0
        %3415 = vmatpush1.bf16.msra.mxu0 0
        %3416 = vmatprep.subr.bf16.mxu0 0
        %3417 = vmatpush1.bf16.msra.mxu0 0
        %3418 = vmatprep.subr.bf16.mxu0 0
        %3419 = vmatpush1.bf16.msra.mxu0 0
        %3420 = vmatprep.subr.bf16.mxu0 0
        %3421 = vmatpush1.bf16.msra.mxu0 0
        %3422 = vmatprep.subr.bf16.mxu0 0
        %3423 = vmatpush1.bf16.msra.mxu0 0
        %3424 = vmatprep.subr.bf16.mxu0 0
        %3425 = vmatpush1.bf16.msra.mxu0 0
        %3426 = vmatprep.subr.bf16.mxu0 0
        %3427 = vmatpush1.bf16.msra.mxu0 0
        %3428 = vmatprep.subr.bf16.mxu0 0
        %3429 = vmatpush1.bf16.msra.mxu0 0
        %3430 = vmatprep.subr.bf16.mxu0 0
        %3431 = vmatpush1.bf16.msra.mxu0 0
        %3432 = vmatprep.mubr.bf16.mxu0 0
        %3433 = vmatmul.mubr.bf16.gmra.mrb[0].mxu0 %v3377
        %v3434 = vpop.f32.mrb[0].mxu0
        %v3435 = vadd.f32 0.0, %v3434
        %v3436 = vpop.f32.mrb[0].mxu0
        %v3437 = vpop.f32.mrb[0].mxu0
        %v3438 = vadd.f32 0.0, %v3437
        %v3439 = vpop.f32.mrb[0].mxu0
        %3440 = vmatprep.mubr.bf16.mxu0 0
        %3441 = vmatmul.mubr.bf16.gmra.mrb[0].mxu0 %v3380
        %v3442 = vpop.f32.mrb[0].mxu0
        %v3443 = vadd.f32 0.0, %v3442
        %v3444 = vpop.f32.mrb[0].mxu0
        %v3445 = vpop.f32.mrb[0].mxu0
        %v3446 = vadd.f32 0.0, %v3445
        %v3447 = vpop.f32.mrb[0].mxu0
        %3448 = vmatprep.mubr.bf16.mxu0 0
        %3449 = vmatmul.mubr.bf16.gmra.mrb[0].mxu0 %v3383
        %v3450 = vpop.f32.mrb[0].mxu0
        %v3451 = vadd.f32 0.0, %v3450
        %v3452 = vpop.f32.mrb[0].mxu0
        %v3453 = vpop.f32.mrb[0].mxu0
        %v3454 = vadd.f32 0.0, %v3453
        %v3455 = vpop.f32.mrb[0].mxu0
        %3456 = vmatprep.mubr.bf16.mxu0 0
        %3457 = vmatmul.mubr.bf16.gmra.mrb[0].mxu0 %v3386
        %v3458 = vpop.f32.mrb[0].mxu0
        %v3459 = vadd.f32 0.0, %v3458
        %v3460 = vpop.f32.mrb[0].mxu0
        %v3461 = vpop.f32.mrb[0].mxu0
        %v3462 = vadd.f32 0.0, %v3461
        %v3463 = vpop.f32.mrb[0].mxu0
        %3464 = vmatprep.mubr.bf16.mxu0 0
        %3465 = vmatmul.mubr.bf16.gmra.mrb[0].mxu0 %v3389
        %v3466 = vpop.f32.mrb[0].mxu0
        %v3467 = vadd.f32 0.0, %v3466
        %v3468 = vpop.f32.mrb[0].mxu0
        %v3469 = vpop.f32.mrb[0].mxu0
        %v3470 = vadd.f32 0.0, %v3469
        %v3471 = vpop.f32.mrb[0].mxu0
        %3472 = vmatprep.mubr.bf16.mxu0 0
        %3473 = vmatmul.mubr.bf16.gmra.mrb[0].mxu0 %v3392
        %v3474 = vpop.f32.mrb[0].mxu0
        %v3475 = vadd.f32 0.0, %v3474
        %v3476 = vpop.f32.mrb[0].mxu0
        %v3477 = vpop.f32.mrb[0].mxu0
        %v3478 = vadd.f32 0.0, %v3477
        %v3479 = vpop.f32.mrb[0].mxu0
        %3480 = vmatprep.mubr.bf16.mxu0 0
        %3481 = vmatmul.mubr.bf16.gmra.mrb[0].mxu0 %v3395
        %v3482 = vpop.f32.mrb[0].mxu0
        %v3483 = vadd.f32 0.0, %v3482
        %v3484 = vpop.f32.mrb[0].mxu0
        %v3485 = vpop.f32.mrb[0].mxu0
        %v3486 = vadd.f32 0.0, %v3485
        %v3487 = vpop.f32.mrb[0].mxu0
        %3488 = vmatprep.mubr.bf16.mxu0 0
        %3489 = vmatmul.mubr.bf16.gmra.mrb[0].mxu0 %v3398
        %v3490 = vpop.f32.mrb[0].mxu0
        %v3491 = vadd.f32 0.0, %v3490
        %v3492 = vpop.f32.mrb[0].mxu0
        %v3493 = vpop.f32.mrb[0].mxu0
        %v3494 = vadd.f32 0.0, %v3493
        %v3495 = vpop.f32.mrb[0].mxu0
        %3496 = vdwg.mxu0
        %v3497 = vld [vmem:[%s313] sm:$0xff]
        %v3498 = vld [vmem:[%s313 + $0x8] sm:$0xff]
        %v3499 = vld [vmem:[%s313 + $0x10] sm:$0xff]
        %v3500 = vld [vmem:[%s313 + $0x18] sm:$0xff]
        %v3501 = vld [vmem:[%s313 + $0x20] sm:$0xff]
        %v3502 = vld [vmem:[%s313 + $0x28] sm:$0xff]
        %v3503 = vld [vmem:[%s313 + $0x30] sm:$0xff]
        %v3504 = vld [vmem:[%s313 + $0x38] sm:$0xff]
        %v3505 = vld [vmem:[%s313 + $0x40] sm:$0xff]
        %v3506 = vld [vmem:[%s313 + $0x48] sm:$0xff]
        %v3507 = vld [vmem:[%s313 + $0x50] sm:$0xff]
        %v3508 = vld [vmem:[%s313 + $0x58] sm:$0xff]
        %v3509 = vld [vmem:[%s313 + $0x60] sm:$0xff]
        %v3510 = vld [vmem:[%s313 + $0x68] sm:$0xff]
        %v3511 = vld [vmem:[%s313 + $0x70] sm:$0xff]
        %v3512 = vld [vmem:[%s313 + $0x78] sm:$0xff]
        %v3513 = vadd.f32 %v3497, %v3435
        %v3514 = vadd.f32 %v3498, %v3438
        %v3515 = vadd.f32 %v3499, %v3443
        %v3516 = vadd.f32 %v3500, %v3446
        %v3517 = vadd.f32 %v3501, %v3451
        %v3518 = vadd.f32 %v3502, %v3454
        %v3519 = vadd.f32 %v3503, %v3459
        %v3520 = vadd.f32 %v3504, %v3462
        %v3521 = vadd.f32 %v3505, %v3467
        %v3522 = vadd.f32 %v3506, %v3470
        %v3523 = vadd.f32 %v3507, %v3475
        %v3524 = vadd.f32 %v3508, %v3478
        %v3525 = vadd.f32 %v3509, %v3483
        %v3526 = vadd.f32 %v3510, %v3486
        %v3527 = vadd.f32 %v3511, %v3491
        %v3528 = vadd.f32 %v3512, %v3494
        %3529 = vst [vmem:[%s313] sm:$0xff] %v3513
        %3530 = vst [vmem:[%s313 + $0x8] sm:$0xff] %v3514
        %3531 = vst [vmem:[%s313 + $0x10] sm:$0xff] %v3515
        %3532 = vst [vmem:[%s313 + $0x18] sm:$0xff] %v3516
        %3533 = vst [vmem:[%s313 + $0x20] sm:$0xff] %v3517
        %3534 = vst [vmem:[%s313 + $0x28] sm:$0xff] %v3518
        %3535 = vst [vmem:[%s313 + $0x30] sm:$0xff] %v3519
        %3536 = vst [vmem:[%s313 + $0x38] sm:$0xff] %v3520
        %3537 = vst [vmem:[%s313 + $0x40] sm:$0xff] %v3521
        %3538 = vst [vmem:[%s313 + $0x48] sm:$0xff] %v3522
        %3539 = vst [vmem:[%s313 + $0x50] sm:$0xff] %v3523
        %3540 = vst [vmem:[%s313 + $0x58] sm:$0xff] %v3524
        %3541 = vst [vmem:[%s313 + $0x60] sm:$0xff] %v3525
        %3542 = vst [vmem:[%s313 + $0x68] sm:$0xff] %v3526
        %3543 = vst [vmem:[%s313 + $0x70] sm:$0xff] %v3527
        %3544 = vst [vmem:[%s313 + $0x78] sm:$0xff] %v3528
        %v3545 = vld [vmem:[%s2652 + $0x80] sm:$0xff]
        %v3546 = vld [vmem:[%s2652 + $0x88] sm:$0xff]
        %v3547 = vld [vmem:[%s2652 + $0x90] sm:$0xff]
        %v3548 = vld [vmem:[%s2652 + $0x98] sm:$0xff]
        %v3549 = vld [vmem:[%s2652 + $0xa0] sm:$0xff]
        %v3550 = vld [vmem:[%s2652 + $0xa8] sm:$0xff]
        %v3551 = vld [vmem:[%s2652 + $0xb0] sm:$0xff]
        %v3552 = vld [vmem:[%s2652 + $0xb8] sm:$0xff]
        %v3553 = vld [vmem:[%s2652 + $0xc0] sm:$0xff]
        %v3554 = vld [vmem:[%s2652 + $0xc8] sm:$0xff]
        %v3555 = vld [vmem:[%s2652 + $0xd0] sm:$0xff]
        %v3556 = vld [vmem:[%s2652 + $0xd8] sm:$0xff]
        %v3557 = vld [vmem:[%s2652 + $0xe0] sm:$0xff]
        %v3558 = vld [vmem:[%s2652 + $0xe8] sm:$0xff]
        %v3559 = vld [vmem:[%s2652 + $0xf0] sm:$0xff]
        %v3560 = vld [vmem:[%s2652 + $0xf8] sm:$0xff]
        %v3561 = vunpack.c.l.bf16 %v3545
        %v3562 = vunpack.c.h.bf16 %v3545
        %v3563 = vunpack.c.l.bf16 %v3546
        %v3564 = vunpack.c.h.bf16 %v3546
        %v3565 = vunpack.c.l.bf16 %v3547
        %v3566 = vunpack.c.h.bf16 %v3547
        %v3567 = vunpack.c.l.bf16 %v3548
        %v3568 = vunpack.c.h.bf16 %v3548
        %v3569 = vunpack.c.l.bf16 %v3549
        %v3570 = vunpack.c.h.bf16 %v3549
        %v3571 = vunpack.c.l.bf16 %v3550
        %v3572 = vunpack.c.h.bf16 %v3550
        %v3573 = vunpack.c.l.bf16 %v3551
        %v3574 = vunpack.c.h.bf16 %v3551
        %v3575 = vunpack.c.l.bf16 %v3552
        %v3576 = vunpack.c.h.bf16 %v3552
        %v3577 = vunpack.c.l.bf16 %v3553
        %v3578 = vunpack.c.h.bf16 %v3553
        %v3579 = vunpack.c.l.bf16 %v3554
        %v3580 = vunpack.c.h.bf16 %v3554
        %v3581 = vunpack.c.l.bf16 %v3555
        %v3582 = vunpack.c.h.bf16 %v3555
        %v3583 = vunpack.c.l.bf16 %v3556
        %v3584 = vunpack.c.h.bf16 %v3556
        %v3585 = vunpack.c.l.bf16 %v3557
        %v3586 = vunpack.c.h.bf16 %v3557
        %v3587 = vunpack.c.l.bf16 %v3558
        %v3588 = vunpack.c.h.bf16 %v3558
        %v3589 = vunpack.c.l.bf16 %v3559
        %v3590 = vunpack.c.h.bf16 %v3559
        %v3591 = vunpack.c.l.bf16 %v3560
        %v3592 = vunpack.c.h.bf16 %v3560
        %v3594 = vsel %vm725, %v2644, 0
        %v3597 = vsel %vm725, %v2645, 0
        %v3600 = vsel %vm725, %v2646, 0
        %v3603 = vsel %vm725, %v2647, 0
        %v3606 = vsel %vm725, %v2648, 0
        %v3609 = vsel %vm725, %v2649, 0
        %v3612 = vsel %vm725, %v2650, 0
        %v3615 = vsel %vm725, %v2651, 0
        %3617 = vmatprep.subr.bf16.mxu0 0
        %3618 = vmatpush1.bf16.xpose.msra.mxu0 %v2774
        %3619 = vmatprep.subr.bf16.mxu0 0
        %3620 = vmatpush1.bf16.xpose.msra.mxu0 %v2777
        %3621 = vmatprep.subr.bf16.mxu0 0
        %3622 = vmatpush1.bf16.xpose.msra.mxu0 %v2780
        %3623 = vmatprep.subr.bf16.mxu0 0
        %3624 = vmatpush1.bf16.xpose.msra.mxu0 %v2783
        %3625 = vmatprep.subr.bf16.mxu0 0
        %3626 = vmatpush1.bf16.xpose.msra.mxu0 %v2786
        %3627 = vmatprep.subr.bf16.mxu0 0
        %3628 = vmatpush1.bf16.xpose.msra.mxu0 %v2789
        %3629 = vmatprep.subr.bf16.mxu0 0
        %3630 = vmatpush1.bf16.xpose.msra.mxu0 %v2792
        %3631 = vmatprep.subr.bf16.mxu0 0
        %3632 = vmatpush1.bf16.xpose.msra.mxu0 %v2795
        %3633 = vmatprep.subr.bf16.mxu0 0
        %3634 = vmatpush1.bf16.xpose.msra.mxu0 %v2798
        %3635 = vmatprep.subr.bf16.mxu0 0
        %3636 = vmatpush1.bf16.xpose.msra.mxu0 %v2801
        %3637 = vmatprep.subr.bf16.mxu0 0
        %3638 = vmatpush1.bf16.xpose.msra.mxu0 %v2804
        %3639 = vmatprep.subr.bf16.mxu0 0
        %3640 = vmatpush1.bf16.xpose.msra.mxu0 %v2807
        %3641 = vmatprep.subr.bf16.mxu0 0
        %3642 = vmatpush1.bf16.xpose.msra.mxu0 %v2810
        %3643 = vmatprep.subr.bf16.mxu0 0
        %3644 = vmatpush1.bf16.xpose.msra.mxu0 %v2813
        %3645 = vmatprep.subr.bf16.mxu0 0
        %3646 = vmatpush1.bf16.xpose.msra.mxu0 %v2816
        %3647 = vmatprep.subr.bf16.mxu0 0
        %3648 = vmatpush1.bf16.xpose.msra.mxu0 %v2819
        %3649 = vmatprep.mubr.bf16.mxu0 0
        %3650 = vmatmul.mubr.bf16.gmra.mrb[0].mxu0 %v3594
        %v3651 = vpop.f32.mrb[0].mxu0
        %v3652 = vadd.f32 %v3561, %v3651
        %v3653 = vpop.f32.mrb[0].mxu0
        %v3654 = vadd.f32 %v3562, %v3653
        %v3655 = vpop.f32.mrb[0].mxu0
        %v3656 = vadd.f32 %v3563, %v3655
        %v3657 = vpop.f32.mrb[0].mxu0
        %v3658 = vadd.f32 %v3564, %v3657
        %3659 = vmatprep.mubr.bf16.mxu0 0
        %3660 = vmatmul.mubr.bf16.gmra.mrb[0].mxu0 %v3597
        %v3661 = vpop.f32.mrb[0].mxu0
        %v3662 = vadd.f32 %v3565, %v3661
        %v3663 = vpop.f32.mrb[0].mxu0
        %v3664 = vadd.f32 %v3566, %v3663
        %v3665 = vpop.f32.mrb[0].mxu0
        %v3666 = vadd.f32 %v3567, %v3665
        %v3667 = vpop.f32.mrb[0].mxu0
        %v3668 = vadd.f32 %v3568, %v3667
        %3669 = vmatprep.mubr.bf16.mxu0 0
        %3670 = vmatmul.mubr.bf16.gmra.mrb[0].mxu0 %v3600
        %v3671 = vpop.f32.mrb[0].mxu0
        %v3672 = vadd.f32 %v3569, %v3671
        %v3673 = vpop.f32.mrb[0].mxu0
        %v3674 = vadd.f32 %v3570, %v3673
        %v3675 = vpop.f32.mrb[0].mxu0
        %v3676 = vadd.f32 %v3571, %v3675
        %v3677 = vpop.f32.mrb[0].mxu0
        %v3678 = vadd.f32 %v3572, %v3677
        %3679 = vmatprep.mubr.bf16.mxu0 0
        %3680 = vmatmul.mubr.bf16.gmra.mrb[0].mxu0 %v3603
        %v3681 = vpop.f32.mrb[0].mxu0
        %v3682 = vadd.f32 %v3573, %v3681
        %v3683 = vpop.f32.mrb[0].mxu0
        %v3684 = vadd.f32 %v3574, %v3683
        %v3685 = vpop.f32.mrb[0].mxu0
        %v3686 = vadd.f32 %v3575, %v3685
        %v3687 = vpop.f32.mrb[0].mxu0
        %v3688 = vadd.f32 %v3576, %v3687
        %3689 = vmatprep.mubr.bf16.mxu0 0
        %3690 = vmatmul.mubr.bf16.gmra.mrb[0].mxu0 %v3606
        %v3691 = vpop.f32.mrb[0].mxu0
        %v3692 = vadd.f32 %v3577, %v3691
        %v3693 = vpop.f32.mrb[0].mxu0
        %v3694 = vadd.f32 %v3578, %v3693
        %v3695 = vpop.f32.mrb[0].mxu0
        %v3696 = vadd.f32 %v3579, %v3695
        %v3697 = vpop.f32.mrb[0].mxu0
        %v3698 = vadd.f32 %v3580, %v3697
        %3699 = vmatprep.mubr.bf16.mxu0 0
        %3700 = vmatmul.mubr.bf16.gmra.mrb[0].mxu0 %v3609
        %v3701 = vpop.f32.mrb[0].mxu0
        %v3702 = vadd.f32 %v3581, %v3701
        %v3703 = vpop.f32.mrb[0].mxu0
        %v3704 = vadd.f32 %v3582, %v3703
        %v3705 = vpop.f32.mrb[0].mxu0
        %v3706 = vadd.f32 %v3583, %v3705
        %v3707 = vpop.f32.mrb[0].mxu0
        %v3708 = vadd.f32 %v3584, %v3707
        %3709 = vmatprep.mubr.bf16.mxu0 0
        %3710 = vmatmul.mubr.bf16.gmra.mrb[0].mxu0 %v3612
        %v3711 = vpop.f32.mrb[0].mxu0
        %v3712 = vadd.f32 %v3585, %v3711
        %v3713 = vpop.f32.mrb[0].mxu0
        %v3714 = vadd.f32 %v3586, %v3713
        %v3715 = vpop.f32.mrb[0].mxu0
        %v3716 = vadd.f32 %v3587, %v3715
        %v3717 = vpop.f32.mrb[0].mxu0
        %v3718 = vadd.f32 %v3588, %v3717
        %3719 = vmatprep.mubr.bf16.mxu0 0
        %3720 = vmatmul.mubr.bf16.gmra.mrb[0].mxu0 %v3615
        %v3721 = vpop.f32.mrb[0].mxu0
        %v3722 = vadd.f32 %v3589, %v3721
        %v3723 = vpop.f32.mrb[0].mxu0
        %v3724 = vadd.f32 %v3590, %v3723
        %v3725 = vpop.f32.mrb[0].mxu0
        %v3726 = vadd.f32 %v3591, %v3725
        %v3727 = vpop.f32.mrb[0].mxu0
        %v3728 = vadd.f32 %v3592, %v3727
        %3729 = vdwg.mxu0
        %v3730 = vmax.f32 %v3652, %v3654
        %3731 = vmax.xlane.f32.xlu0 %v3730
        %v3732 = vpop.xlane.xlu0 %3731
        %v3733 = vmax.f32 %v3656, %v3658
        %3734 = vmax.xlane.f32.xlu0 %v3733
        %v3735 = vpop.xlane.xlu0 %3734
        %v3736 = vmax.f32 %v3662, %v3664
        %3737 = vmax.xlane.f32.xlu0 %v3736
        %v3738 = vpop.xlane.xlu0 %3737
        %v3739 = vmax.f32 %v3666, %v3668
        %3740 = vmax.xlane.f32.xlu0 %v3739
        %v3741 = vpop.xlane.xlu0 %3740
        %v3742 = vmax.f32 %v3672, %v3674
        %3743 = vmax.xlane.f32.xlu0 %v3742
        %v3744 = vpop.xlane.xlu0 %3743
        %v3745 = vmax.f32 %v3676, %v3678
        %3746 = vmax.xlane.f32.xlu0 %v3745
        %v3747 = vpop.xlane.xlu0 %3746
        %v3748 = vmax.f32 %v3682, %v3684
        %3749 = vmax.xlane.f32.xlu0 %v3748
        %v3750 = vpop.xlane.xlu0 %3749
        %v3751 = vmax.f32 %v3686, %v3688
        %3752 = vmax.xlane.f32.xlu0 %v3751
        %v3753 = vpop.xlane.xlu0 %3752
        %v3754 = vmax.f32 %v3692, %v3694
        %3755 = vmax.xlane.f32.xlu0 %v3754
        %v3756 = vpop.xlane.xlu0 %3755
        %v3757 = vmax.f32 %v3696, %v3698
        %3758 = vmax.xlane.f32.xlu0 %v3757
        %v3759 = vpop.xlane.xlu0 %3758
        %v3760 = vmax.f32 %v3702, %v3704
        %3761 = vmax.xlane.f32.xlu0 %v3760
        %v3762 = vpop.xlane.xlu0 %3761
        %v3763 = vmax.f32 %v3706, %v3708
        %3764 = vmax.xlane.f32.xlu0 %v3763
        %v3765 = vpop.xlane.xlu0 %3764
        %v3766 = vmax.f32 %v3712, %v3714
        %3767 = vmax.xlane.f32.xlu0 %v3766
        %v3768 = vpop.xlane.xlu0 %3767
        %v3769 = vmax.f32 %v3716, %v3718
        %3770 = vmax.xlane.f32.xlu0 %v3769
        %v3771 = vpop.xlane.xlu0 %3770
        %v3772 = vmax.f32 %v3722, %v3724
        %3773 = vmax.xlane.f32.xlu0 %v3772
        %v3774 = vpop.xlane.xlu0 %3773
        %v3775 = vmax.f32 %v3726, %v3728
        %3776 = vmax.xlane.f32.xlu0 %v3775
        %v3777 = vpop.xlane.xlu0 %3776
        %v3778 = vsub.f32 %v3652, %v3732
        %v3779 = vsub.f32 %v3654, %v3732
        %v3780 = vsub.f32 %v3656, %v3735
        %v3781 = vsub.f32 %v3658, %v3735
        %v3782 = vsub.f32 %v3662, %v3738
        %v3783 = vsub.f32 %v3664, %v3738
        %v3784 = vsub.f32 %v3666, %v3741
        %v3785 = vsub.f32 %v3668, %v3741
        %v3786 = vsub.f32 %v3672, %v3744
        %v3787 = vsub.f32 %v3674, %v3744
        %v3788 = vsub.f32 %v3676, %v3747
        %v3789 = vsub.f32 %v3678, %v3747
        %v3790 = vsub.f32 %v3682, %v3750
        %v3791 = vsub.f32 %v3684, %v3750
        %v3792 = vsub.f32 %v3686, %v3753
        %v3793 = vsub.f32 %v3688, %v3753
        %v3794 = vsub.f32 %v3692, %v3756
        %v3795 = vsub.f32 %v3694, %v3756
        %v3796 = vsub.f32 %v3696, %v3759
        %v3797 = vsub.f32 %v3698, %v3759
        %v3798 = vsub.f32 %v3702, %v3762
        %v3799 = vsub.f32 %v3704, %v3762
        %v3800 = vsub.f32 %v3706, %v3765
        %v3801 = vsub.f32 %v3708, %v3765
        %v3802 = vsub.f32 %v3712, %v3768
        %v3803 = vsub.f32 %v3714, %v3768
        %v3804 = vsub.f32 %v3716, %v3771
        %v3805 = vsub.f32 %v3718, %v3771
        %v3806 = vsub.f32 %v3722, %v3774
        %v3807 = vsub.f32 %v3724, %v3774
        %v3808 = vsub.f32 %v3726, %v3777
        %v3809 = vsub.f32 %v3728, %v3777
        %v3810 = vmul.f32 %v3778, 1.442695
        %v3811 = vpow.pop %v3810
        %v3812 = vmul.f32 %v3779, 1.442695
        %v3813 = vpow.pop %v3812
        %v3814 = vmul.f32 %v3780, 1.442695
        %v3815 = vpow.pop %v3814
        %v3816 = vmul.f32 %v3781, 1.442695
        %v3817 = vpow.pop %v3816
        %v3818 = vmul.f32 %v3782, 1.442695
        %v3819 = vpow.pop %v3818
        %v3820 = vmul.f32 %v3783, 1.442695
        %v3821 = vpow.pop %v3820
        %v3822 = vmul.f32 %v3784, 1.442695
        %v3823 = vpow.pop %v3822
        %v3824 = vmul.f32 %v3785, 1.442695
        %v3825 = vpow.pop %v3824
        %v3826 = vmul.f32 %v3786, 1.442695
        %v3827 = vpow.pop %v3826
        %v3828 = vmul.f32 %v3787, 1.442695
        %v3829 = vpow.pop %v3828
        %v3830 = vmul.f32 %v3788, 1.442695
        %v3831 = vpow.pop %v3830
        %v3832 = vmul.f32 %v3789, 1.442695
        %v3833 = vpow.pop %v3832
        %v3834 = vmul.f32 %v3790, 1.442695
        %v3835 = vpow.pop %v3834
        %v3836 = vmul.f32 %v3791, 1.442695
        %v3837 = vpow.pop %v3836
        %v3838 = vmul.f32 %v3792, 1.442695
        %v3839 = vpow.pop %v3838
        %v3840 = vmul.f32 %v3793, 1.442695
        %v3841 = vpow.pop %v3840
        %v3842 = vmul.f32 %v3794, 1.442695
        %v3843 = vpow.pop %v3842
        %v3844 = vmul.f32 %v3795, 1.442695
        %v3845 = vpow.pop %v3844
        %v3846 = vmul.f32 %v3796, 1.442695
        %v3847 = vpow.pop %v3846
        %v3848 = vmul.f32 %v3797, 1.442695
        %v3849 = vpow.pop %v3848
        %v3850 = vmul.f32 %v3798, 1.442695
        %v3851 = vpow.pop %v3850
        %v3852 = vmul.f32 %v3799, 1.442695
        %v3853 = vpow.pop %v3852
        %v3854 = vmul.f32 %v3800, 1.442695
        %v3855 = vpow.pop %v3854
        %v3856 = vmul.f32 %v3801, 1.442695
        %v3857 = vpow.pop %v3856
        %v3858 = vmul.f32 %v3802, 1.442695
        %v3859 = vpow.pop %v3858
        %v3860 = vmul.f32 %v3803, 1.442695
        %v3861 = vpow.pop %v3860
        %v3862 = vmul.f32 %v3804, 1.442695
        %v3863 = vpow.pop %v3862
        %v3864 = vmul.f32 %v3805, 1.442695
        %v3865 = vpow.pop %v3864
        %v3866 = vmul.f32 %v3806, 1.442695
        %v3867 = vpow.pop %v3866
        %v3868 = vmul.f32 %v3807, 1.442695
        %v3869 = vpow.pop %v3868
        %v3870 = vmul.f32 %v3808, 1.442695
        %v3871 = vpow.pop %v3870
        %v3872 = vmul.f32 %v3809, 1.442695
        %v3873 = vpow.pop %v3872
        %v3874 = vadd.f32 %v3811, %v3813
        %3875 = vadd.xlane.f32.xlu0 %v3874
        %v3876 = vpop.xlane.xlu0 %3875
        %v3877 = vadd.f32 %v3815, %v3817
        %3878 = vadd.xlane.f32.xlu0 %v3877
        %v3879 = vpop.xlane.xlu0 %3878
        %v3880 = vadd.f32 %v3819, %v3821
        %3881 = vadd.xlane.f32.xlu0 %v3880
        %v3882 = vpop.xlane.xlu0 %3881
        %v3883 = vadd.f32 %v3823, %v3825
        %3884 = vadd.xlane.f32.xlu0 %v3883
        %v3885 = vpop.xlane.xlu0 %3884
        %v3886 = vadd.f32 %v3827, %v3829
        %3887 = vadd.xlane.f32.xlu0 %v3886
        %v3888 = vpop.xlane.xlu0 %3887
        %v3889 = vadd.f32 %v3831, %v3833
        %3890 = vadd.xlane.f32.xlu0 %v3889
        %v3891 = vpop.xlane.xlu0 %3890
        %v3892 = vadd.f32 %v3835, %v3837
        %3893 = vadd.xlane.f32.xlu0 %v3892
        %v3894 = vpop.xlane.xlu0 %3893
        %v3895 = vadd.f32 %v3839, %v3841
        %3896 = vadd.xlane.f32.xlu0 %v3895
        %v3897 = vpop.xlane.xlu0 %3896
        %v3898 = vadd.f32 %v3843, %v3845
        %3899 = vadd.xlane.f32.xlu0 %v3898
        %v3900 = vpop.xlane.xlu0 %3899
        %v3901 = vadd.f32 %v3847, %v3849
        %3902 = vadd.xlane.f32.xlu0 %v3901
        %v3903 = vpop.xlane.xlu0 %3902
        %v3904 = vadd.f32 %v3851, %v3853
        %3905 = vadd.xlane.f32.xlu0 %v3904
        %v3906 = vpop.xlane.xlu0 %3905
        %v3907 = vadd.f32 %v3855, %v3857
        %3908 = vadd.xlane.f32.xlu0 %v3907
        %v3909 = vpop.xlane.xlu0 %3908
        %v3910 = vadd.f32 %v3859, %v3861
        %3911 = vadd.xlane.f32.xlu0 %v3910
        %v3912 = vpop.xlane.xlu0 %3911
        %v3913 = vadd.f32 %v3863, %v3865
        %3914 = vadd.xlane.f32.xlu0 %v3913
        %v3915 = vpop.xlane.xlu0 %3914
        %v3916 = vadd.f32 %v3867, %v3869
        %3917 = vadd.xlane.f32.xlu0 %v3916
        %v3918 = vpop.xlane.xlu0 %3917
        %v3919 = vadd.f32 %v3871, %v3873
        %3920 = vadd.xlane.f32.xlu0 %v3919
        %v3921 = vpop.xlane.xlu0 %3920
        %v3922 = vpack.c.bf16 %v3815, %v3811
        %v3923 = vpack.c.bf16 %v3817, %v3813
        %v3924 = vpack.c.bf16 %v3823, %v3819
        %v3925 = vpack.c.bf16 %v3825, %v3821
        %v3926 = vpack.c.bf16 %v3831, %v3827
        %v3927 = vpack.c.bf16 %v3833, %v3829
        %v3928 = vpack.c.bf16 %v3839, %v3835
        %v3929 = vpack.c.bf16 %v3841, %v3837
        %v3930 = vpack.c.bf16 %v3847, %v3843
        %v3931 = vpack.c.bf16 %v3849, %v3845
        %v3932 = vpack.c.bf16 %v3855, %v3851
        %v3933 = vpack.c.bf16 %v3857, %v3853
        %v3934 = vpack.c.bf16 %v3863, %v3859
        %v3935 = vpack.c.bf16 %v3865, %v3861
        %v3936 = vpack.c.bf16 %v3871, %v3867
        %v3937 = vpack.c.bf16 %v3873, %v3869
        %3938 = vmatprep.subr.bf16.mxu0 0
        %3939 = vmatpush1.bf16.msra.mxu0 %v3143
        %3940 = vmatprep.subr.bf16.mxu0 0
        %3941 = vmatpush1.bf16.msra.mxu0 %v3145
        %3942 = vmatprep.subr.bf16.mxu0 0
        %3943 = vmatpush1.bf16.msra.mxu0 %v3147
        %3944 = vmatprep.subr.bf16.mxu0 0
        %3945 = vmatpush1.bf16.msra.mxu0 %v3149
        %3946 = vmatprep.subr.bf16.mxu0 0
        %3947 = vmatpush1.bf16.msra.mxu0 %v3151
        %3948 = vmatprep.subr.bf16.mxu0 0
        %3949 = vmatpush1.bf16.msra.mxu0 %v3153
        %3950 = vmatprep.subr.bf16.mxu0 0
        %3951 = vmatpush1.bf16.msra.mxu0 %v3155
        %3952 = vmatprep.subr.bf16.mxu0 0
        %3953 = vmatpush1.bf16.msra.mxu0 %v3157
        %3954 = vmatprep.subr.bf16.mxu0 0
        %3955 = vmatpush1.bf16.msra.mxu0 %v3159
        %3956 = vmatprep.subr.bf16.mxu0 0
        %3957 = vmatpush1.bf16.msra.mxu0 %v3161
        %3958 = vmatprep.subr.bf16.mxu0 0
        %3959 = vmatpush1.bf16.msra.mxu0 %v3163
        %3960 = vmatprep.subr.bf16.mxu0 0
        %3961 = vmatpush1.bf16.msra.mxu0 %v3165
        %3962 = vmatprep.subr.bf16.mxu0 0
        %3963 = vmatpush1.bf16.msra.mxu0 %v3167
        %3964 = vmatprep.subr.bf16.mxu0 0
        %3965 = vmatpush1.bf16.msra.mxu0 %v3169
        %3966 = vmatprep.subr.bf16.mxu0 0
        %3967 = vmatpush1.bf16.msra.mxu0 %v3171
        %3968 = vmatprep.subr.bf16.mxu0 0
        %3969 = vmatpush1.bf16.msra.mxu0 %v3173
        %3970 = vmatprep.mubr.bf16.mxu0 %v3923
        %3971 = vmatmul.mubr.bf16.gmra.mrb[0].mxu0 %v3922
        %v3972 = vpop.f32.mrb[0].mxu0
        %v3973 = vadd.f32 0.0, %v3972
        %v3974 = vpop.f32.mrb[0].mxu0
        %v3975 = vpop.f32.mrb[0].mxu0
        %v3976 = vadd.f32 0.0, %v3975
        %v3977 = vpop.f32.mrb[0].mxu0
        %3978 = vmatprep.mubr.bf16.mxu0 %v3925
        %3979 = vmatmul.mubr.bf16.gmra.mrb[0].mxu0 %v3924
        %v3980 = vpop.f32.mrb[0].mxu0
        %v3981 = vadd.f32 0.0, %v3980
        %v3982 = vpop.f32.mrb[0].mxu0
        %v3983 = vpop.f32.mrb[0].mxu0
        %v3984 = vadd.f32 0.0, %v3983
        %v3985 = vpop.f32.mrb[0].mxu0
        %3986 = vmatprep.mubr.bf16.mxu0 %v3927
        %3987 = vmatmul.mubr.bf16.gmra.mrb[0].mxu0 %v3926
        %v3988 = vpop.f32.mrb[0].mxu0
        %v3989 = vadd.f32 0.0, %v3988
        %v3990 = vpop.f32.mrb[0].mxu0
        %v3991 = vpop.f32.mrb[0].mxu0
        %v3992 = vadd.f32 0.0, %v3991
        %v3993 = vpop.f32.mrb[0].mxu0
        %3994 = vmatprep.mubr.bf16.mxu0 %v3929
        %3995 = vmatmul.mubr.bf16.gmra.mrb[0].mxu0 %v3928
        %v3996 = vpop.f32.mrb[0].mxu0
        %v3997 = vadd.f32 0.0, %v3996
        %v3998 = vpop.f32.mrb[0].mxu0
        %v3999 = vpop.f32.mrb[0].mxu0
        %v4000 = vadd.f32 0.0, %v3999
        %v4001 = vpop.f32.mrb[0].mxu0
        %4002 = vmatprep.mubr.bf16.mxu0 %v3931
        %4003 = vmatmul.mubr.bf16.gmra.mrb[0].mxu0 %v3930
        %v4004 = vpop.f32.mrb[0].mxu0
        %v4005 = vadd.f32 0.0, %v4004
        %v4006 = vpop.f32.mrb[0].mxu0
        %v4007 = vpop.f32.mrb[0].mxu0
        %v4008 = vadd.f32 0.0, %v4007
        %v4009 = vpop.f32.mrb[0].mxu0
        %4010 = vmatprep.mubr.bf16.mxu0 %v3933
        %4011 = vmatmul.mubr.bf16.gmra.mrb[0].mxu0 %v3932
        %v4012 = vpop.f32.mrb[0].mxu0
        %v4013 = vadd.f32 0.0, %v4012
        %v4014 = vpop.f32.mrb[0].mxu0
        %v4015 = vpop.f32.mrb[0].mxu0
        %v4016 = vadd.f32 0.0, %v4015
        %v4017 = vpop.f32.mrb[0].mxu0
        %4018 = vmatprep.mubr.bf16.mxu0 %v3935
        %4019 = vmatmul.mubr.bf16.gmra.mrb[0].mxu0 %v3934
        %v4020 = vpop.f32.mrb[0].mxu0
        %v4021 = vadd.f32 0.0, %v4020
        %v4022 = vpop.f32.mrb[0].mxu0
        %v4023 = vpop.f32.mrb[0].mxu0
        %v4024 = vadd.f32 0.0, %v4023
        %v4025 = vpop.f32.mrb[0].mxu0
        %4026 = vmatprep.mubr.bf16.mxu0 %v3937
        %4027 = vmatmul.mubr.bf16.gmra.mrb[0].mxu0 %v3936
        %v4028 = vpop.f32.mrb[0].mxu0
        %v4029 = vadd.f32 0.0, %v4028
        %v4030 = vpop.f32.mrb[0].mxu0
        %v4031 = vpop.f32.mrb[0].mxu0
        %v4032 = vadd.f32 0.0, %v4031
        %v4033 = vpop.f32.mrb[0].mxu0
        %4034 = vdwg.mxu0
        %v4035 = vrcp.pop %v3876
        %v4036 = vrcp.pop %v3879
        %v4037 = vrcp.pop %v3882
        %v4038 = vrcp.pop %v3885
        %v4039 = vrcp.pop %v3888
        %v4040 = vrcp.pop %v3891
        %v4041 = vrcp.pop %v3894
        %v4042 = vrcp.pop %v3897
        %v4043 = vrcp.pop %v3900
        %v4044 = vrcp.pop %v3903
        %v4045 = vrcp.pop %v3906
        %v4046 = vrcp.pop %v3909
        %v4047 = vrcp.pop %v3912
        %v4048 = vrcp.pop %v3915
        %v4049 = vrcp.pop %v3918
        %v4050 = vrcp.pop %v3921
        %v4051 = vmul.f32 %v3973, %v4035
        %v4052 = vmul.f32 %v3976, %v4036
        %v4053 = vmul.f32 %v3981, %v4037
        %v4054 = vmul.f32 %v3984, %v4038
        %v4055 = vmul.f32 %v3989, %v4039
        %v4056 = vmul.f32 %v3992, %v4040
        %v4057 = vmul.f32 %v3997, %v4041
        %v4058 = vmul.f32 %v4000, %v4042
        %v4059 = vmul.f32 %v4005, %v4043
        %v4060 = vmul.f32 %v4008, %v4044
        %v4061 = vmul.f32 %v4013, %v4045
        %v4062 = vmul.f32 %v4016, %v4046
        %v4063 = vmul.f32 %v4021, %v4047
        %v4064 = vmul.f32 %v4024, %v4048
        %v4065 = vmul.f32 %v4029, %v4049
        %v4066 = vmul.f32 %v4032, %v4050
        %v4067 = vmax.f32 %v4051, 0.0
        %v4068 = vmax.f32 %v4052, 0.0
        %v4069 = vmax.f32 %v4053, 0.0
        %v4070 = vmax.f32 %v4054, 0.0
        %v4071 = vmax.f32 %v4055, 0.0
        %v4072 = vmax.f32 %v4056, 0.0
        %v4073 = vmax.f32 %v4057, 0.0
        %v4074 = vmax.f32 %v4058, 0.0
        %v4075 = vmax.f32 %v4059, 0.0
        %v4076 = vmax.f32 %v4060, 0.0
        %v4077 = vmax.f32 %v4061, 0.0
        %v4078 = vmax.f32 %v4062, 0.0
        %v4079 = vmax.f32 %v4063, 0.0
        %v4080 = vmax.f32 %v4064, 0.0
        %v4081 = vmax.f32 %v4065, 0.0
        %v4082 = vmax.f32 %v4066, 0.0
        %v4083 = vpack.c.bf16 %v4068, %v4067
        %v4084 = vpack.c.bf16 %v4070, %v4069
        %v4085 = vpack.c.bf16 %v4072, %v4071
        %v4086 = vpack.c.bf16 %v4074, %v4073
        %v4087 = vpack.c.bf16 %v4076, %v4075
        %v4088 = vpack.c.bf16 %v4078, %v4077
        %v4089 = vpack.c.bf16 %v4080, %v4079
        %v4090 = vpack.c.bf16 %v4082, %v4081
        %v4091 = vld [vmem:[%s3343] sm:$0xf]
        %v4092 = vld [vmem:[%s3343 + $0x4] sm:$0xf]
        %v4093 = vld [vmem:[%s3343 + $0x8] sm:$0xf]
        %v4094 = vld [vmem:[%s3343 + $0xc] sm:$0xf]
        %v4095 = vld [vmem:[%s3343 + $0x10] sm:$0xf]
        %v4096 = vld [vmem:[%s3343 + $0x14] sm:$0xf]
        %v4097 = vld [vmem:[%s3343 + $0x18] sm:$0xf]
        %v4098 = vld [vmem:[%s3343 + $0x1c] sm:$0xf]
        %v4107 = vunpack.c.l.b16 %v4091
        %v4108 = vunpack.c.l.b16 %v4092
        %v4109 = vunpack.c.l.b16 %v4093
        %v4110 = vunpack.c.l.b16 %v4094
        %v4111 = vunpack.c.l.b16 %v4095
        %v4112 = vunpack.c.l.b16 %v4096
        %v4113 = vunpack.c.l.b16 %v4097
        %v4114 = vunpack.c.l.b16 %v4098
        %v4115 = vpack.c.b16 %v4108, %v4107
        %v4116 = vpack.c.b16 %v4110, %v4109
        %v4117 = vpack.c.b16 %v4112, %v4111
        %v4118 = vpack.c.b16 %v4114, %v4113
        %v4124 = vsel %vm403, %v4083, 0
        %v4127 = vsel %vm403, %v4084, 0
        %v4130 = vsel %vm403, %v4085, 0
        %v4133 = vsel %vm403, %v4086, 0
        %v4136 = vsel %vm403, %v4087, 0
        %v4139 = vsel %vm403, %v4088, 0
        %v4142 = vsel %vm403, %v4089, 0
        %v4145 = vsel %vm403, %v4090, 0
        %4147 = vmatprep.subr.bf16.mxu0 0
        %4148 = vmatpush1.bf16.msra.mxu0 %v4115
        %4149 = vmatprep.subr.bf16.mxu0 0
        %4150 = vmatpush1.bf16.msra.mxu0 %v4116
        %4151 = vmatprep.subr.bf16.mxu0 0
        %4152 = vmatpush1.bf16.msra.mxu0 %v4117
        %4153 = vmatprep.subr.bf16.mxu0 0
        %4154 = vmatpush1.bf16.msra.mxu0 %v4118
        %4155 = vmatprep.subr.bf16.mxu0 0
        %4156 = vmatpush1.bf16.msra.mxu0 0
        %4157 = vmatprep.subr.bf16.mxu0 0
        %4158 = vmatpush1.bf16.msra.mxu0 0
        %4159 = vmatprep.subr.bf16.mxu0 0
        %4160 = vmatpush1.bf16.msra.mxu0 0
        %4161 = vmatprep.subr.bf16.mxu0 0
        %4162 = vmatpush1.bf16.msra.mxu0 0
        %4163 = vmatprep.subr.bf16.mxu0 0
        %4164 = vmatpush1.bf16.msra.mxu0 0
        %4165 = vmatprep.subr.bf16.mxu0 0
        %4166 = vmatpush1.bf16.msra.mxu0 0
        %4167 = vmatprep.subr.bf16.mxu0 0
        %4168 = vmatpush1.bf16.msra.mxu0 0
        %4169 = vmatprep.subr.bf16.mxu0 0
        %4170 = vmatpush1.bf16.msra.mxu0 0
        %4171 = vmatprep.subr.bf16.mxu0 0
        %4172 = vmatpush1.bf16.msra.mxu0 0
        %4173 = vmatprep.subr.bf16.mxu0 0
        %4174 = vmatpush1.bf16.msra.mxu0 0
        %4175 = vmatprep.subr.bf16.mxu0 0
        %4176 = vmatpush1.bf16.msra.mxu0 0
        %4177 = vmatprep.subr.bf16.mxu0 0
        %4178 = vmatpush1.bf16.msra.mxu0 0
        %4179 = vmatprep.mubr.bf16.mxu0 0
        %4180 = vmatmul.mubr.bf16.gmra.mrb[0].mxu0 %v4124
        %v4181 = vpop.f32.mrb[0].mxu0
        %v4182 = vadd.f32 0.0, %v4181
        %v4183 = vpop.f32.mrb[0].mxu0
        %v4184 = vpop.f32.mrb[0].mxu0
        %v4185 = vadd.f32 0.0, %v4184
        %v4186 = vpop.f32.mrb[0].mxu0
        %4187 = vmatprep.mubr.bf16.mxu0 0
        %4188 = vmatmul.mubr.bf16.gmra.mrb[0].mxu0 %v4127
        %v4189 = vpop.f32.mrb[0].mxu0
        %v4190 = vadd.f32 0.0, %v4189
        %v4191 = vpop.f32.mrb[0].mxu0
        %v4192 = vpop.f32.mrb[0].mxu0
        %v4193 = vadd.f32 0.0, %v4192
        %v4194 = vpop.f32.mrb[0].mxu0
        %4195 = vmatprep.mubr.bf16.mxu0 0
        %4196 = vmatmul.mubr.bf16.gmra.mrb[0].mxu0 %v4130
        %v4197 = vpop.f32.mrb[0].mxu0
        %v4198 = vadd.f32 0.0, %v4197
        %v4199 = vpop.f32.mrb[0].mxu0
        %v4200 = vpop.f32.mrb[0].mxu0
        %v4201 = vadd.f32 0.0, %v4200
        %v4202 = vpop.f32.mrb[0].mxu0
        %4203 = vmatprep.mubr.bf16.mxu0 0
        %4204 = vmatmul.mubr.bf16.gmra.mrb[0].mxu0 %v4133
        %v4205 = vpop.f32.mrb[0].mxu0
        %v4206 = vadd.f32 0.0, %v4205
        %v4207 = vpop.f32.mrb[0].mxu0
        %v4208 = vpop.f32.mrb[0].mxu0
        %v4209 = vadd.f32 0.0, %v4208
        %v4210 = vpop.f32.mrb[0].mxu0
        %4211 = vmatprep.mubr.bf16.mxu0 0
        %4212 = vmatmul.mubr.bf16.gmra.mrb[0].mxu0 %v4136
        %v4213 = vpop.f32.mrb[0].mxu0
        %v4214 = vadd.f32 0.0, %v4213
        %v4215 = vpop.f32.mrb[0].mxu0
        %v4216 = vpop.f32.mrb[0].mxu0
        %v4217 = vadd.f32 0.0, %v4216
        %v4218 = vpop.f32.mrb[0].mxu0
        %4219 = vmatprep.mubr.bf16.mxu0 0
        %4220 = vmatmul.mubr.bf16.gmra.mrb[0].mxu0 %v4139
        %v4221 = vpop.f32.mrb[0].mxu0
        %v4222 = vadd.f32 0.0, %v4221
        %v4223 = vpop.f32.mrb[0].mxu0
        %v4224 = vpop.f32.mrb[0].mxu0
        %v4225 = vadd.f32 0.0, %v4224
        %v4226 = vpop.f32.mrb[0].mxu0
        %4227 = vmatprep.mubr.bf16.mxu0 0
        %4228 = vmatmul.mubr.bf16.gmra.mrb[0].mxu0 %v4142
        %v4229 = vpop.f32.mrb[0].mxu0
        %v4230 = vadd.f32 0.0, %v4229
        %v4231 = vpop.f32.mrb[0].mxu0
        %v4232 = vpop.f32.mrb[0].mxu0
        %v4233 = vadd.f32 0.0, %v4232
        %v4234 = vpop.f32.mrb[0].mxu0
        %4235 = vmatprep.mubr.bf16.mxu0 0
        %4236 = vmatmul.mubr.bf16.gmra.mrb[0].mxu0 %v4145
        %v4237 = vpop.f32.mrb[0].mxu0
        %v4238 = vadd.f32 0.0, %v4237
        %v4239 = vpop.f32.mrb[0].mxu0
        %v4240 = vpop.f32.mrb[0].mxu0
        %v4241 = vadd.f32 0.0, %v4240
        %v4242 = vpop.f32.mrb[0].mxu0
        %4243 = vdwg.mxu0
        %v4244 = vld [vmem:[%s313 + $0x80] sm:$0xff]
        %v4245 = vld [vmem:[%s313 + $0x88] sm:$0xff]
        %v4246 = vld [vmem:[%s313 + $0x90] sm:$0xff]
        %v4247 = vld [vmem:[%s313 + $0x98] sm:$0xff]
        %v4248 = vld [vmem:[%s313 + $0xa0] sm:$0xff]
        %v4249 = vld [vmem:[%s313 + $0xa8] sm:$0xff]
        %v4250 = vld [vmem:[%s313 + $0xb0] sm:$0xff]
        %v4251 = vld [vmem:[%s313 + $0xb8] sm:$0xff]
        %v4252 = vld [vmem:[%s313 + $0xc0] sm:$0xff]
        %v4253 = vld [vmem:[%s313 + $0xc8] sm:$0xff]
        %v4254 = vld [vmem:[%s313 + $0xd0] sm:$0xff]
        %v4255 = vld [vmem:[%s313 + $0xd8] sm:$0xff]
        %v4256 = vld [vmem:[%s313 + $0xe0] sm:$0xff]
        %v4257 = vld [vmem:[%s313 + $0xe8] sm:$0xff]
        %v4258 = vld [vmem:[%s313 + $0xf0] sm:$0xff]
        %v4259 = vld [vmem:[%s313 + $0xf8] sm:$0xff]
        %v4260 = vadd.f32 %v4244, %v4182
        %v4261 = vadd.f32 %v4245, %v4185
        %v4262 = vadd.f32 %v4246, %v4190
        %v4263 = vadd.f32 %v4247, %v4193
        %v4264 = vadd.f32 %v4248, %v4198
        %v4265 = vadd.f32 %v4249, %v4201
        %v4266 = vadd.f32 %v4250, %v4206
        %v4267 = vadd.f32 %v4251, %v4209
        %v4268 = vadd.f32 %v4252, %v4214
        %v4269 = vadd.f32 %v4253, %v4217
        %v4270 = vadd.f32 %v4254, %v4222
        %v4271 = vadd.f32 %v4255, %v4225
        %v4272 = vadd.f32 %v4256, %v4230
        %v4273 = vadd.f32 %v4257, %v4233
        %v4274 = vadd.f32 %v4258, %v4238
        %v4275 = vadd.f32 %v4259, %v4241
        %4276 = vst [vmem:[%s313 + $0x80] sm:$0xff] %v4260
        %4277 = vst [vmem:[%s313 + $0x88] sm:$0xff] %v4261
        %4278 = vst [vmem:[%s313 + $0x90] sm:$0xff] %v4262
        %4279 = vst [vmem:[%s313 + $0x98] sm:$0xff] %v4263
        %4280 = vst [vmem:[%s313 + $0xa0] sm:$0xff] %v4264
        %4281 = vst [vmem:[%s313 + $0xa8] sm:$0xff] %v4265
        %4282 = vst [vmem:[%s313 + $0xb0] sm:$0xff] %v4266
        %4283 = vst [vmem:[%s313 + $0xb8] sm:$0xff] %v4267
        %4284 = vst [vmem:[%s313 + $0xc0] sm:$0xff] %v4268
        %4285 = vst [vmem:[%s313 + $0xc8] sm:$0xff] %v4269
        %4286 = vst [vmem:[%s313 + $0xd0] sm:$0xff] %v4270
        %4287 = vst [vmem:[%s313 + $0xd8] sm:$0xff] %v4271
        %4288 = vst [vmem:[%s313 + $0xe0] sm:$0xff] %v4272
        %4289 = vst [vmem:[%s313 + $0xe8] sm:$0xff] %v4273
        %4290 = vst [vmem:[%s313 + $0xf0] sm:$0xff] %v4274
        %4291 = vst [vmem:[%s313 + $0xf8] sm:$0xff] %v4275
        %s4292 = sand.u32 %s164, 1
        %s4293 = scalar_lea.sflag [#allocation4], %s4292
        %s4294 = sand.u32 %s164, 1
        %s4295 = smul.addr %s4294, 256
        %s4296 = scalar_lea.vmem [#allocation10], %s4295
        // Predicated region
        $region61: #{tpu_custom_call.1} parent=43 // pred_check
          %p4297 = pneg %p174
        $region62: #{tpu_custom_call.1} parent=43 // pred_check_branch
          %4299 = sbr.rel (%p4297) target = $region64
        $region63: #{tpu_custom_call.1} parent=43 // pred_region
          %s4301 = ssub.s32 4096, 4096
          %4302 = vsyncadd %s4293, %s4301
          %s4303 = smul.addr %s25, 32
          %s4304 = smul.addr %s4303, 128
          %s4305 = scalar_lea.hbm %s6, %s4304
          %s4306 = sshll.u32 %s4296, 4
          %s4307 = int_to_ptr.vmem [resolvable:$true] %s4306
          %4312 = dma.vmem_to_hbm [thread:$0]  %s4307, 4096, %s4305, %s4293, 128, 128, 8
        $region64: #{tpu_custom_call.1} parent=43 // pred_fallthru
          _
      $region44: #{tpu_custom_call.1} parent=5 // pred_fallthru
        _
      %p4313 = scmp.le.s32.totalorder 2, %s20
      // Predicated region
      $region65: #{tpu_custom_call.1} parent=5 // pred_check
        %p4314 = pneg %p4313
      $region66: #{tpu_custom_call.1} parent=5 // pred_check_branch
        %4316 = sbr.rel (%p4314) target = $region68
      $region67: #{tpu_custom_call.1} parent=5 // pred_region
        %s4317 = ssub.s32 %s20, 2
        // Predicated region
        $region69: #{tpu_custom_call.1} parent=67 // pred_check
          %p4318 = pneg %p180
        $region70: #{tpu_custom_call.1} parent=67 // pred_check_branch
          %4320 = sbr.rel (%p4318) target = $region72
        $region71: #{tpu_custom_call.1} parent=67 // pred_region
          %s4321 = sand.u32 %s165, 1
          %s4322 = scalar_lea.sflag [#allocation4], %s4321
          %s4323 = sand.u32 %s165, 1
          %s4324 = smul.addr %s4323, 256
          %s4325 = scalar_lea.vmem [#allocation10], %s4324
          %4326 = dma.done %s4322, 4096
        $region72: #{tpu_custom_call.1} parent=67 // pred_fallthru
          _
      $region68: #{tpu_custom_call.1} parent=5 // pred_fallthru
        _
    $region6: #{tpu_custom_call.1} parent=1 // loop_footer
      %s24 = sadd.s32 1, %s20
    $region7: #{tpu_custom_call.1} parent=1 // loop_footer_branch
      %19 = sbr.rel target = $region3
    $region8: #{tpu_custom_call.1} parent=1 // loop_exit
      _
    %4327 = vsyncpa [#allocation3], 1
    %s4328 = scalar_lea.sflag [#allocation3], 1
    %4329 = vsyncpa %s4328, 1
    %4330 = vsyncpa [#allocation6], 1
    %4331 = vsyncpa [#allocation9], 1
    %4332 = vsyncpa [#allocation4], 1
    %s4333 = scalar_lea.sflag [#allocation4], 1
    %4334 = vsyncpa %s4333, 1

</llo_original>
